<compile_context>
chip_gen: v6e
topology: v6e:2x2x1
jax: 0.10.0
libtpu: 0.0.40
codegen_flags: <defaults>
</compile_context>

<pallas_src>
import functools

import jax
import jax.numpy as jnp
from jax import lax
from jax.experimental import pallas as pl
from jax.experimental.pallas import tpu as pltpu


# ---------------------------------------------------------------------------
# Tiling helpers
# ---------------------------------------------------------------------------
def _pick_time_chunk(S, target):
    """Largest divisor of S that is <= target (keeps the time grid exact)."""
    tc = max(1, min(S, target))
    while S % tc:
        tc -= 1
    return tc


def _pick_m_tile(M, target):
    """M tile for the GEMM kernels: full M if small, else a multiple of 8."""
    if M <= target:
        return M
    return max(8, (target // 8) * 8)


# ---------------------------------------------------------------------------
# Fused multi-input / multi-output GEMM kernel:  o_j = sum_i x_i @ w_ij + b_j
# (x parts are the fwd/bwd halves of the previous layer's output -> no concat)
# ---------------------------------------------------------------------------
def _make_matmul_kernel(n_x, n_out):
    def kernel(*refs):
        # refs = x_1..x_nx, [w_1j..w_nxj, b_j  for each output j], o_1..o_nout
        xs = [refs[i][...].astype(jnp.bfloat16) for i in range(n_x)]
        out_base = n_x + n_out * (n_x + 1)
        pos = n_x
        for j in range(n_out):
            w_refs = refs[pos:pos + n_x]
            b_ref = refs[pos + n_x]
            pos += n_x + 1
            acc = b_ref[...]                                   # (1, N) f32
            for x, w_ref in zip(xs, w_refs):
                acc = acc + jnp.dot(x, w_ref[...],             # bf16 x bf16
                                    preferred_element_type=jnp.float32)
            refs[out_base + j][...] = acc
    return kernel


def matmul_pallas(x_parts, heads, *, block_m=256):
    """x_parts: list of (M, K_i) f32 arrays sharing the M axis.
    heads: list of (w_parts, b) with w_parts[i]: (K_i, N_j) bf16, b: (1, N_j) f32.
    Returns [o_j] with o_j = sum_i x_i @ w_parts[i] + b_j, each (M, N_j) f32."""
    M = x_parts[0].shape[0]
    n_x, n_out = len(x_parts), len(heads)
    tm = _pick_m_tile(M, block_m)
    grid = (pl.cdiv(M, tm),)

    in_specs, args = [], []
    for x in x_parts:
        in_specs.append(pl.BlockSpec((tm, x.shape[1]), lambda m: (m, 0)))
        args.append(x)
    out_specs, out_shapes = [], []
    for w_parts, b in heads:
        n = b.shape[1]
        for w in w_parts:
            in_specs.append(pl.BlockSpec(w.shape, lambda m: (0, 0)))
            args.append(w)
        in_specs.append(pl.BlockSpec((1, n), lambda m: (0, 0)))
        args.append(b)
        out_specs.append(pl.BlockSpec((tm, n), lambda m: (m, 0)))
        out_shapes.append(jax.ShapeDtypeStruct((M, n), jnp.float32))

    res = pl.pallas_call(
        _make_matmul_kernel(n_x, n_out),
        grid=grid,
        in_specs=in_specs,
        out_specs=out_specs,
        out_shape=out_shapes,
        compiler_params=pltpu.CompilerParams(
            dimension_semantics=("parallel",)),
    )(*args)
    return list(res) if isinstance(res, (list, tuple)) else [res]


# ---------------------------------------------------------------------------
# GRU recurrence kernels (time-chunked; hidden carried in VMEM scratch)
# ---------------------------------------------------------------------------
def _gru_cell(gi, gh, h_prev, b_hn):
    """gi/gh: (B, 3H) gate pre-activations (input / recurrent), columns r|z|n."""
    H = h_prev.shape[-1]
    r = jax.nn.sigmoid(gi[:, :H] + gh[:, :H])
    z = jax.nn.sigmoid(gi[:, H:2 * H] + gh[:, H:2 * H])
    n = jnp.tanh(gi[:, 2 * H:] + r * (gh[:, 2 * H:] + b_hn))
    return (1.0 - z) * n + z * h_prev


def _make_bigru_kernel(H, Tc, split_dirs, unroll):
    def kernel(gi_f_ref, gi_b_ref, whh_ref, bhn_ref, out_f_ref, out_b_ref,
               h_scr):
        @pl.when(pl.program_id(0) == 0)
        def _init():
            h_scr[...] = jnp.zeros_like(h_scr)

        if split_dirs:                       # two dense per-direction matmuls
            whh_f = whh_ref[0]               # (H, 3H) bf16, loop-invariant
            whh_b = whh_ref[1]
        else:                                # one fused block-diagonal matmul
            whh = whh_ref[...]               # (2H, 6H) bf16, loop-invariant
        bhn = bhn_ref[...]                   # (1, 2H) f32
        bhn_f, bhn_b = bhn[:, :H], bhn[:, H:]

        def step(j, carry):
            h = h_scr[...]                                    # (B, 2H) f32
            h_bf = h.astype(jnp.bfloat16)                     # MXU operand only
            if split_dirs:
                gh_f = jnp.dot(h_bf[:, :H], whh_f,
                               preferred_element_type=jnp.float32)
                gh_b = jnp.dot(h_bf[:, H:], whh_b,
                               preferred_element_type=jnp.float32)
            else:
                gh = jnp.dot(h_bf, whh, preferred_element_type=jnp.float32)
                gh_f, gh_b = gh[:, :3 * H], gh[:, 3 * H:]
            jr = Tc - 1 - j                   # bwd direction walks chunk reversed
            hf = _gru_cell(gi_f_ref[j], gh_f, h[:, :H], bhn_f)
            hb = _gru_cell(gi_b_ref[jr], gh_b, h[:, H:], bhn_b)
            out_f_ref[j] = hf                 # both outputs in true time order
            out_b_ref[jr] = hb
            h_scr[:, :H] = hf
            h_scr[:, H:] = hb
            return carry

        lax.fori_loop(0, Tc, step, 0, unroll=unroll)
    return kernel


def _make_gru_kernel(Tc, unroll):
    def kernel(gi_ref, whh_ref, bhn_ref, out_ref, h_scr):
        @pl.when(pl.program_id(0) == 0)
        def _init():
            h_scr[...] = jnp.zeros_like(h_scr)

        whh = whh_ref[...]
        bhn = bhn_ref[...]

        def step(j, carry):
            h = h_scr[...]
            gh = jnp.dot(h.astype(jnp.bfloat16), whh,
                         preferred_element_type=jnp.float32)
            hn = _gru_cell(gi_ref[j], gh, h, bhn)
            out_ref[j] = hn
            h_scr[...] = hn
            return carry

        lax.fori_loop(0, Tc, step, 0, unroll=unroll)
    return kernel


def gru_layer_pallas(gi_list, whh, bhn, *, hidden, split_dirs, time_chunk,
                     max_unroll=8):
    """Sequential recurrence of one (bi)GRU layer.

    gi_list: per-direction precomputed input projections, each (S, B, 3H) f32,
             in TRUE time order (the kernel itself walks the bwd dir reversed).
    Returns per-direction hidden sequences in TRUE time order, each (S, B, H).
    """
    H = hidden
    S, B, _ = gi_list[0].shape
    Tc = time_chunk
    nc = S // Tc
    unroll = max(1, min(max_unroll, Tc))

    fwd_gi_spec = pl.BlockSpec((Tc, B, 3 * H), lambda c: (c, 0, 0))
    bwd_gi_spec = pl.BlockSpec((Tc, B, 3 * H), lambda c: (nc - 1 - c, 0, 0))
    fwd_out_spec = pl.BlockSpec((Tc, B, H), lambda c: (c, 0, 0))
    bwd_out_spec = pl.BlockSpec((Tc, B, H), lambda c: (nc - 1 - c, 0, 0))
    whh_spec = pl.BlockSpec(whh.shape, lambda c: (0,) * whh.ndim)
    bhn_spec = pl.BlockSpec(bhn.shape, lambda c: (0, 0))
    out_shape = jax.ShapeDtypeStruct((S, B, H), jnp.float32)
    cparams = pltpu.CompilerParams(dimension_semantics=("arbitrary",))
    # NOTE: size `time_chunk` so ~2x (gi chunk + out chunk) fits the scoped
    # VMEM default (16 MiB v5e, 32 MiB v6e/v7x).
    # TODO(synk): on v7x, add a direction grid axis (or pl.core_map over the
    # 2-TC mesh) so the fwd/bwd recurrences run on separate TensorCores.

    if len(gi_list) == 2:
        res = pl.pallas_call(
            _make_bigru_kernel(H, Tc, split_dirs, unroll),
            grid=(nc,),
            in_specs=[fwd_gi_spec, bwd_gi_spec, whh_spec, bhn_spec],
            out_specs=[fwd_out_spec, bwd_out_spec],
            out_shape=[out_shape, out_shape],
            scratch_shapes=[pltpu.VMEM((B, 2 * H), jnp.float32)],
            compiler_params=cparams,
        )(gi_list[0], gi_list[1], whh, bhn)
        return list(res)

    res = pl.pallas_call(
        _make_gru_kernel(Tc, unroll),
        grid=(nc,),
        in_specs=[fwd_gi_spec, whh_spec, bhn_spec],
        out_specs=fwd_out_spec,
        out_shape=out_shape,
        scratch_shapes=[pltpu.VMEM((B, H), jnp.float32)],
        compiler_params=cparams,
    )(gi_list[0], whh, bhn)
    return [res]


# ---------------------------------------------------------------------------
# One-time weight packing (outside jit): bf16 MXU operands, gate-major r|z|n
# columns per direction, b_ih + b_hh folded for r/z, pre-transposed recurrent
# weights; recurrent layout depends on fused vs split mode.
# ---------------------------------------------------------------------------
def recurrent_split_heuristic(hidden_dim):
    """Split the per-direction recurrent matmuls once H is MXU-tile sized."""
    return hidden_dim >= 128


def pack_params(params, *, hidden_dim, n_layers, bidirectional, split_dirs):
    H = hidden_dim
    dirs = ("fwd", "bwd") if bidirectional else ("fwd",)
    nd = len(dirs)

    packed = {"bert_emb": params["bert_emb"], "gru": []}
    for l in range(n_layers):
        layer = params["gru"][l]
        in_proj, whh_t, bhn_parts = [], [], []
        for d in dirs:
            w_ih, w_hh, b_ih, b_hh = layer[d]
            w_in = w_ih.T.astype(jnp.bfloat16)            # (D_in, 3H), r|z|n cols
            b_in = (b_ih.at[:2 * H].add(b_hh[:2 * H])     # fold r/z recurrent bias
                    ).reshape(1, 3 * H).astype(jnp.float32)
            if l > 0 and nd == 2:
                # Previous layer feeds [fwd_out | bwd_out]: split the rows so
                # the GEMM kernel consumes the two halves without a concat.
                w_parts = [w_in[:H], w_in[H:]]
            else:
                w_parts = [w_in]
            in_proj.append((w_parts, b_in))
            whh_t.append(w_hh.T.astype(jnp.bfloat16))     # (H, 3H)
            bhn_parts.append(b_hh[2 * H:])
        if nd == 2:
            if split_dirs:
                whh = jnp.stack(whh_t)                                # (2, H, 3H)
            else:
                whh = jnp.zeros((2 * H, 6 * H), jnp.bfloat16)         # block-diag
                whh = whh.at[:H, :3 * H].set(whh_t[0])
                whh = whh.at[H:, 3 * H:].set(whh_t[1])
            bhn = jnp.concatenate(bhn_parts).reshape(1, 2 * H).astype(jnp.float32)
        else:
            whh = whh_t[0]
            bhn = bhn_parts[0].reshape(1, H).astype(jnp.float32)
        packed["gru"].append({"in_proj": in_proj, "whh": whh, "bhn": bhn})

    out_w_t = params["out_w"].T.astype(jnp.bfloat16)                  # (G, O)
    out_b = params["out_b"].reshape(1, -1).astype(jnp.float32)
    out_parts = [out_w_t[:H], out_w_t[H:]] if nd == 2 else [out_w_t]
    packed["out_proj"] = (out_parts, out_b)
    return packed


# ---------------------------------------------------------------------------
# SentimentModel forward (Pallas-backed)
# ---------------------------------------------------------------------------
def sentiment_forward(text, packed, *, hidden_dim, bidirectional, split_dirs,
                      time_chunk=64, gemm_block_m=256):
    """text: (B, S) int32 token ids.  Returns (B, output_dim) logits."""
    H = hidden_dim

    # Frozen "BERT" feature extraction stand-in, gathered time-major: (S, B, D).
    embedded = packed["bert_emb"][text.T]
    S, B, _ = embedded.shape
    # Pad batch to a sublane multiple (8) -> dense stores in the recurrence.
    Bp = -(-B // 8) * 8
    if Bp != B:
        embedded = jnp.pad(embedded, ((0, 0), (0, Bp - B), (0, 0)))
    # TODO(synk): for H not a multiple of 128 also lane-pad H (gate slices land
    # at non-128 offsets otherwise); real BERT/GRU sizes are already 128-dense.

    Tc = _pick_time_chunk(S, time_chunk)
    x_parts = [embedded.reshape(S * Bp, -1)]
    outs = None
    for lp in packed["gru"]:
        # (1) Lane-dense tiled GEMM over M = S*Bp: all gates, all x parts and
        #     both directions in one pallas_call (no inter-layer concat).
        gi_list = matmul_pallas(x_parts, lp["in_proj"], block_m=gemm_block_m)
        gi_list = [g.reshape(S, Bp, 3 * H) for g in gi_list]
        # (2) Time-chunked sequential recurrence (bwd reversal done in-kernel).
        outs = gru_layer_pallas(gi_list, lp["whh"], lp["bhn"], hidden=H,
                                split_dirs=split_dirs, time_chunk=Tc)
        x_parts = [o.reshape(S * Bp, H) for o in outs]
        # TODO(synk): inter-layer GRU dropout treated as eval-mode identity.

    # Final hidden per direction: fwd at true time S-1, bwd at true time 0
    # (== torch.cat((hidden[-2], hidden[-1]), dim=1) of the last layer).
    h_parts = [outs[0][-1], outs[1][0]] if bidirectional else [outs[0][-1]]
    # nn.Dropout in eval mode == identity.
    logits = matmul_pallas(h_parts, [packed["out_proj"]],
                           block_m=gemm_block_m)[0]
    return logits[:B]


# ---------------------------------------------------------------------------
# Pure-JAX reference (for correctness check)
# ---------------------------------------------------------------------------
def _gru_dir_ref(x_sbd, w_ih, w_hh, b_ih, b_hh, reverse):
    H = w_hh.shape[1]
    xs = x_sbd[::-1] if reverse else x_sbd

    def step(h, x):
        gi = x @ w_ih.T + b_ih
        gh = h @ w_hh.T + b_hh
        r = jax.nn.sigmoid(gi[:, :H] + gh[:, :H])
        z = jax.nn.sigmoid(gi[:, H:2 * H] + gh[:, H:2 * H])
        n = jnp.tanh(gi[:, 2 * H:] + r * gh[:, 2 * H:])
        h = (1 - z) * n + z * h
        return h, h

    h0 = jnp.zeros((x_sbd.shape[1], H), jnp.float32)
    h_fin, outs = lax.scan(step, h0, xs)
    if reverse:
        outs = outs[::-1]
    return outs, h_fin


def sentiment_forward_ref(text, params, *, n_layers, bidirectional):
    embedded = params["bert_emb"][text]
    inp = jnp.transpose(embedded, (1, 0, 2))
    h_f = h_b = None
    for l in range(n_layers):
        lp = params["gru"][l]
        outs_f, h_f = _gru_dir_ref(inp, *lp["fwd"], reverse=False)
        if bidirectional:
            outs_b, h_b = _gru_dir_ref(inp, *lp["bwd"], reverse=True)
            inp = jnp.concatenate([outs_f, outs_b], axis=-1)
        else:
            inp = outs_f
    hidden = jnp.concatenate([h_f, h_b], axis=1) if bidirectional else h_f
    return hidden @ params["out_w"].T + params["out_b"]


# ---------------------------------------------------------------------------
# Deterministic parameter construction (PyTorch-like layout)
# ---------------------------------------------------------------------------
def make_params(key, *, vocab, emb_dim, hidden_dim, output_dim, n_layers,
                bidirectional):
    ks = iter(jax.random.split(key, 64))
    nxt = lambda: next(ks)
    scale = 0.1

    params = {"bert_emb": jax.random.normal(nxt(), (vocab, emb_dim),
                                            jnp.float32) * scale}
    gru = []
    num_dir = 2 if bidirectional else 1
    for l in range(n_layers):
        d_in = emb_dim if l == 0 else hidden_dim * num_dir
        layer = {}
        for tag in (("fwd", "bwd") if bidirectional else ("fwd",)):
            w_ih = jax.random.normal(nxt(), (3 * hidden_dim, d_in),
                                     jnp.float32) * scale
            w_hh = jax.random.normal(nxt(), (3 * hidden_dim, hidden_dim),
                                     jnp.float32) * scale
            b_ih = jax.random.normal(nxt(), (3 * hidden_dim,),
                                     jnp.float32) * scale
            b_hh = jax.random.normal(nxt(), (3 * hidden_dim,),
                                     jnp.float32) * scale
            layer[tag] = (w_ih, w_hh, b_ih, b_hh)
        gru.append(layer)
    params["gru"] = gru
    params["out_w"] = jax.random.normal(
        nxt(), (output_dim, hidden_dim * num_dir), jnp.float32) * scale
    params["out_b"] = jax.random.normal(nxt(), (output_dim,),
                                        jnp.float32) * scale
    return params


# ---------------------------------------------------------------------------
if __name__ == "__main__":
    # Small shapes consistent with the module: batch=2, seq=8, bert hidden=32,
    # GRU hidden=16, 2 layers, bidirectional, output_dim=2.
    B, S = 2, 8
    VOCAB, EMB_DIM = 50, 32
    HIDDEN_DIM, OUTPUT_DIM = 16, 2
    N_LAYERS = 2

    key = jax.random.PRNGKey(0)
    k_text, k_bi, k_uni = jax.random.split(key, 3)
    text = jax.random.randint(k_text, (B, S), 0, VOCAB, dtype=jnp.int32)

    def run_and_check(raw_params, *, bidirectional, split_dirs, tag):
        packed = pack_params(raw_params, hidden_dim=HIDDEN_DIM,
                             n_layers=N_LAYERS, bidirectional=bidirectional,
                             split_dirs=split_dirs)
        fwd = jax.jit(functools.partial(
            sentiment_forward, hidden_dim=HIDDEN_DIM,
            bidirectional=bidirectional, split_dirs=split_dirs,
            time_chunk=4,          # S=8 -> 2 time chunks (exercises chunking)
            gemm_block_m=32))      # M=64 -> 2 GEMM tiles (exercises M tiling)
        out = jax.block_until_ready(fwd(text, packed))
        ref = jax.block_until_ready(
            sentiment_forward_ref(text, raw_params, n_layers=N_LAYERS,
                                  bidirectional=bidirectional))
        assert out.shape == (B, OUTPUT_DIM), (tag, out.shape)
        err = float(jnp.max(jnp.abs(out - ref)))
        assert err < 1e-2, f"{tag}: mismatch vs reference: {err}"

    params_bi = make_params(k_bi, vocab=VOCAB, emb_dim=EMB_DIM,
                            hidden_dim=HIDDEN_DIM, output_dim=OUTPUT_DIM,
                            n_layers=N_LAYERS, bidirectional=True)
    # Fused block-diagonal recurrent matmul: what recurrent_split_heuristic
    # selects for small H (< 128), as here.
    run_and_check(params_bi, bidirectional=True, split_dirs=False,
                  tag="bi/fused")
    # Per-direction split recurrent matmuls: what large H would select —
    # exercised here as well for coverage.
    run_and_check(params_bi, bidirectional=True, split_dirs=True,
                  tag="bi/split")

    params_uni = make_params(k_uni, vocab=VOCAB, emb_dim=EMB_DIM,
                             hidden_dim=HIDDEN_DIM, output_dim=OUTPUT_DIM,
                             n_layers=N_LAYERS, bidirectional=False)
    run_and_check(params_uni, bidirectional=False, split_dirs=False, tag="uni")

    print("KERNEL_OK")
</pallas_src>

<mosaic_0001>
module attributes {stable_mosaic.version = 11 : i64} {
  func.func @kernel(%arg0: i32, %arg1: memref<32x32xf32, #tpu.memory_space<vmem>>, %arg2: memref<32x48xbf16, #tpu.memory_space<vmem>>, %arg3: memref<1x48xf32, #tpu.memory_space<vmem>>, %arg4: memref<32x48xbf16, #tpu.memory_space<vmem>>, %arg5: memref<1x48xf32, #tpu.memory_space<vmem>>, %arg6: memref<32x48xf32, #tpu.memory_space<vmem>>, %arg7: memref<32x48xf32, #tpu.memory_space<vmem>>) attributes {dimension_semantics = [#tpu.dimension_semantics<parallel>], iteration_bounds = array<i64: 2>, scalar_prefetch = 0 : i64, scratch_operands = 0 : i64, tpu.core_type = #tpu.core_type<tc>, window_params = [{transform_indices = @transform_0, window_bounds = array<i64: 32, 32>}, {pipeline_mode = #tpu.pipeline_mode<synchronous>, transform_indices = @transform_1, window_bounds = array<i64: 32, 48>}, {pipeline_mode = #tpu.pipeline_mode<synchronous>, transform_indices = @transform_2, window_bounds = array<i64: 1, 48>}, {pipeline_mode = #tpu.pipeline_mode<synchronous>, transform_indices = @transform_3, window_bounds = array<i64: 32, 48>}, {pipeline_mode = #tpu.pipeline_mode<synchronous>, transform_indices = @transform_4, window_bounds = array<i64: 1, 48>}, {transform_indices = @transform_5, window_bounds = array<i64: 32, 48>}, {transform_indices = @transform_6, window_bounds = array<i64: 32, 48>}]} {
    %c0 = arith.constant 0 : index
    %c0_0 = arith.constant 0 : index
    %0 = vector.load %arg1[%c0, %c0_0] : memref<32x32xf32, #tpu.memory_space<vmem>>, vector<32x32xf32>
    %1 = arith.truncf %0 : vector<32x32xf32> to vector<32x32xbf16>
    %c0_1 = arith.constant 0 : index
    %c0_2 = arith.constant 0 : index
    %2 = vector.load %arg3[%c0_1, %c0_2] : memref<1x48xf32, #tpu.memory_space<vmem>>, vector<1x48xf32>
    %c0_3 = arith.constant 0 : index
    %c0_4 = arith.constant 0 : index
    %3 = vector.load %arg2[%c0_3, %c0_4] : memref<32x48xbf16, #tpu.memory_space<vmem>>, vector<32x48xbf16>
    %cst = arith.constant dense<0.000000e+00> : vector<32x48xf32>
    %4 = tpu.matmul %1, %3, %cst {dimension_numbers = #tpu.dot_dimension_numbers<[1], [0], [0], [1], [0, 0, 1, 1], [], []>} : vector<32x32xbf16>, vector<32x48xbf16>, vector<32x48xf32> -> vector<32x48xf32>
    %5 = vector.broadcast %2 : vector<1x48xf32> to vector<32x48xf32>
    %6 = arith.addf %5, %4 : vector<32x48xf32>
    %c0_5 = arith.constant 0 : index
    %c0_6 = arith.constant 0 : index
    %7 = vector.load %arg6[%c0_5, %c0_6] : memref<32x48xf32, #tpu.memory_space<vmem>>, vector<32x48xf32>
    tpu.vector_store %arg6[%c0_5, %c0_6], %6 {strides = array<i32>} : memref<32x48xf32, #tpu.memory_space<vmem>>, vector<32x48xf32>,
    %c0_7 = arith.constant 0 : index
    %c0_8 = arith.constant 0 : index
    %8 = vector.load %arg5[%c0_7, %c0_8] : memref<1x48xf32, #tpu.memory_space<vmem>>, vector<1x48xf32>
    %c0_9 = arith.constant 0 : index
    %c0_10 = arith.constant 0 : index
    %9 = vector.load %arg4[%c0_9, %c0_10] : memref<32x48xbf16, #tpu.memory_space<vmem>>, vector<32x48xbf16>
    %cst_11 = arith.constant dense<0.000000e+00> : vector<32x48xf32>
    %10 = tpu.matmul %1, %9, %cst_11 {dimension_numbers = #tpu.dot_dimension_numbers<[1], [0], [0], [1], [0, 0, 1, 1], [], []>} : vector<32x32xbf16>, vector<32x48xbf16>, vector<32x48xf32> -> vector<32x48xf32>
    %11 = vector.broadcast %8 : vector<1x48xf32> to vector<32x48xf32>
    %12 = arith.addf %11, %10 : vector<32x48xf32>
    %c0_12 = arith.constant 0 : index
    %c0_13 = arith.constant 0 : index
    %13 = vector.load %arg7[%c0_12, %c0_13] : memref<32x48xf32, #tpu.memory_space<vmem>>, vector<32x48xf32>
    tpu.vector_store %arg7[%c0_12, %c0_13], %12 {strides = array<i32>} : memref<32x48xf32, #tpu.memory_space<vmem>>, vector<32x48xf32>,
    return
  }
  func.func @transform_0(%arg0: i32) -> (i32, i32) {
    %c0_i32 = arith.constant 0 : i32
    %c0_i32_0 = arith.constant 0 : i32
    return %arg0, %c0_i32 : i32, i32
  }
  func.func @transform_1(%arg0: i32) -> (i32, i32) {
    %c0_i32 = arith.constant 0 : i32
    %c0_i32_0 = arith.constant 0 : i32
    %c0_i32_1 = arith.constant 0 : i32
    return %c0_i32, %c0_i32_0 : i32, i32
  }
  func.func @transform_2(%arg0: i32) -> (i32, i32) {
    %c0_i32 = arith.constant 0 : i32
    %c0_i32_0 = arith.constant 0 : i32
    %c0_i32_1 = arith.constant 0 : i32
    return %c0_i32, %c0_i32_0 : i32, i32
  }
  func.func @transform_3(%arg0: i32) -> (i32, i32) {
    %c0_i32 = arith.constant 0 : i32
    %c0_i32_0 = arith.constant 0 : i32
    %c0_i32_1 = arith.constant 0 : i32
    return %c0_i32, %c0_i32_0 : i32, i32
  }
  func.func @transform_4(%arg0: i32) -> (i32, i32) {
    %c0_i32 = arith.constant 0 : i32
    %c0_i32_0 = arith.constant 0 : i32
    %c0_i32_1 = arith.constant 0 : i32
    return %c0_i32, %c0_i32_0 : i32, i32
  }
  func.func @transform_5(%arg0: i32) -> (i32, i32) {
    %c0_i32 = arith.constant 0 : i32
    %c0_i32_0 = arith.constant 0 : i32
    return %arg0, %c0_i32 : i32, i32
  }
  func.func @transform_6(%arg0: i32) -> (i32, i32) {
    %c0_i32 = arith.constant 0 : i32
    %c0_i32_0 = arith.constant 0 : i32
    return %arg0, %c0_i32 : i32, i32
  }
}

module attributes {stable_mosaic.version = 11 : i64} {
  func.func @kernel(%arg0: i32, %arg1: memref<32x16xf32, #tpu.memory_space<vmem>>, %arg2: memref<32x16xf32, #tpu.memory_space<vmem>>, %arg3: memref<16x48xbf16, #tpu.memory_space<vmem>>, %arg4: memref<16x48xbf16, #tpu.memory_space<vmem>>, %arg5: memref<1x48xf32, #tpu.memory_space<vmem>>, %arg6: memref<16x48xbf16, #tpu.memory_space<vmem>>, %arg7: memref<16x48xbf16, #tpu.memory_space<vmem>>, %arg8: memref<1x48xf32, #tpu.memory_space<vmem>>, %arg9: memref<32x48xf32, #tpu.memory_space<vmem>>, %arg10: memref<32x48xf32, #tpu.memory_space<vmem>>) attributes {dimension_semantics = [#tpu.dimension_semantics<parallel>], iteration_bounds = array<i64: 2>, scalar_prefetch = 0 : i64, scratch_operands = 0 : i64, tpu.core_type = #tpu.core_type<tc>, window_params = [{transform_indices = @transform_0, window_bounds = array<i64: 32, 16>}, {transform_indices = @transform_1, window_bounds = array<i64: 32, 16>}, {pipeline_mode = #tpu.pipeline_mode<synchronous>, transform_indices = @transform_2, window_bounds = array<i64: 16, 48>}, {pipeline_mode = #tpu.pipeline_mode<synchronous>, transform_indices = @transform_3, window_bounds = array<i64: 16, 48>}, {pipeline_mode = #tpu.pipeline_mode<synchronous>, transform_indices = @transform_4, window_bounds = array<i64: 1, 48>}, {pipeline_mode = #tpu.pipeline_mode<synchronous>, transform_indices = @transform_5, window_bounds = array<i64: 16, 48>}, {pipeline_mode = #tpu.pipeline_mode<synchronous>, transform_indices = @transform_6, window_bounds = array<i64: 16, 48>}, {pipeline_mode = #tpu.pipeline_mode<synchronous>, transform_indices = @transform_7, window_bounds = array<i64: 1, 48>}, {transform_indices = @transform_8, window_bounds = array<i64: 32, 48>}, {transform_indices = @transform_9, window_bounds = array<i64: 32, 48>}]} {
    %c0 = arith.constant 0 : index
    %c0_0 = arith.constant 0 : index
    %0 = vector.load %arg1[%c0, %c0_0] : memref<32x16xf32, #tpu.memory_space<vmem>>, vector<32x16xf32>
    %1 = arith.truncf %0 : vector<32x16xf32> to vector<32x16xbf16>
    %c0_1 = arith.constant 0 : index
    %c0_2 = arith.constant 0 : index
    %2 = vector.load %arg2[%c0_1, %c0_2] : memref<32x16xf32, #tpu.memory_space<vmem>>, vector<32x16xf32>
    %3 = arith.truncf %2 : vector<32x16xf32> to vector<32x16xbf16>
    %c0_3 = arith.constant 0 : index
    %c0_4 = arith.constant 0 : index
    %4 = vector.load %arg5[%c0_3, %c0_4] : memref<1x48xf32, #tpu.memory_space<vmem>>, vector<1x48xf32>
    %c0_5 = arith.constant 0 : index
    %c0_6 = arith.constant 0 : index
    %5 = vector.load %arg3[%c0_5, %c0_6] : memref<16x48xbf16, #tpu.memory_space<vmem>>, vector<16x48xbf16>
    %cst = arith.constant dense<0.000000e+00> : vector<32x48xf32>
    %6 = tpu.matmul %1, %5, %cst {dimension_numbers = #tpu.dot_dimension_numbers<[1], [0], [0], [1], [0, 0, 1, 1], [], []>} : vector<32x16xbf16>, vector<16x48xbf16>, vector<32x48xf32> -> vector<32x48xf32>
    %7 = vector.broadcast %4 : vector<1x48xf32> to vector<32x48xf32>
    %8 = arith.addf %7, %6 : vector<32x48xf32>
    %c0_7 = arith.constant 0 : index
    %c0_8 = arith.constant 0 : index
    %9 = vector.load %arg4[%c0_7, %c0_8] : memref<16x48xbf16, #tpu.memory_space<vmem>>, vector<16x48xbf16>
    %cst_9 = arith.constant dense<0.000000e+00> : vector<32x48xf32>
    %10 = tpu.matmul %3, %9, %cst_9 {dimension_numbers = #tpu.dot_dimension_numbers<[1], [0], [0], [1], [0, 0, 1, 1], [], []>} : vector<32x16xbf16>, vector<16x48xbf16>, vector<32x48xf32> -> vector<32x48xf32>
    %11 = arith.addf %8, %10 : vector<32x48xf32>
    %c0_10 = arith.constant 0 : index
    %c0_11 = arith.constant 0 : index
    %12 = vector.load %arg9[%c0_10, %c0_11] : memref<32x48xf32, #tpu.memory_space<vmem>>, vector<32x48xf32>
    tpu.vector_store %arg9[%c0_10, %c0_11], %11 {strides = array<i32>} : memref<32x48xf32, #tpu.memory_space<vmem>>, vector<32x48xf32>,
    %c0_12 = arith.constant 0 : index
    %c0_13 = arith.constant 0 : index
    %13 = vector.load %arg8[%c0_12, %c0_13] : memref<1x48xf32, #tpu.memory_space<vmem>>, vector<1x48xf32>
    %c0_14 = arith.constant 0 : index
    %c0_15 = arith.constant 0 : index
    %14 = vector.load %arg6[%c0_14, %c0_15] : memref<16x48xbf16, #tpu.memory_space<vmem>>, vector<16x48xbf16>
    %cst_16 = arith.constant dense<0.000000e+00> : vector<32x48xf32>
    %15 = tpu.matmul %1, %14, %cst_16 {dimension_numbers = #tpu.dot_dimension_numbers<[1], [0], [0], [1], [0, 0, 1, 1], [], []>} : vector<32x16xbf16>, vector<16x48xbf16>, vector<32x48xf32> -> vector<32x48xf32>
    %16 = vector.broadcast %13 : vector<1x48xf32> to vector<32x48xf32>
    %17 = arith.addf %16, %15 : vector<32x48xf32>
    %c0_17 = arith.constant 0 : index
    %c0_18 = arith.constant 0 : index
    %18 = vector.load %arg7[%c0_17, %c0_18] : memref<16x48xbf16, #tpu.memory_space<vmem>>, vector<16x48xbf16>
    %cst_19 = arith.constant dense<0.000000e+00> : vector<32x48xf32>
    %19 = tpu.matmul %3, %18, %cst_19 {dimension_numbers = #tpu.dot_dimension_numbers<[1], [0], [0], [1], [0, 0, 1, 1], [], []>} : vector<32x16xbf16>, vector<16x48xbf16>, vector<32x48xf32> -> vector<32x48xf32>
    %20 = arith.addf %17, %19 : vector<32x48xf32>
    %c0_20 = arith.constant 0 : index
    %c0_21 = arith.constant 0 : index
    %21 = vector.load %arg10[%c0_20, %c0_21] : memref<32x48xf32, #tpu.memory_space<vmem>>, vector<32x48xf32>
    tpu.vector_store %arg10[%c0_20, %c0_21], %20 {strides = array<i32>} : memref<32x48xf32, #tpu.memory_space<vmem>>, vector<32x48xf32>,
    return
  }
  func.func @transform_0(%arg0: i32) -> (i32, i32) {
    %c0_i32 = arith.constant 0 : i32
    %c0_i32_0 = arith.constant 0 : i32
    return %arg0, %c0_i32 : i32, i32
  }
  func.func @transform_1(%arg0: i32) -> (i32, i32) {
    %c0_i32 = arith.constant 0 : i32
    %c0_i32_0 = arith.constant 0 : i32
    return %arg0, %c0_i32 : i32, i32
  }
  func.func @transform_2(%arg0: i32) -> (i32, i32) {
    %c0_i32 = arith.constant 0 : i32
    %c0_i32_0 = arith.constant 0 : i32
    %c0_i32_1 = arith.constant 0 : i32
    return %c0_i32, %c0_i32_0 : i32, i32
  }
  func.func @transform_3(%arg0: i32) -> (i32, i32) {
    %c0_i32 = arith.constant 0 : i32
    %c0_i32_0 = arith.constant 0 : i32
    %c0_i32_1 = arith.constant 0 : i32
    return %c0_i32, %c0_i32_0 : i32, i32
  }
  func.func @transform_4(%arg0: i32) -> (i32, i32) {
    %c0_i32 = arith.constant 0 : i32
    %c0_i32_0 = arith.constant 0 : i32
    %c0_i32_1 = arith.constant 0 : i32
    return %c0_i32, %c0_i32_0 : i32, i32
  }
  func.func @transform_5(%arg0: i32) -> (i32, i32) {
    %c0_i32 = arith.constant 0 : i32
    %c0_i32_0 = arith.constant 0 : i32
    %c0_i32_1 = arith.constant 0 : i32
    return %c0_i32, %c0_i32_0 : i32, i32
  }
  func.func @transform_6(%arg0: i32) -> (i32, i32) {
    %c0_i32 = arith.constant 0 : i32
    %c0_i32_0 = arith.constant 0 : i32
    %c0_i32_1 = arith.constant 0 : i32
    return %c0_i32, %c0_i32_0 : i32, i32
  }
  func.func @transform_7(%arg0: i32) -> (i32, i32) {
    %c0_i32 = arith.constant 0 : i32
    %c0_i32_0 = arith.constant 0 : i32
    %c0_i32_1 = arith.constant 0 : i32
    return %c0_i32, %c0_i32_0 : i32, i32
  }
  func.func @transform_8(%arg0: i32) -> (i32, i32) {
    %c0_i32 = arith.constant 0 : i32
    %c0_i32_0 = arith.constant 0 : i32
    return %arg0, %c0_i32 : i32, i32
  }
  func.func @transform_9(%arg0: i32) -> (i32, i32) {
    %c0_i32 = arith.constant 0 : i32
    %c0_i32_0 = arith.constant 0 : i32
    return %arg0, %c0_i32 : i32, i32
  }
}

module attributes {stable_mosaic.version = 11 : i64} {
  func.func @kernel(%arg0: i32, %arg1: memref<8x16xf32, #tpu.memory_space<vmem>>, %arg2: memref<8x16xf32, #tpu.memory_space<vmem>>, %arg3: memref<16x2xbf16, #tpu.memory_space<vmem>>, %arg4: memref<16x2xbf16, #tpu.memory_space<vmem>>, %arg5: memref<1x2xf32, #tpu.memory_space<vmem>>, %arg6: memref<8x2xf32, #tpu.memory_space<vmem>>) attributes {dimension_semantics = [#tpu.dimension_semantics<parallel>], iteration_bounds = array<i64: 1>, scalar_prefetch = 0 : i64, scratch_operands = 0 : i64, tpu.core_type = #tpu.core_type<tc>, window_params = [{transform_indices = @transform_0, window_bounds = array<i64: 8, 16>}, {transform_indices = @transform_1, window_bounds = array<i64: 8, 16>}, {pipeline_mode = #tpu.pipeline_mode<synchronous>, transform_indices = @transform_2, window_bounds = array<i64: 16, 2>}, {pipeline_mode = #tpu.pipeline_mode<synchronous>, transform_indices = @transform_3, window_bounds = array<i64: 16, 2>}, {pipeline_mode = #tpu.pipeline_mode<synchronous>, transform_indices = @transform_4, window_bounds = array<i64: 1, 2>}, {transform_indices = @transform_5, window_bounds = array<i64: 8, 2>}]} {
    %c0 = arith.constant 0 : index
    %c0_0 = arith.constant 0 : index
    %0 = vector.load %arg1[%c0, %c0_0] : memref<8x16xf32, #tpu.memory_space<vmem>>, vector<8x16xf32>
    %1 = arith.truncf %0 : vector<8x16xf32> to vector<8x16xbf16>
    %c0_1 = arith.constant 0 : index
    %c0_2 = arith.constant 0 : index
    %2 = vector.load %arg2[%c0_1, %c0_2] : memref<8x16xf32, #tpu.memory_space<vmem>>, vector<8x16xf32>
    %3 = arith.truncf %2 : vector<8x16xf32> to vector<8x16xbf16>
    %c0_3 = arith.constant 0 : index
    %c0_4 = arith.constant 0 : index
    %4 = vector.load %arg5[%c0_3, %c0_4] : memref<1x2xf32, #tpu.memory_space<vmem>>, vector<1x2xf32>
    %c0_5 = arith.constant 0 : index
    %c0_6 = arith.constant 0 : index
    %5 = vector.load %arg3[%c0_5, %c0_6] : memref<16x2xbf16, #tpu.memory_space<vmem>>, vector<16x2xbf16>
    %cst = arith.constant dense<0.000000e+00> : vector<8x2xf32>
    %6 = tpu.matmul %1, %5, %cst {dimension_numbers = #tpu.dot_dimension_numbers<[1], [0], [0], [1], [0, 0, 1, 1], [], []>} : vector<8x16xbf16>, vector<16x2xbf16>, vector<8x2xf32> -> vector<8x2xf32>
    %7 = vector.broadcast %4 : vector<1x2xf32> to vector<8x2xf32>
    %8 = arith.addf %7, %6 : vector<8x2xf32>
    %c0_7 = arith.constant 0 : index
    %c0_8 = arith.constant 0 : index
    %9 = vector.load %arg4[%c0_7, %c0_8] : memref<16x2xbf16, #tpu.memory_space<vmem>>, vector<16x2xbf16>
    %cst_9 = arith.constant dense<0.000000e+00> : vector<8x2xf32>
    %10 = tpu.matmul %3, %9, %cst_9 {dimension_numbers = #tpu.dot_dimension_numbers<[1], [0], [0], [1], [0, 0, 1, 1], [], []>} : vector<8x16xbf16>, vector<16x2xbf16>, vector<8x2xf32> -> vector<8x2xf32>
    %11 = arith.addf %8, %10 : vector<8x2xf32>
    %c0_10 = arith.constant 0 : index
    %c0_11 = arith.constant 0 : index
    %12 = vector.load %arg6[%c0_10, %c0_11] : memref<8x2xf32, #tpu.memory_space<vmem>>, vector<8x2xf32>
    tpu.vector_store %arg6[%c0_10, %c0_11], %11 {strides = array<i32>} : memref<8x2xf32, #tpu.memory_space<vmem>>, vector<8x2xf32>,
    return
  }
  func.func @transform_0(%arg0: i32) -> (i32, i32) {
    %c0_i32 = arith.constant 0 : i32
    %c0_i32_0 = arith.constant 0 : i32
    return %arg0, %c0_i32 : i32, i32
  }
  func.func @transform_1(%arg0: i32) -> (i32, i32) {
    %c0_i32 = arith.constant 0 : i32
    %c0_i32_0 = arith.constant 0 : i32
    return %arg0, %c0_i32 : i32, i32
  }
  func.func @transform_2(%arg0: i32) -> (i32, i32) {
    %c0_i32 = arith.constant 0 : i32
    %c0_i32_0 = arith.constant 0 : i32
    %c0_i32_1 = arith.constant 0 : i32
    return %c0_i32, %c0_i32_0 : i32, i32
  }
  func.func @transform_3(%arg0: i32) -> (i32, i32) {
    %c0_i32 = arith.constant 0 : i32
    %c0_i32_0 = arith.constant 0 : i32
    %c0_i32_1 = arith.constant 0 : i32
    return %c0_i32, %c0_i32_0 : i32, i32
  }
  func.func @transform_4(%arg0: i32) -> (i32, i32) {
    %c0_i32 = arith.constant 0 : i32
    %c0_i32_0 = arith.constant 0 : i32
    %c0_i32_1 = arith.constant 0 : i32
    return %c0_i32, %c0_i32_0 : i32, i32
  }
  func.func @transform_5(%arg0: i32) -> (i32, i32) {
    %c0_i32 = arith.constant 0 : i32
    %c0_i32_0 = arith.constant 0 : i32
    return %arg0, %c0_i32 : i32, i32
  }
}

module attributes {stable_mosaic.version = 11 : i64} {
  func.func @kernel(%arg0: i32, %arg1: memref<4x8x48xf32, #tpu.memory_space<vmem>>, %arg2: memref<4x8x48xf32, #tpu.memory_space<vmem>>, %arg3: memref<32x96xbf16, #tpu.memory_space<vmem>>, %arg4: memref<1x32xf32, #tpu.memory_space<vmem>>, %arg5: memref<4x8x16xf32, #tpu.memory_space<vmem>>, %arg6: memref<4x8x16xf32, #tpu.memory_space<vmem>>, %arg7: memref<8x32xf32, #tpu.memory_space<vmem>>) attributes {dimension_semantics = [#tpu.dimension_semantics<arbitrary>], iteration_bounds = array<i64: 2>, scalar_prefetch = 0 : i64, scratch_operands = 1 : i64, tpu.core_type = #tpu.core_type<tc>, window_params = [{transform_indices = @transform_0, window_bounds = array<i64: 4, 8, 48>}, {transform_indices = @transform_1, window_bounds = array<i64: 4, 8, 48>}, {pipeline_mode = #tpu.pipeline_mode<synchronous>, transform_indices = @transform_2, window_bounds = array<i64: 32, 96>}, {pipeline_mode = #tpu.pipeline_mode<synchronous>, transform_indices = @transform_3, window_bounds = array<i64: 1, 32>}, {transform_indices = @transform_4, window_bounds = array<i64: 4, 8, 16>}, {transform_indices = @transform_5, window_bounds = array<i64: 4, 8, 16>}]} {
    %c0_i32 = arith.constant 0 : i32
    %0 = arith.cmpi eq, %arg0, %c0_i32 : i32
    %1 = arith.extui %0 : i1 to i32
    %c0_i32_0 = arith.constant 0 : i32
    %2 = arith.cmpi ne, %1, %c0_i32_0 : i32
    scf.if %2 {
      %cst_91 = arith.constant 0.000000e+00 : f32
      %327 = vector.broadcast %cst_91 : f32 to vector<8x32xf32>
      %c0_92 = arith.constant 0 : index
      %c0_93 = arith.constant 0 : index
      %328 = vector.load %arg7[%c0_92, %c0_93] : memref<8x32xf32, #tpu.memory_space<vmem>>, vector<8x32xf32>
      tpu.vector_store %arg7[%c0_92, %c0_93], %327 {strides = array<i32>} : memref<8x32xf32, #tpu.memory_space<vmem>>, vector<8x32xf32>,
    } else {
    }
    %c0 = arith.constant 0 : index
    %c0_1 = arith.constant 0 : index
    %3 = vector.load %arg3[%c0, %c0_1] : memref<32x96xbf16, #tpu.memory_space<vmem>>, vector<32x96xbf16>
    %c0_2 = arith.constant 0 : index
    %c0_3 = arith.constant 0 : index
    %4 = vector.load %arg4[%c0_2, %c0_3] : memref<1x32xf32, #tpu.memory_space<vmem>>, vector<1x32xf32>
    %5 = vector.extract_strided_slice %4 {offsets = [0, 0], sizes = [1, 16], strides = [1, 1]} : vector<1x32xf32> to vector<1x16xf32>
    %6 = vector.extract_strided_slice %4 {offsets = [0, 16], sizes = [1, 16], strides = [1, 1]} : vector<1x32xf32> to vector<1x16xf32>
    %c0_i32_4 = arith.constant 0 : i32
    %c0_5 = arith.constant 0 : index
    %c0_6 = arith.constant 0 : index
    %7 = vector.load %arg7[%c0_5, %c0_6] : memref<8x32xf32, #tpu.memory_space<vmem>>, vector<8x32xf32>
    %8 = arith.truncf %7 : vector<8x32xf32> to vector<8x32xbf16>
    %cst = arith.constant dense<0.000000e+00> : vector<8x96xf32>
    %9 = tpu.matmul %8, %3, %cst {dimension_numbers = #tpu.dot_dimension_numbers<[1], [0], [0], [1], [0, 0, 1, 1], [], []>} : vector<8x32xbf16>, vector<32x96xbf16>, vector<8x96xf32> -> vector<8x96xf32>
    %10 = vector.extract_strided_slice %9 {offsets = [0, 0], sizes = [8, 48], strides = [1, 1]} : vector<8x96xf32> to vector<8x48xf32>
    %11 = vector.extract_strided_slice %9 {offsets = [0, 48], sizes = [8, 48], strides = [1, 1]} : vector<8x96xf32> to vector<8x48xf32>
    %c3_i32 = arith.constant 3 : i32
    %12 = arith.subi %c3_i32, %c0_i32_4 : i32
    %13 = arith.index_cast %c0_i32_4 : i32 to index
    %c0_7 = arith.constant 0 : index
    %c0_8 = arith.constant 0 : index
    %14 = vector.load %arg1[%13, %c0_7, %c0_8] : memref<4x8x48xf32, #tpu.memory_space<vmem>>, vector<1x8x48xf32>
    %15 = vector.shape_cast %14 : vector<1x8x48xf32> to vector<8x48xf32>
    %16 = vector.extract_strided_slice %7 {offsets = [0, 0], sizes = [8, 16], strides = [1, 1]} : vector<8x32xf32> to vector<8x16xf32>
    %17 = vector.extract_strided_slice %15 {offsets = [0, 0], sizes = [8, 16], strides = [1, 1]} : vector<8x48xf32> to vector<8x16xf32>
    %18 = vector.extract_strided_slice %10 {offsets = [0, 0], sizes = [8, 16], strides = [1, 1]} : vector<8x48xf32> to vector<8x16xf32>
    %19 = arith.addf %17, %18 : vector<8x16xf32>
    %20 = arith.negf %19 : vector<8x16xf32>
    %21 = math.exp %20 : vector<8x16xf32>
    %cst_9 = arith.constant 1.000000e+00 : f32
    %22 = vector.broadcast %cst_9 : f32 to vector<8x16xf32>
    %23 = arith.addf %22, %21 : vector<8x16xf32>
    %24 = arith.divf %22, %23 : vector<8x16xf32>
    %25 = vector.extract_strided_slice %15 {offsets = [0, 16], sizes = [8, 16], strides = [1, 1]} : vector<8x48xf32> to vector<8x16xf32>
    %26 = vector.extract_strided_slice %10 {offsets = [0, 16], sizes = [8, 16], strides = [1, 1]} : vector<8x48xf32> to vector<8x16xf32>
    %27 = arith.addf %25, %26 : vector<8x16xf32>
    %28 = arith.negf %27 : vector<8x16xf32>
    %29 = math.exp %28 : vector<8x16xf32>
    %cst_10 = arith.constant 1.000000e+00 : f32
    %30 = vector.broadcast %cst_10 : f32 to vector<8x16xf32>
    %31 = arith.addf %30, %29 : vector<8x16xf32>
    %32 = arith.divf %30, %31 : vector<8x16xf32>
    %33 = vector.extract_strided_slice %15 {offsets = [0, 32], sizes = [8, 16], strides = [1, 1]} : vector<8x48xf32> to vector<8x16xf32>
    %34 = vector.extract_strided_slice %10 {offsets = [0, 32], sizes = [8, 16], strides = [1, 1]} : vector<8x48xf32> to vector<8x16xf32>
    %35 = vector.broadcast %5 : vector<1x16xf32> to vector<8x16xf32>
    %36 = arith.addf %34, %35 : vector<8x16xf32>
    %37 = arith.mulf %24, %36 : vector<8x16xf32>
    %38 = arith.addf %33, %37 : vector<8x16xf32>
    %39 = math.tanh %38 : vector<8x16xf32>
    %cst_11 = arith.constant 1.000000e+00 : f32
    %40 = vector.broadcast %cst_11 : f32 to vector<8x16xf32>
    %41 = arith.subf %40, %32 : vector<8x16xf32>
    %42 = arith.mulf %41, %39 : vector<8x16xf32>
    %43 = arith.mulf %32, %16 : vector<8x16xf32>
    %44 = arith.addf %42, %43 : vector<8x16xf32>
    %45 = arith.index_cast %12 : i32 to index
    %c0_12 = arith.constant 0 : index
    %c0_13 = arith.constant 0 : index
    %46 = vector.load %arg2[%45, %c0_12, %c0_13] : memref<4x8x48xf32, #tpu.memory_space<vmem>>, vector<1x8x48xf32>
    %47 = vector.shape_cast %46 : vector<1x8x48xf32> to vector<8x48xf32>
    %48 = vector.extract_strided_slice %7 {offsets = [0, 16], sizes = [8, 16], strides = [1, 1]} : vector<8x32xf32> to vector<8x16xf32>
    %49 = vector.extract_strided_slice %47 {offsets = [0, 0], sizes = [8, 16], strides = [1, 1]} : vector<8x48xf32> to vector<8x16xf32>
    %50 = vector.extract_strided_slice %11 {offsets = [0, 0], sizes = [8, 16], strides = [1, 1]} : vector<8x48xf32> to vector<8x16xf32>
    %51 = arith.addf %49, %50 : vector<8x16xf32>
    %52 = arith.negf %51 : vector<8x16xf32>
    %53 = math.exp %52 : vector<8x16xf32>
    %cst_14 = arith.constant 1.000000e+00 : f32
    %54 = vector.broadcast %cst_14 : f32 to vector<8x16xf32>
    %55 = arith.addf %54, %53 : vector<8x16xf32>
    %56 = arith.divf %54, %55 : vector<8x16xf32>
    %57 = vector.extract_strided_slice %47 {offsets = [0, 16], sizes = [8, 16], strides = [1, 1]} : vector<8x48xf32> to vector<8x16xf32>
    %58 = vector.extract_strided_slice %11 {offsets = [0, 16], sizes = [8, 16], strides = [1, 1]} : vector<8x48xf32> to vector<8x16xf32>
    %59 = arith.addf %57, %58 : vector<8x16xf32>
    %60 = arith.negf %59 : vector<8x16xf32>
    %61 = math.exp %60 : vector<8x16xf32>
    %cst_15 = arith.constant 1.000000e+00 : f32
    %62 = vector.broadcast %cst_15 : f32 to vector<8x16xf32>
    %63 = arith.addf %62, %61 : vector<8x16xf32>
    %64 = arith.divf %62, %63 : vector<8x16xf32>
    %65 = vector.extract_strided_slice %47 {offsets = [0, 32], sizes = [8, 16], strides = [1, 1]} : vector<8x48xf32> to vector<8x16xf32>
    %66 = vector.extract_strided_slice %11 {offsets = [0, 32], sizes = [8, 16], strides = [1, 1]} : vector<8x48xf32> to vector<8x16xf32>
    %67 = vector.broadcast %6 : vector<1x16xf32> to vector<8x16xf32>
    %68 = arith.addf %66, %67 : vector<8x16xf32>
    %69 = arith.mulf %56, %68 : vector<8x16xf32>
    %70 = arith.addf %65, %69 : vector<8x16xf32>
    %71 = math.tanh %70 : vector<8x16xf32>
    %cst_16 = arith.constant 1.000000e+00 : f32
    %72 = vector.broadcast %cst_16 : f32 to vector<8x16xf32>
    %73 = arith.subf %72, %64 : vector<8x16xf32>
    %74 = arith.mulf %73, %71 : vector<8x16xf32>
    %75 = arith.mulf %64, %48 : vector<8x16xf32>
    %76 = arith.addf %74, %75 : vector<8x16xf32>
    %77 = arith.index_cast %c0_i32_4 : i32 to index
    %c0_17 = arith.constant 0 : index
    %c0_18 = arith.constant 0 : index
    %78 = vector.load %arg5[%77, %c0_17, %c0_18] : memref<4x8x16xf32, #tpu.memory_space<vmem>>, vector<1x8x16xf32>
    %79 = vector.shape_cast %78 : vector<1x8x16xf32> to vector<8x16xf32>
    %80 = vector.shape_cast %44 : vector<8x16xf32> to vector<1x8x16xf32>
    tpu.vector_store %arg5[%77, %c0_17, %c0_18], %80 {strides = array<i32>} : memref<4x8x16xf32, #tpu.memory_space<vmem>>, vector<1x8x16xf32>,
    %81 = arith.index_cast %12 : i32 to index
    %c0_19 = arith.constant 0 : index
    %c0_20 = arith.constant 0 : index
    %82 = vector.load %arg6[%81, %c0_19, %c0_20] : memref<4x8x16xf32, #tpu.memory_space<vmem>>, vector<1x8x16xf32>
    %83 = vector.shape_cast %82 : vector<1x8x16xf32> to vector<8x16xf32>
    %84 = vector.shape_cast %76 : vector<8x16xf32> to vector<1x8x16xf32>
    tpu.vector_store %arg6[%81, %c0_19, %c0_20], %84 {strides = array<i32>} : memref<4x8x16xf32, #tpu.memory_space<vmem>>, vector<1x8x16xf32>,
    %c0_21 = arith.constant 0 : index
    %c0_22 = arith.constant 0 : index
    %85 = vector.load %arg7[%c0_21, %c0_22] : memref<8x32xf32, #tpu.memory_space<vmem>>, vector<8x16xf32>
    tpu.vector_store %arg7[%c0_21, %c0_22], %44 {strides = array<i32>} : memref<8x32xf32, #tpu.memory_space<vmem>>, vector<8x16xf32>,
    %c0_23 = arith.constant 0 : index
    %c16 = arith.constant 16 : index
    %86 = vector.load %arg7[%c0_23, %c16] : memref<8x32xf32, #tpu.memory_space<vmem>>, vector<8x16xf32>
    tpu.vector_store %arg7[%c0_23, %c16], %76 {strides = array<i32>} : memref<8x32xf32, #tpu.memory_space<vmem>>, vector<8x16xf32>,
    %c1_i32 = arith.constant 1 : i32
    %c0_24 = arith.constant 0 : index
    %c0_25 = arith.constant 0 : index
    %87 = vector.load %arg7[%c0_24, %c0_25] : memref<8x32xf32, #tpu.memory_space<vmem>>, vector<8x32xf32>
    %88 = arith.truncf %87 : vector<8x32xf32> to vector<8x32xbf16>
    %cst_26 = arith.constant dense<0.000000e+00> : vector<8x96xf32>
    %89 = tpu.matmul %88, %3, %cst_26 {dimension_numbers = #tpu.dot_dimension_numbers<[1], [0], [0], [1], [0, 0, 1, 1], [], []>} : vector<8x32xbf16>, vector<32x96xbf16>, vector<8x96xf32> -> vector<8x96xf32>
    %90 = vector.extract_strided_slice %89 {offsets = [0, 0], sizes = [8, 48], strides = [1, 1]} : vector<8x96xf32> to vector<8x48xf32>
    %91 = vector.extract_strided_slice %89 {offsets = [0, 48], sizes = [8, 48], strides = [1, 1]} : vector<8x96xf32> to vector<8x48xf32>
    %c3_i32_27 = arith.constant 3 : i32
    %92 = arith.subi %c3_i32_27, %c1_i32 : i32
    %93 = arith.index_cast %c1_i32 : i32 to index
    %c0_28 = arith.constant 0 : index
    %c0_29 = arith.constant 0 : index
    %94 = vector.load %arg1[%93, %c0_28, %c0_29] : memref<4x8x48xf32, #tpu.memory_space<vmem>>, vector<1x8x48xf32>
    %95 = vector.shape_cast %94 : vector<1x8x48xf32> to vector<8x48xf32>
    %96 = vector.extract_strided_slice %87 {offsets = [0, 0], sizes = [8, 16], strides = [1, 1]} : vector<8x32xf32> to vector<8x16xf32>
    %97 = vector.extract_strided_slice %95 {offsets = [0, 0], sizes = [8, 16], strides = [1, 1]} : vector<8x48xf32> to vector<8x16xf32>
    %98 = vector.extract_strided_slice %90 {offsets = [0, 0], sizes = [8, 16], strides = [1, 1]} : vector<8x48xf32> to vector<8x16xf32>
    %99 = arith.addf %97, %98 : vector<8x16xf32>
    %100 = arith.negf %99 : vector<8x16xf32>
    %101 = math.exp %100 : vector<8x16xf32>
    %cst_30 = arith.constant 1.000000e+00 : f32
    %102 = vector.broadcast %cst_30 : f32 to vector<8x16xf32>
    %103 = arith.addf %102, %101 : vector<8x16xf32>
    %104 = arith.divf %102, %103 : vector<8x16xf32>
    %105 = vector.extract_strided_slice %95 {offsets = [0, 16], sizes = [8, 16], strides = [1, 1]} : vector<8x48xf32> to vector<8x16xf32>
    %106 = vector.extract_strided_slice %90 {offsets = [0, 16], sizes = [8, 16], strides = [1, 1]} : vector<8x48xf32> to vector<8x16xf32>
    %107 = arith.addf %105, %106 : vector<8x16xf32>
    %108 = arith.negf %107 : vector<8x16xf32>
    %109 = math.exp %108 : vector<8x16xf32>
    %cst_31 = arith.constant 1.000000e+00 : f32
    %110 = vector.broadcast %cst_31 : f32 to vector<8x16xf32>
    %111 = arith.addf %110, %109 : vector<8x16xf32>
    %112 = arith.divf %110, %111 : vector<8x16xf32>
    %113 = vector.extract_strided_slice %95 {offsets = [0, 32], sizes = [8, 16], strides = [1, 1]} : vector<8x48xf32> to vector<8x16xf32>
    %114 = vector.extract_strided_slice %90 {offsets = [0, 32], sizes = [8, 16], strides = [1, 1]} : vector<8x48xf32> to vector<8x16xf32>
    %115 = vector.broadcast %5 : vector<1x16xf32> to vector<8x16xf32>
    %116 = arith.addf %114, %115 : vector<8x16xf32>
    %117 = arith.mulf %104, %116 : vector<8x16xf32>
    %118 = arith.addf %113, %117 : vector<8x16xf32>
    %119 = math.tanh %118 : vector<8x16xf32>
    %cst_32 = arith.constant 1.000000e+00 : f32
    %120 = vector.broadcast %cst_32 : f32 to vector<8x16xf32>
    %121 = arith.subf %120, %112 : vector<8x16xf32>
    %122 = arith.mulf %121, %119 : vector<8x16xf32>
    %123 = arith.mulf %112, %96 : vector<8x16xf32>
    %124 = arith.addf %122, %123 : vector<8x16xf32>
    %125 = arith.index_cast %92 : i32 to index
    %c0_33 = arith.constant 0 : index
    %c0_34 = arith.constant 0 : index
    %126 = vector.load %arg2[%125, %c0_33, %c0_34] : memref<4x8x48xf32, #tpu.memory_space<vmem>>, vector<1x8x48xf32>
    %127 = vector.shape_cast %126 : vector<1x8x48xf32> to vector<8x48xf32>
    %128 = vector.extract_strided_slice %87 {offsets = [0, 16], sizes = [8, 16], strides = [1, 1]} : vector<8x32xf32> to vector<8x16xf32>
    %129 = vector.extract_strided_slice %127 {offsets = [0, 0], sizes = [8, 16], strides = [1, 1]} : vector<8x48xf32> to vector<8x16xf32>
    %130 = vector.extract_strided_slice %91 {offsets = [0, 0], sizes = [8, 16], strides = [1, 1]} : vector<8x48xf32> to vector<8x16xf32>
    %131 = arith.addf %129, %130 : vector<8x16xf32>
    %132 = arith.negf %131 : vector<8x16xf32>
    %133 = math.exp %132 : vector<8x16xf32>
    %cst_35 = arith.constant 1.000000e+00 : f32
    %134 = vector.broadcast %cst_35 : f32 to vector<8x16xf32>
    %135 = arith.addf %134, %133 : vector<8x16xf32>
    %136 = arith.divf %134, %135 : vector<8x16xf32>
    %137 = vector.extract_strided_slice %127 {offsets = [0, 16], sizes = [8, 16], strides = [1, 1]} : vector<8x48xf32> to vector<8x16xf32>
    %138 = vector.extract_strided_slice %91 {offsets = [0, 16], sizes = [8, 16], strides = [1, 1]} : vector<8x48xf32> to vector<8x16xf32>
    %139 = arith.addf %137, %138 : vector<8x16xf32>
    %140 = arith.negf %139 : vector<8x16xf32>
    %141 = math.exp %140 : vector<8x16xf32>
    %cst_36 = arith.constant 1.000000e+00 : f32
    %142 = vector.broadcast %cst_36 : f32 to vector<8x16xf32>
    %143 = arith.addf %142, %141 : vector<8x16xf32>
    %144 = arith.divf %142, %143 : vector<8x16xf32>
    %145 = vector.extract_strided_slice %127 {offsets = [0, 32], sizes = [8, 16], strides = [1, 1]} : vector<8x48xf32> to vector<8x16xf32>
    %146 = vector.extract_strided_slice %91 {offsets = [0, 32], sizes = [8, 16], strides = [1, 1]} : vector<8x48xf32> to vector<8x16xf32>
    %147 = vector.broadcast %6 : vector<1x16xf32> to vector<8x16xf32>
    %148 = arith.addf %146, %147 : vector<8x16xf32>
    %149 = arith.mulf %136, %148 : vector<8x16xf32>
    %150 = arith.addf %145, %149 : vector<8x16xf32>
    %151 = math.tanh %150 : vector<8x16xf32>
    %cst_37 = arith.constant 1.000000e+00 : f32
    %152 = vector.broadcast %cst_37 : f32 to vector<8x16xf32>
    %153 = arith.subf %152, %144 : vector<8x16xf32>
    %154 = arith.mulf %153, %151 : vector<8x16xf32>
    %155 = arith.mulf %144, %128 : vector<8x16xf32>
    %156 = arith.addf %154, %155 : vector<8x16xf32>
    %157 = arith.index_cast %c1_i32 : i32 to index
    %c0_38 = arith.constant 0 : index
    %c0_39 = arith.constant 0 : index
    %158 = vector.load %arg5[%157, %c0_38, %c0_39] : memref<4x8x16xf32, #tpu.memory_space<vmem>>, vector<1x8x16xf32>
    %159 = vector.shape_cast %158 : vector<1x8x16xf32> to vector<8x16xf32>
    %160 = vector.shape_cast %124 : vector<8x16xf32> to vector<1x8x16xf32>
    tpu.vector_store %arg5[%157, %c0_38, %c0_39], %160 {strides = array<i32>} : memref<4x8x16xf32, #tpu.memory_space<vmem>>, vector<1x8x16xf32>,
    %161 = arith.index_cast %92 : i32 to index
    %c0_40 = arith.constant 0 : index
    %c0_41 = arith.constant 0 : index
    %162 = vector.load %arg6[%161, %c0_40, %c0_41] : memref<4x8x16xf32, #tpu.memory_space<vmem>>, vector<1x8x16xf32>
    %163 = vector.shape_cast %162 : vector<1x8x16xf32> to vector<8x16xf32>
    %164 = vector.shape_cast %156 : vector<8x16xf32> to vector<1x8x16xf32>
    tpu.vector_store %arg6[%161, %c0_40, %c0_41], %164 {strides = array<i32>} : memref<4x8x16xf32, #tpu.memory_space<vmem>>, vector<1x8x16xf32>,
    %c0_42 = arith.constant 0 : index
    %c0_43 = arith.constant 0 : index
    %165 = vector.load %arg7[%c0_42, %c0_43] : memref<8x32xf32, #tpu.memory_space<vmem>>, vector<8x16xf32>
    tpu.vector_store %arg7[%c0_42, %c0_43], %124 {strides = array<i32>} : memref<8x32xf32, #tpu.memory_space<vmem>>, vector<8x16xf32>,
    %c0_44 = arith.constant 0 : index
    %c16_45 = arith.constant 16 : index
    %166 = vector.load %arg7[%c0_44, %c16_45] : memref<8x32xf32, #tpu.memory_space<vmem>>, vector<8x16xf32>
    tpu.vector_store %arg7[%c0_44, %c16_45], %156 {strides = array<i32>} : memref<8x32xf32, #tpu.memory_space<vmem>>, vector<8x16xf32>,
    %c2_i32 = arith.constant 2 : i32
    %c0_46 = arith.constant 0 : index
    %c0_47 = arith.constant 0 : index
    %167 = vector.load %arg7[%c0_46, %c0_47] : memref<8x32xf32, #tpu.memory_space<vmem>>, vector<8x32xf32>
    %168 = arith.truncf %167 : vector<8x32xf32> to vector<8x32xbf16>
    %cst_48 = arith.constant dense<0.000000e+00> : vector<8x96xf32>
    %169 = tpu.matmul %168, %3, %cst_48 {dimension_numbers = #tpu.dot_dimension_numbers<[1], [0], [0], [1], [0, 0, 1, 1], [], []>} : vector<8x32xbf16>, vector<32x96xbf16>, vector<8x96xf32> -> vector<8x96xf32>
    %170 = vector.extract_strided_slice %169 {offsets = [0, 0], sizes = [8, 48], strides = [1, 1]} : vector<8x96xf32> to vector<8x48xf32>
    %171 = vector.extract_strided_slice %169 {offsets = [0, 48], sizes = [8, 48], strides = [1, 1]} : vector<8x96xf32> to vector<8x48xf32>
    %c3_i32_49 = arith.constant 3 : i32
    %172 = arith.subi %c3_i32_49, %c2_i32 : i32
    %173 = arith.index_cast %c2_i32 : i32 to index
    %c0_50 = arith.constant 0 : index
    %c0_51 = arith.constant 0 : index
    %174 = vector.load %arg1[%173, %c0_50, %c0_51] : memref<4x8x48xf32, #tpu.memory_space<vmem>>, vector<1x8x48xf32>
    %175 = vector.shape_cast %174 : vector<1x8x48xf32> to vector<8x48xf32>
    %176 = vector.extract_strided_slice %167 {offsets = [0, 0], sizes = [8, 16], strides = [1, 1]} : vector<8x32xf32> to vector<8x16xf32>
    %177 = vector.extract_strided_slice %175 {offsets = [0, 0], sizes = [8, 16], strides = [1, 1]} : vector<8x48xf32> to vector<8x16xf32>
    %178 = vector.extract_strided_slice %170 {offsets = [0, 0], sizes = [8, 16], strides = [1, 1]} : vector<8x48xf32> to vector<8x16xf32>
    %179 = arith.addf %177, %178 : vector<8x16xf32>
    %180 = arith.negf %179 : vector<8x16xf32>
    %181 = math.exp %180 : vector<8x16xf32>
    %cst_52 = arith.constant 1.000000e+00 : f32
    %182 = vector.broadcast %cst_52 : f32 to vector<8x16xf32>
    %183 = arith.addf %182, %181 : vector<8x16xf32>
    %184 = arith.divf %182, %183 : vector<8x16xf32>
    %185 = vector.extract_strided_slice %175 {offsets = [0, 16], sizes = [8, 16], strides = [1, 1]} : vector<8x48xf32> to vector<8x16xf32>
    %186 = vector.extract_strided_slice %170 {offsets = [0, 16], sizes = [8, 16], strides = [1, 1]} : vector<8x48xf32> to vector<8x16xf32>
    %187 = arith.addf %185, %186 : vector<8x16xf32>
    %188 = arith.negf %187 : vector<8x16xf32>
    %189 = math.exp %188 : vector<8x16xf32>
    %cst_53 = arith.constant 1.000000e+00 : f32
    %190 = vector.broadcast %cst_53 : f32 to vector<8x16xf32>
    %191 = arith.addf %190, %189 : vector<8x16xf32>
    %192 = arith.divf %190, %191 : vector<8x16xf32>
    %193 = vector.extract_strided_slice %175 {offsets = [0, 32], sizes = [8, 16], strides = [1, 1]} : vector<8x48xf32> to vector<8x16xf32>
    %194 = vector.extract_strided_slice %170 {offsets = [0, 32], sizes = [8, 16], strides = [1, 1]} : vector<8x48xf32> to vector<8x16xf32>
    %195 = vector.broadcast %5 : vector<1x16xf32> to vector<8x16xf32>
    %196 = arith.addf %194, %195 : vector<8x16xf32>
    %197 = arith.mulf %184, %196 : vector<8x16xf32>
    %198 = arith.addf %193, %197 : vector<8x16xf32>
    %199 = math.tanh %198 : vector<8x16xf32>
    %cst_54 = arith.constant 1.000000e+00 : f32
    %200 = vector.broadcast %cst_54 : f32 to vector<8x16xf32>
    %201 = arith.subf %200, %192 : vector<8x16xf32>
    %202 = arith.mulf %201, %199 : vector<8x16xf32>
    %203 = arith.mulf %192, %176 : vector<8x16xf32>
    %204 = arith.addf %202, %203 : vector<8x16xf32>
    %205 = arith.index_cast %172 : i32 to index
    %c0_55 = arith.constant 0 : index
    %c0_56 = arith.constant 0 : index
    %206 = vector.load %arg2[%205, %c0_55, %c0_56] : memref<4x8x48xf32, #tpu.memory_space<vmem>>, vector<1x8x48xf32>
    %207 = vector.shape_cast %206 : vector<1x8x48xf32> to vector<8x48xf32>
    %208 = vector.extract_strided_slice %167 {offsets = [0, 16], sizes = [8, 16], strides = [1, 1]} : vector<8x32xf32> to vector<8x16xf32>
    %209 = vector.extract_strided_slice %207 {offsets = [0, 0], sizes = [8, 16], strides = [1, 1]} : vector<8x48xf32> to vector<8x16xf32>
    %210 = vector.extract_strided_slice %171 {offsets = [0, 0], sizes = [8, 16], strides = [1, 1]} : vector<8x48xf32> to vector<8x16xf32>
    %211 = arith.addf %209, %210 : vector<8x16xf32>
    %212 = arith.negf %211 : vector<8x16xf32>
    %213 = math.exp %212 : vector<8x16xf32>
    %cst_57 = arith.constant 1.000000e+00 : f32
    %214 = vector.broadcast %cst_57 : f32 to vector<8x16xf32>
    %215 = arith.addf %214, %213 : vector<8x16xf32>
    %216 = arith.divf %214, %215 : vector<8x16xf32>
    %217 = vector.extract_strided_slice %207 {offsets = [0, 16], sizes = [8, 16], strides = [1, 1]} : vector<8x48xf32> to vector<8x16xf32>
    %218 = vector.extract_strided_slice %171 {offsets = [0, 16], sizes = [8, 16], strides = [1, 1]} : vector<8x48xf32> to vector<8x16xf32>
    %219 = arith.addf %217, %218 : vector<8x16xf32>
    %220 = arith.negf %219 : vector<8x16xf32>
    %221 = math.exp %220 : vector<8x16xf32>
    %cst_58 = arith.constant 1.000000e+00 : f32
    %222 = vector.broadcast %cst_58 : f32 to vector<8x16xf32>
    %223 = arith.addf %222, %221 : vector<8x16xf32>
    %224 = arith.divf %222, %223 : vector<8x16xf32>
    %225 = vector.extract_strided_slice %207 {offsets = [0, 32], sizes = [8, 16], strides = [1, 1]} : vector<8x48xf32> to vector<8x16xf32>
    %226 = vector.extract_strided_slice %171 {offsets = [0, 32], sizes = [8, 16], strides = [1, 1]} : vector<8x48xf32> to vector<8x16xf32>
    %227 = vector.broadcast %6 : vector<1x16xf32> to vector<8x16xf32>
    %228 = arith.addf %226, %227 : vector<8x16xf32>
    %229 = arith.mulf %216, %228 : vector<8x16xf32>
    %230 = arith.addf %225, %229 : vector<8x16xf32>
    %231 = math.tanh %230 : vector<8x16xf32>
    %cst_59 = arith.constant 1.000000e+00 : f32
    %232 = vector.broadcast %cst_59 : f32 to vector<8x16xf32>
    %233 = arith.subf %232, %224 : vector<8x16xf32>
    %234 = arith.mulf %233, %231 : vector<8x16xf32>
    %235 = arith.mulf %224, %208 : vector<8x16xf32>
    %236 = arith.addf %234, %235 : vector<8x16xf32>
    %237 = arith.index_cast %c2_i32 : i32 to index
    %c0_60 = arith.constant 0 : index
    %c0_61 = arith.constant 0 : index
    %238 = vector.load %arg5[%237, %c0_60, %c0_61] : memref<4x8x16xf32, #tpu.memory_space<vmem>>, vector<1x8x16xf32>
    %239 = vector.shape_cast %238 : vector<1x8x16xf32> to vector<8x16xf32>
    %240 = vector.shape_cast %204 : vector<8x16xf32> to vector<1x8x16xf32>
    tpu.vector_store %arg5[%237, %c0_60, %c0_61], %240 {strides = array<i32>} : memref<4x8x16xf32, #tpu.memory_space<vmem>>, vector<1x8x16xf32>,
    %241 = arith.index_cast %172 : i32 to index
    %c0_62 = arith.constant 0 : index
    %c0_63 = arith.constant 0 : index
    %242 = vector.load %arg6[%241, %c0_62, %c0_63] : memref<4x8x16xf32, #tpu.memory_space<vmem>>, vector<1x8x16xf32>
    %243 = vector.shape_cast %242 : vector<1x8x16xf32> to vector<8x16xf32>
    %244 = vector.shape_cast %236 : vector<8x16xf32> to vector<1x8x16xf32>
    tpu.vector_store %arg6[%241, %c0_62, %c0_63], %244 {strides = array<i32>} : memref<4x8x16xf32, #tpu.memory_space<vmem>>, vector<1x8x16xf32>,
    %c0_64 = arith.constant 0 : index
    %c0_65 = arith.constant 0 : index
    %245 = vector.load %arg7[%c0_64, %c0_65] : memref<8x32xf32, #tpu.memory_space<vmem>>, vector<8x16xf32>
    tpu.vector_store %arg7[%c0_64, %c0_65], %204 {strides = array<i32>} : memref<8x32xf32, #tpu.memory_space<vmem>>, vector<8x16xf32>,
    %c0_66 = arith.constant 0 : index
    %c16_67 = arith.constant 16 : index
    %246 = vector.load %arg7[%c0_66, %c16_67] : memref<8x32xf32, #tpu.memory_space<vmem>>, vector<8x16xf32>
    tpu.vector_store %arg7[%c0_66, %c16_67], %236 {strides = array<i32>} : memref<8x32xf32, #tpu.memory_space<vmem>>, vector<8x16xf32>,
    %c3_i32_68 = arith.constant 3 : i32
    %c0_69 = arith.constant 0 : index
    %c0_70 = arith.constant 0 : index
    %247 = vector.load %arg7[%c0_69, %c0_70] : memref<8x32xf32, #tpu.memory_space<vmem>>, vector<8x32xf32>
    %248 = arith.truncf %247 : vector<8x32xf32> to vector<8x32xbf16>
    %cst_71 = arith.constant dense<0.000000e+00> : vector<8x96xf32>
    %249 = tpu.matmul %248, %3, %cst_71 {dimension_numbers = #tpu.dot_dimension_numbers<[1], [0], [0], [1], [0, 0, 1, 1], [], []>} : vector<8x32xbf16>, vector<32x96xbf16>, vector<8x96xf32> -> vector<8x96xf32>
    %250 = vector.extract_strided_slice %249 {offsets = [0, 0], sizes = [8, 48], strides = [1, 1]} : vector<8x96xf32> to vector<8x48xf32>
    %251 = vector.extract_strided_slice %249 {offsets = [0, 48], sizes = [8, 48], strides = [1, 1]} : vector<8x96xf32> to vector<8x48xf32>
    %c3_i32_72 = arith.constant 3 : i32
    %252 = arith.subi %c3_i32_72, %c3_i32_68 : i32
    %253 = arith.index_cast %c3_i32_68 : i32 to index
    %c0_73 = arith.constant 0 : index
    %c0_74 = arith.constant 0 : index
    %254 = vector.load %arg1[%253, %c0_73, %c0_74] : memref<4x8x48xf32, #tpu.memory_space<vmem>>, vector<1x8x48xf32>
    %255 = vector.shape_cast %254 : vector<1x8x48xf32> to vector<8x48xf32>
    %256 = vector.extract_strided_slice %247 {offsets = [0, 0], sizes = [8, 16], strides = [1, 1]} : vector<8x32xf32> to vector<8x16xf32>
    %257 = vector.extract_strided_slice %255 {offsets = [0, 0], sizes = [8, 16], strides = [1, 1]} : vector<8x48xf32> to vector<8x16xf32>
    %258 = vector.extract_strided_slice %250 {offsets = [0, 0], sizes = [8, 16], strides = [1, 1]} : vector<8x48xf32> to vector<8x16xf32>
    %259 = arith.addf %257, %258 : vector<8x16xf32>
    %260 = arith.negf %259 : vector<8x16xf32>
    %261 = math.exp %260 : vector<8x16xf32>
    %cst_75 = arith.constant 1.000000e+00 : f32
    %262 = vector.broadcast %cst_75 : f32 to vector<8x16xf32>
    %263 = arith.addf %262, %261 : vector<8x16xf32>
    %264 = arith.divf %262, %263 : vector<8x16xf32>
    %265 = vector.extract_strided_slice %255 {offsets = [0, 16], sizes = [8, 16], strides = [1, 1]} : vector<8x48xf32> to vector<8x16xf32>
    %266 = vector.extract_strided_slice %250 {offsets = [0, 16], sizes = [8, 16], strides = [1, 1]} : vector<8x48xf32> to vector<8x16xf32>
    %267 = arith.addf %265, %266 : vector<8x16xf32>
    %268 = arith.negf %267 : vector<8x16xf32>
    %269 = math.exp %268 : vector<8x16xf32>
    %cst_76 = arith.constant 1.000000e+00 : f32
    %270 = vector.broadcast %cst_76 : f32 to vector<8x16xf32>
    %271 = arith.addf %270, %269 : vector<8x16xf32>
    %272 = arith.divf %270, %271 : vector<8x16xf32>
    %273 = vector.extract_strided_slice %255 {offsets = [0, 32], sizes = [8, 16], strides = [1, 1]} : vector<8x48xf32> to vector<8x16xf32>
    %274 = vector.extract_strided_slice %250 {offsets = [0, 32], sizes = [8, 16], strides = [1, 1]} : vector<8x48xf32> to vector<8x16xf32>
    %275 = vector.broadcast %5 : vector<1x16xf32> to vector<8x16xf32>
    %276 = arith.addf %274, %275 : vector<8x16xf32>
    %277 = arith.mulf %264, %276 : vector<8x16xf32>
    %278 = arith.addf %273, %277 : vector<8x16xf32>
    %279 = math.tanh %278 : vector<8x16xf32>
    %cst_77 = arith.constant 1.000000e+00 : f32
    %280 = vector.broadcast %cst_77 : f32 to vector<8x16xf32>
    %281 = arith.subf %280, %272 : vector<8x16xf32>
    %282 = arith.mulf %281, %279 : vector<8x16xf32>
    %283 = arith.mulf %272, %256 : vector<8x16xf32>
    %284 = arith.addf %282, %283 : vector<8x16xf32>
    %285 = arith.index_cast %252 : i32 to index
    %c0_78 = arith.constant 0 : index
    %c0_79 = arith.constant 0 : index
    %286 = vector.load %arg2[%285, %c0_78, %c0_79] : memref<4x8x48xf32, #tpu.memory_space<vmem>>, vector<1x8x48xf32>
    %287 = vector.shape_cast %286 : vector<1x8x48xf32> to vector<8x48xf32>
    %288 = vector.extract_strided_slice %247 {offsets = [0, 16], sizes = [8, 16], strides = [1, 1]} : vector<8x32xf32> to vector<8x16xf32>
    %289 = vector.extract_strided_slice %287 {offsets = [0, 0], sizes = [8, 16], strides = [1, 1]} : vector<8x48xf32> to vector<8x16xf32>
    %290 = vector.extract_strided_slice %251 {offsets = [0, 0], sizes = [8, 16], strides = [1, 1]} : vector<8x48xf32> to vector<8x16xf32>
    %291 = arith.addf %289, %290 : vector<8x16xf32>
    %292 = arith.negf %291 : vector<8x16xf32>
    %293 = math.exp %292 : vector<8x16xf32>
    %cst_80 = arith.constant 1.000000e+00 : f32
    %294 = vector.broadcast %cst_80 : f32 to vector<8x16xf32>
    %295 = arith.addf %294, %293 : vector<8x16xf32>
    %296 = arith.divf %294, %295 : vector<8x16xf32>
    %297 = vector.extract_strided_slice %287 {offsets = [0, 16], sizes = [8, 16], strides = [1, 1]} : vector<8x48xf32> to vector<8x16xf32>
    %298 = vector.extract_strided_slice %251 {offsets = [0, 16], sizes = [8, 16], strides = [1, 1]} : vector<8x48xf32> to vector<8x16xf32>
    %299 = arith.addf %297, %298 : vector<8x16xf32>
    %300 = arith.negf %299 : vector<8x16xf32>
    %301 = math.exp %300 : vector<8x16xf32>
    %cst_81 = arith.constant 1.000000e+00 : f32
    %302 = vector.broadcast %cst_81 : f32 to vector<8x16xf32>
    %303 = arith.addf %302, %301 : vector<8x16xf32>
    %304 = arith.divf %302, %303 : vector<8x16xf32>
    %305 = vector.extract_strided_slice %287 {offsets = [0, 32], sizes = [8, 16], strides = [1, 1]} : vector<8x48xf32> to vector<8x16xf32>
    %306 = vector.extract_strided_slice %251 {offsets = [0, 32], sizes = [8, 16], strides = [1, 1]} : vector<8x48xf32> to vector<8x16xf32>
    %307 = vector.broadcast %6 : vector<1x16xf32> to vector<8x16xf32>
    %308 = arith.addf %306, %307 : vector<8x16xf32>
    %309 = arith.mulf %296, %308 : vector<8x16xf32>
    %310 = arith.addf %305, %309 : vector<8x16xf32>
    %311 = math.tanh %310 : vector<8x16xf32>
    %cst_82 = arith.constant 1.000000e+00 : f32
    %312 = vector.broadcast %cst_82 : f32 to vector<8x16xf32>
    %313 = arith.subf %312, %304 : vector<8x16xf32>
    %314 = arith.mulf %313, %311 : vector<8x16xf32>
    %315 = arith.mulf %304, %288 : vector<8x16xf32>
    %316 = arith.addf %314, %315 : vector<8x16xf32>
    %317 = arith.index_cast %c3_i32_68 : i32 to index
    %c0_83 = arith.constant 0 : index
    %c0_84 = arith.constant 0 : index
    %318 = vector.load %arg5[%317, %c0_83, %c0_84] : memref<4x8x16xf32, #tpu.memory_space<vmem>>, vector<1x8x16xf32>
    %319 = vector.shape_cast %318 : vector<1x8x16xf32> to vector<8x16xf32>
    %320 = vector.shape_cast %284 : vector<8x16xf32> to vector<1x8x16xf32>
    tpu.vector_store %arg5[%317, %c0_83, %c0_84], %320 {strides = array<i32>} : memref<4x8x16xf32, #tpu.memory_space<vmem>>, vector<1x8x16xf32>,
    %321 = arith.index_cast %252 : i32 to index
    %c0_85 = arith.constant 0 : index
    %c0_86 = arith.constant 0 : index
    %322 = vector.load %arg6[%321, %c0_85, %c0_86] : memref<4x8x16xf32, #tpu.memory_space<vmem>>, vector<1x8x16xf32>
    %323 = vector.shape_cast %322 : vector<1x8x16xf32> to vector<8x16xf32>
    %324 = vector.shape_cast %316 : vector<8x16xf32> to vector<1x8x16xf32>
    tpu.vector_store %arg6[%321, %c0_85, %c0_86], %324 {strides = array<i32>} : memref<4x8x16xf32, #tpu.memory_space<vmem>>, vector<1x8x16xf32>,
    %c0_87 = arith.constant 0 : index
    %c0_88 = arith.constant 0 : index
    %325 = vector.load %arg7[%c0_87, %c0_88] : memref<8x32xf32, #tpu.memory_space<vmem>>, vector<8x16xf32>
    tpu.vector_store %arg7[%c0_87, %c0_88], %284 {strides = array<i32>} : memref<8x32xf32, #tpu.memory_space<vmem>>, vector<8x16xf32>,
    %c0_89 = arith.constant 0 : index
    %c16_90 = arith.constant 16 : index
    %326 = vector.load %arg7[%c0_89, %c16_90] : memref<8x32xf32, #tpu.memory_space<vmem>>, vector<8x16xf32>
    tpu.vector_store %arg7[%c0_89, %c16_90], %316 {strides = array<i32>} : memref<8x32xf32, #tpu.memory_space<vmem>>, vector<8x16xf32>,
    %c4_i32 = arith.constant 4 : i32
    return
  }
  func.func @transform_0(%arg0: i32) -> (i32, i32, i32) {
    %c0_i32 = arith.constant 0 : i32
    %c0_i32_0 = arith.constant 0 : i32
    %c0_i32_1 = arith.constant 0 : i32
    return %arg0, %c0_i32, %c0_i32_0 : i32, i32, i32
  }
  func.func @transform_1(%arg0: i32) -> (i32, i32, i32) {
    %c1_i32 = arith.constant 1 : i32
    %0 = arith.subi %c1_i32, %arg0 : i32
    %c0_i32 = arith.constant 0 : i32
    %c0_i32_0 = arith.constant 0 : i32
    %c0_i32_1 = arith.constant 0 : i32
    return %0, %c0_i32, %c0_i32_0 : i32, i32, i32
  }
  func.func @transform_2(%arg0: i32) -> (i32, i32) {
    %c0_i32 = arith.constant 0 : i32
    %c0_i32_0 = arith.constant 0 : i32
    %c0_i32_1 = arith.constant 0 : i32
    return %c0_i32, %c0_i32_0 : i32, i32
  }
  func.func @transform_3(%arg0: i32) -> (i32, i32) {
    %c0_i32 = arith.constant 0 : i32
    %c0_i32_0 = arith.constant 0 : i32
    %c0_i32_1 = arith.constant 0 : i32
    return %c0_i32, %c0_i32_0 : i32, i32
  }
  func.func @transform_4(%arg0: i32) -> (i32, i32, i32) {
    %c0_i32 = arith.constant 0 : i32
    %c0_i32_0 = arith.constant 0 : i32
    %c0_i32_1 = arith.constant 0 : i32
    return %arg0, %c0_i32, %c0_i32_0 : i32, i32, i32
  }
  func.func @transform_5(%arg0: i32) -> (i32, i32, i32) {
    %c1_i32 = arith.constant 1 : i32
    %0 = arith.subi %c1_i32, %arg0 : i32
    %c0_i32 = arith.constant 0 : i32
    %c0_i32_0 = arith.constant 0 : i32
    %c0_i32_1 = arith.constant 0 : i32
    return %0, %c0_i32, %c0_i32_0 : i32, i32, i32
  }
}

</mosaic_0001>

<llo_original>
// kernel: sentiment_forward.9
$region0: #{sentiment_forward.9}
  #allocation0 [shape = 'u32[]', space=smem, size = 0x4, offset = 0x4, fixed_abs, tag = 'smem constant byte address 0x4 - core index']
  #allocation1 [shape = 'u32[144,128]{1,0:T(1,128)}', space=vmem, size = 0x12000, scoped, tag = 'internal scratch']
  %s0 = inlined_call_operand.vmem [shape: f32[8,16], index: 0, kind: input, shape index: {}]
  %s1 = inlined_call_operand.vmem [shape: f32[8,16], index: 1, kind: input, shape index: {}]
  %s2 = inlined_call_operand.vmem [shape: bf16[16,2], index: 2, kind: input, shape index: {}]
  %s3 = inlined_call_operand.vmem [shape: bf16[16,2], index: 3, kind: input, shape index: {}]
  %s4 = inlined_call_operand.vmem [shape: f32[1,2], index: 4, kind: input, shape index: {}]
  %s5 = inlined_call_operand.vmem [shape: f32[8,2], index: 5, kind: output, shape index: {}]
  %s6 = sld [smem:[#allocation0]]
  $region30: #{sentiment_forward.9} parent=0
    _
  %s8 = ssub.s32 1, %s6
  %s9 = scalar_select 0, %s8, %s6
  // Predicated region
  $region2: #{sentiment_forward.9} parent=0 // pred_check
    _
  $region3: #{sentiment_forward.9} parent=0 // pred_check_branch
    %11 = sbr.rel (0) target = $region5
  $region4: #{sentiment_forward.9} parent=0 // pred_region
    _
  $region5: #{sentiment_forward.9} parent=0 // pred_fallthru
    _
  // Predicated region
  $region6: #{sentiment_forward.9} parent=0 // pred_check
    _
  $region7: #{sentiment_forward.9} parent=0 // pred_check_branch
    %13 = sbr.rel (0) target = $region9
  $region8: #{sentiment_forward.9} parent=0 // pred_region
    _
  $region9: #{sentiment_forward.9} parent=0 // pred_fallthru
    _
  // Predicated region
  $region10: #{sentiment_forward.9} parent=0 // pred_check
    _
  $region11: #{sentiment_forward.9} parent=0 // pred_check_branch
    %15 = sbr.rel (0) target = $region13
  $region12: #{sentiment_forward.9} parent=0 // pred_region
    _
  $region13: #{sentiment_forward.9} parent=0 // pred_fallthru
    _
  // Predicated region
  $region14: #{sentiment_forward.9} parent=0 // pred_check
    _
  $region15: #{sentiment_forward.9} parent=0 // pred_check_branch
    %17 = sbr.rel (0) target = $region17
  $region16: #{sentiment_forward.9} parent=0 // pred_region
    _
  $region17: #{sentiment_forward.9} parent=0 // pred_fallthru
    _
  // Predicated region
  $region18: #{sentiment_forward.9} parent=0 // pred_check
    _
  $region19: #{sentiment_forward.9} parent=0 // pred_check_branch
    %19 = sbr.rel (0) target = $region21
  $region20: #{sentiment_forward.9} parent=0 // pred_region
    _
  $region21: #{sentiment_forward.9} parent=0 // pred_fallthru
    _
  %v21 = vld [vmem:[%s0] sm:$0xff]
  %v22 = vpack.c.bf16 %v21, %v21
  %v23 = vld [vmem:[%s1] sm:$0xff]
  %v24 = vpack.c.bf16 %v23, %v23
  %v25 = vld [vmem:[%s4] sm:$0x1]
  %v26 = vld [vmem:[%s2] sm:$0xf]
  %v27 = vld [vmem:[%s2 + $0x4] sm:$0xf]
  %v30 = vunpack.c.l.b16 %v26
  %v31 = vunpack.c.l.b16 %v27
  %v32 = vpack.c.b16 %v31, %v30
  %vm34 = vcmask 130048
  %v36 = vsel %vm34, %v22, 0
  %38 = vmatprep.subr.bf16.mxu0 0
  %39 = vmatpush1.bf16.msra.mxu0 0
  %40 = vmatprep.subr.bf16.mxu0 0
  %41 = vmatpush1.bf16.msra.mxu0 0
  %42 = vmatprep.subr.bf16.mxu0 0
  %43 = vmatpush1.bf16.msra.mxu0 0
  %44 = vmatprep.subr.bf16.mxu0 0
  %45 = vmatpush1.bf16.msra.mxu0 0
  %46 = vmatprep.subr.bf16.mxu0 0
  %47 = vmatpush1.bf16.msra.mxu0 0
  %48 = vmatprep.subr.bf16.mxu0 0
  %49 = vmatpush1.bf16.msra.mxu0 0
  %50 = vmatprep.subr.bf16.mxu0 0
  %51 = vmatpush1.bf16.msra.mxu0 0
  %52 = vmatprep.subr.bf16.mxu0 0
  %53 = vmatpush1.bf16.msra.mxu0 %v32
  %54 = vmatprep.subr.bf16.mxu0 0
  %55 = vmatpush2.bf16.msra.mxu0 0
  %56 = vmatprep.subr.bf16.mxu0 0
  %57 = vmatpush2.bf16.msra.mxu0 0
  %58 = vmatprep.subr.bf16.mxu0 0
  %59 = vmatpush2.bf16.msra.mxu0 0
  %60 = vmatprep.subr.bf16.mxu0 0
  %61 = vmatpush2.bf16.msra.mxu0 0
  %62 = vmatprep.subr.bf16.mxu0 0
  %63 = vmatpush2.bf16.msra.mxu0 0
  %64 = vmatprep.subr.bf16.mxu0 0
  %65 = vmatpush2.bf16.msra.mxu0 0
  %66 = vmatprep.subr.bf16.mxu0 0
  %67 = vmatpush2.bf16.msra.mxu0 0
  %68 = vmatprep.subr.bf16.mxu0 0
  %69 = vmatpush2.bf16.msra.mxu0 0
  %70 = vmatprep.mubr.bf16.mxu0 0
  %71 = vmatmul.mubr.bf16.gmra.mxu0 %v36
  %v72 = vpop.f32.mrf.mxu0
  %v73 = vadd.f32 0.0, %v72
  %v74 = vpop.f32.mrf.mxu0
  %v75 = vpop.f32.mrf.mxu0
  %v76 = vpop.f32.mrf.mxu0
  %77 = vdwg.mxu0
  %v79 = vlaneseq
  %v80 = vshrl.u32 %v79, 7
  %v81 = vsub.s32 0, %v80
  %v82 = vrot.slane %v25, %v81
  %v84 = vadd.f32 %v82, %v73
  %v85 = vld [vmem:[%s3] sm:$0xf]
  %v86 = vld [vmem:[%s3 + $0x4] sm:$0xf]
  %v89 = vunpack.c.l.b16 %v85
  %v90 = vunpack.c.l.b16 %v86
  %v91 = vpack.c.b16 %v90, %v89
  %v94 = vsel %vm34, %v24, 0
  %96 = vmatprep.subr.bf16.mxu0 0
  %97 = vmatpush1.bf16.msra.mxu0 0
  %98 = vmatprep.subr.bf16.mxu0 0
  %99 = vmatpush1.bf16.msra.mxu0 0
  %100 = vmatprep.subr.bf16.mxu0 0
  %101 = vmatpush1.bf16.msra.mxu0 0
  %102 = vmatprep.subr.bf16.mxu0 0
  %103 = vmatpush1.bf16.msra.mxu0 0
  %104 = vmatprep.subr.bf16.mxu0 0
  %105 = vmatpush1.bf16.msra.mxu0 0
  %106 = vmatprep.subr.bf16.mxu0 0
  %107 = vmatpush1.bf16.msra.mxu0 0
  %108 = vmatprep.subr.bf16.mxu0 0
  %109 = vmatpush1.bf16.msra.mxu0 0
  %110 = vmatprep.subr.bf16.mxu0 0
  %111 = vmatpush1.bf16.msra.mxu0 %v91
  %112 = vmatprep.subr.bf16.mxu0 0
  %113 = vmatpush2.bf16.msra.mxu0 0
  %114 = vmatprep.subr.bf16.mxu0 0
  %115 = vmatpush2.bf16.msra.mxu0 0
  %116 = vmatprep.subr.bf16.mxu0 0
  %117 = vmatpush2.bf16.msra.mxu0 0
  %118 = vmatprep.subr.bf16.mxu0 0
  %119 = vmatpush2.bf16.msra.mxu0 0
  %120 = vmatprep.subr.bf16.mxu0 0
  %121 = vmatpush2.bf16.msra.mxu0 0
  %122 = vmatprep.subr.bf16.mxu0 0
  %123 = vmatpush2.bf16.msra.mxu0 0
  %124 = vmatprep.subr.bf16.mxu0 0
  %125 = vmatpush2.bf16.msra.mxu0 0
  %126 = vmatprep.subr.bf16.mxu0 0
  %127 = vmatpush2.bf16.msra.mxu0 0
  %128 = vmatprep.mubr.bf16.mxu0 0
  %129 = vmatmul.mubr.bf16.gmra.mxu0 %v94
  %v130 = vpop.f32.mrf.mxu0
  %v131 = vadd.f32 0.0, %v130
  %v132 = vpop.f32.mrf.mxu0
  %v133 = vpop.f32.mrf.mxu0
  %v134 = vpop.f32.mrf.mxu0
  %135 = vdwg.mxu0
  %v136 = vadd.f32 %v84, %v131
  %vm137 = vcmask 15360
  %138 = vst.msk [vmem:[%s5] sm:$0xff] %vm137, %v136
  // Predicated region
  $region22: #{sentiment_forward.9} parent=0 // pred_check
    _
  $region23: #{sentiment_forward.9} parent=0 // pred_check_branch
    %140 = sbr.rel (0) target = $region25
  $region24: #{sentiment_forward.9} parent=0 // pred_region
    _
  $region25: #{sentiment_forward.9} parent=0 // pred_fallthru
    _
  // Predicated region
  $region26: #{sentiment_forward.9} parent=0 // pred_check
    _
  $region27: #{sentiment_forward.9} parent=0 // pred_check_branch
    %142 = sbr.rel (0) target = $region29
  $region28: #{sentiment_forward.9} parent=0 // pred_region
    _
  $region29: #{sentiment_forward.9} parent=0 // pred_fallthru
    _

// kernel: sentiment_forward.5
$region0: #{sentiment_forward.5}
  #allocation0 [shape = 'u32[]', space=smem, size = 0x4, offset = 0x4, fixed_abs, tag = 'smem constant byte address 0x4 - core index']
  #allocation1 [shape = 'u32[144,128]{1,0:T(1,128)}', space=vmem, size = 0x12000, scoped, tag = 'internal scratch']
  %s0 = inlined_call_operand.vmem [shape: f32[64,32], index: 0, kind: input, shape index: {}]
  %s1 = inlined_call_operand.vmem [shape: bf16[32,48], index: 1, kind: input, shape index: {}]
  %s2 = inlined_call_operand.vmem [shape: f32[1,48], index: 2, kind: input, shape index: {}]
  %s3 = inlined_call_operand.vmem [shape: bf16[32,48], index: 3, kind: input, shape index: {}]
  %s4 = inlined_call_operand.vmem [shape: f32[1,48], index: 4, kind: input, shape index: {}]
  %s5 = inlined_call_operand.vmem [shape: f32[64,48], index: 5, kind: output, shape index: {0}]
  %s6 = inlined_call_operand.vmem [shape: f32[64,48], index: 6, kind: output, shape index: {1}]
  %7 = xla_tuple %s5, %s6
  %s8 = sld [smem:[#allocation0]]
  $region61: #{sentiment_forward.5} parent=0
    _
  %s10 = ssub.s32 1, %s8
  %s11 = scalar_select 0, %s10, %s8
  loop: start=0, step=1, limit=4
  $region2: #{sentiment_forward.5} parent=0 // loop_pre_header
    _
  $region3: #{sentiment_forward.5} parent=0 // loop_header
    %s13 = sphi 0, %s17
    %p14 = scmp.ge.s32.totalorder %s13, 4
    %s23 = sphi 0, %s25
    %s26 = sphi 0, %s23
    %s27 = sphi 0, %s26
    %s43 = sphi 0, %s27
    %s47 = sphi 0, %s47
    %s49 = sphi 0, %s47
    %s50 = sphi 0, %s49
    %s64 = sphi 0, %s50
    %s68 = sphi 0, %s68
    %s70 = sphi 0, %s68
    %s71 = sphi 0, %s70
    %s85 = sphi 0, %s71
    %s89 = sphi 0, %s89
    %s91 = sphi 0, %s89
    %s92 = sphi 0, %s91
    %s106 = sphi 0, %s92
    %s110 = sphi 0, %s110
    %s112 = sphi 0, %s110
    %s113 = sphi 0, %s112
    %s127 = sphi 0, %s113
    %s133 = sphi 0, %s135
    %s136 = sphi 0, %s133
    %s137 = sphi 0, %s136
    %s153 = sphi 0, %s137
    %s159 = sphi 0, %s161
    %s162 = sphi 0, %s159
    %s163 = sphi 0, %s162
    %s179 = sphi 0, %s163
  $region4: #{sentiment_forward.5} parent=0 // loop_header_branch
    %16 = sbr.rel (%p14) target = $region8
  $region5: #{sentiment_forward.5} parent=0 // loop_body
    %s18 = ssub.s32 %s13, 1
    %s19 = ssub.s32 %s13, 2
    %s20 = sadd.s32 %s13, 1
    %s21 = ssub.s32 %s13, %s20
    %p22 = scmp.eq.s32.totalorder %s21, 0
    %s24 = sadd.s32 %s23, 1
    %s25 = scalar_select %p22, %s23, %s24
    %p28 = pneg %p22
    %p29 = scmp.eq.s32.totalorder %s13, 1
    %p30 = por %p28, %p29
    %p31 = scmp.ne.s32.totalorder %s23, %s26
    %p32 = scmp.eq.s32.totalorder %s13, 0
    %p33 = por %p31, %p32
    %p34 = scmp.ne.s32.totalorder %s23, %s26
    %p35 = scmp.eq.s32.totalorder %s18, 1
    %p36 = por %p34, %p35
    %p37 = scmp.ne.s32.totalorder %s26, %s27
    %p38 = scmp.eq.s32.totalorder %s18, 0
    %p39 = por %p37, %p38
    %p40 = scmp.ne.s32.totalorder %s26, %s27
    %p41 = scmp.eq.s32.totalorder %s19, 1
    %p42 = por %p40, %p41
    %p44 = scmp.ne.s32.totalorder %s27, %s43
    %p45 = scmp.eq.s32.totalorder %s19, 0
    %p46 = por %p44, %p45
    %s48 = sadd.s32 %s47, 1
    %p51 = scmp.eq.s32.totalorder %s13, 1
    %p52 = scmp.ne.s32.totalorder %s47, %s49
    %p53 = scmp.eq.s32.totalorder %s13, 0
    %p54 = por %p52, %p53
    %p55 = scmp.ne.s32.totalorder %s47, %s49
    %p56 = scmp.eq.s32.totalorder %s18, 1
    %p57 = por %p55, %p56
    %p58 = scmp.ne.s32.totalorder %s49, %s50
    %p59 = scmp.eq.s32.totalorder %s18, 0
    %p60 = por %p58, %p59
    %p61 = scmp.ne.s32.totalorder %s49, %s50
    %p62 = scmp.eq.s32.totalorder %s19, 1
    %p63 = por %p61, %p62
    %p65 = scmp.ne.s32.totalorder %s50, %s64
    %p66 = scmp.eq.s32.totalorder %s19, 0
    %p67 = por %p65, %p66
    %s69 = sadd.s32 %s68, 1
    %p72 = scmp.eq.s32.totalorder %s13, 1
    %p73 = scmp.ne.s32.totalorder %s68, %s70
    %p74 = scmp.eq.s32.totalorder %s13, 0
    %p75 = por %p73, %p74
    %p76 = scmp.ne.s32.totalorder %s68, %s70
    %p77 = scmp.eq.s32.totalorder %s18, 1
    %p78 = por %p76, %p77
    %p79 = scmp.ne.s32.totalorder %s70, %s71
    %p80 = scmp.eq.s32.totalorder %s18, 0
    %p81 = por %p79, %p80
    %p82 = scmp.ne.s32.totalorder %s70, %s71
    %p83 = scmp.eq.s32.totalorder %s19, 1
    %p84 = por %p82, %p83
    %p86 = scmp.ne.s32.totalorder %s71, %s85
    %p87 = scmp.eq.s32.totalorder %s19, 0
    %p88 = por %p86, %p87
    %s90 = sadd.s32 %s89, 1
    %p93 = scmp.eq.s32.totalorder %s13, 1
    %p94 = scmp.ne.s32.totalorder %s89, %s91
    %p95 = scmp.eq.s32.totalorder %s13, 0
    %p96 = por %p94, %p95
    %p97 = scmp.ne.s32.totalorder %s89, %s91
    %p98 = scmp.eq.s32.totalorder %s18, 1
    %p99 = por %p97, %p98
    %p100 = scmp.ne.s32.totalorder %s91, %s92
    %p101 = scmp.eq.s32.totalorder %s18, 0
    %p102 = por %p100, %p101
    %p103 = scmp.ne.s32.totalorder %s91, %s92
    %p104 = scmp.eq.s32.totalorder %s19, 1
    %p105 = por %p103, %p104
    %p107 = scmp.ne.s32.totalorder %s92, %s106
    %p108 = scmp.eq.s32.totalorder %s19, 0
    %p109 = por %p107, %p108
    %s111 = sadd.s32 %s110, 1
    %p114 = scmp.eq.s32.totalorder %s13, 1
    %p115 = scmp.ne.s32.totalorder %s110, %s112
    %p116 = scmp.eq.s32.totalorder %s13, 0
    %p117 = por %p115, %p116
    %p118 = scmp.ne.s32.totalorder %s110, %s112
    %p119 = scmp.eq.s32.totalorder %s18, 1
    %p120 = por %p118, %p119
    %p121 = scmp.ne.s32.totalorder %s112, %s113
    %p122 = scmp.eq.s32.totalorder %s18, 0
    %p123 = por %p121, %p122
    %p124 = scmp.ne.s32.totalorder %s112, %s113
    %p125 = scmp.eq.s32.totalorder %s19, 1
    %p126 = por %p124, %p125
    %p128 = scmp.ne.s32.totalorder %s113, %s127
    %p129 = scmp.eq.s32.totalorder %s19, 0
    %p130 = por %p128, %p129
    %s131 = ssub.s32 %s13, %s20
    %p132 = scmp.eq.s32.totalorder %s131, 0
    %s134 = sadd.s32 %s133, 1
    %s135 = scalar_select %p132, %s133, %s134
    %p138 = pneg %p132
    %p139 = scmp.eq.s32.totalorder %s13, 1
    %p140 = por %p138, %p139
    %p141 = scmp.ne.s32.totalorder %s133, %s136
    %p142 = scmp.eq.s32.totalorder %s13, 0
    %p143 = por %p141, %p142
    %p144 = scmp.ne.s32.totalorder %s133, %s136
    %p145 = scmp.eq.s32.totalorder %s18, 1
    %p146 = por %p144, %p145
    %p147 = scmp.ne.s32.totalorder %s136, %s137
    %p148 = scmp.eq.s32.totalorder %s18, 0
    %p149 = por %p147, %p148
    %p150 = scmp.ne.s32.totalorder %s136, %s137
    %p151 = scmp.eq.s32.totalorder %s19, 1
    %p152 = por %p150, %p151
    %p154 = scmp.ne.s32.totalorder %s137, %s153
    %p155 = scmp.eq.s32.totalorder %s19, 0
    %p156 = por %p154, %p155
    %s157 = ssub.s32 %s13, %s20
    %p158 = scmp.eq.s32.totalorder %s157, 0
    %s160 = sadd.s32 %s159, 1
    %s161 = scalar_select %p158, %s159, %s160
    %p164 = pneg %p158
    %p165 = scmp.eq.s32.totalorder %s13, 1
    %p166 = por %p164, %p165
    %p167 = scmp.ne.s32.totalorder %s159, %s162
    %p168 = scmp.eq.s32.totalorder %s13, 0
    %p169 = por %p167, %p168
    %p170 = scmp.ne.s32.totalorder %s159, %s162
    %p171 = scmp.eq.s32.totalorder %s18, 1
    %p172 = por %p170, %p171
    %p173 = scmp.ne.s32.totalorder %s162, %s163
    %p174 = scmp.eq.s32.totalorder %s18, 0
    %p175 = por %p173, %p174
    %p176 = scmp.ne.s32.totalorder %s162, %s163
    %p177 = scmp.eq.s32.totalorder %s19, 1
    %p178 = por %p176, %p177
    %p180 = scmp.ne.s32.totalorder %s163, %s179
    %p181 = scmp.eq.s32.totalorder %s19, 0
    %p182 = por %p180, %p181
    %p183 = scmp.le.s32.totalorder 1, %s13
    %p184 = scmp.lt.s32.totalorder %s13, 3
    %p185 = pnand %p183, %p184
    %p186 = pneg %p185
    // Predicated region
    $region9: #{sentiment_forward.5} parent=5 // pred_check
      _
    $region10: #{sentiment_forward.5} parent=5 // pred_check_branch
      %188 = sbr.rel (%p185) target = $region12
    $region11: #{sentiment_forward.5} parent=5 // pred_region
      %s189 = ssub.s32 %s13, 1
      // Predicated region
      $region13: #{sentiment_forward.5} parent=11 // pred_check
        %p190 = pneg %p60
      $region14: #{sentiment_forward.5} parent=11 // pred_check_branch
        %192 = sbr.rel (%p190) target = $region16
      $region15: #{sentiment_forward.5} parent=11 // pred_region
        _
      $region16: #{sentiment_forward.5} parent=11 // pred_fallthru
        _
      // Predicated region
      $region17: #{sentiment_forward.5} parent=11 // pred_check
        %p193 = pneg %p81
      $region18: #{sentiment_forward.5} parent=11 // pred_check_branch
        %195 = sbr.rel (%p193) target = $region20
      $region19: #{sentiment_forward.5} parent=11 // pred_region
        _
      $region20: #{sentiment_forward.5} parent=11 // pred_fallthru
        _
      // Predicated region
      $region21: #{sentiment_forward.5} parent=11 // pred_check
        %p196 = pneg %p102
      $region22: #{sentiment_forward.5} parent=11 // pred_check_branch
        %198 = sbr.rel (%p196) target = $region24
      $region23: #{sentiment_forward.5} parent=11 // pred_region
        _
      $region24: #{sentiment_forward.5} parent=11 // pred_fallthru
        _
      // Predicated region
      $region25: #{sentiment_forward.5} parent=11 // pred_check
        %p199 = pneg %p123
      $region26: #{sentiment_forward.5} parent=11 // pred_check_branch
        %201 = sbr.rel (%p199) target = $region28
      $region27: #{sentiment_forward.5} parent=11 // pred_region
        _
      $region28: #{sentiment_forward.5} parent=11 // pred_fallthru
        _
    $region12: #{sentiment_forward.5} parent=5 // pred_fallthru
      _
    %p202 = scmp.lt.s32.totalorder %s13, 2
    // Predicated region
    $region29: #{sentiment_forward.5} parent=5 // pred_check
      %p203 = pneg %p202
    $region30: #{sentiment_forward.5} parent=5 // pred_check_branch
      %205 = sbr.rel (%p203) target = $region32
    $region31: #{sentiment_forward.5} parent=5 // pred_region
      // Predicated region
      $region33: #{sentiment_forward.5} parent=31 // pred_check
        %p206 = pneg %p33
      $region34: #{sentiment_forward.5} parent=31 // pred_check_branch
        %208 = sbr.rel (%p206) target = $region36
      $region35: #{sentiment_forward.5} parent=31 // pred_region
        %s209 = smul.u32 4, %s13
        %p210 = scmp.lt.s32.totalorder %s209, 7
        %s211 = scalar_select %p210, %s209, 7
        %s212 = smul.addr %s211, 8
        %s213 = scalar_lea.vmem %s0, %s212
        %s214 = smul.u32 4, %s13
      $region36: #{sentiment_forward.5} parent=31 // pred_fallthru
        _
    $region32: #{sentiment_forward.5} parent=5 // pred_fallthru
      _
    %p215 = scmp.le.s32.totalorder 1, %s13
    %p216 = scmp.lt.s32.totalorder %s13, 3
    %p217 = pnand %p215, %p216
    %p218 = pneg %p217
    // Predicated region
    $region37: #{sentiment_forward.5} parent=5 // pred_check
      _
    $region38: #{sentiment_forward.5} parent=5 // pred_check_branch
      %220 = sbr.rel (%p217) target = $region40
    $region39: #{sentiment_forward.5} parent=5 // pred_region
      %s221 = ssub.s32 %s13, 1
      %s222 = smul.u32 4, %s18
      %p223 = scmp.lt.s32.totalorder %s222, 7
      %s224 = scalar_select %p223, %s222, 7
      %s225 = smul.addr %s224, 8
      %s226 = scalar_lea.vmem %s0, %s225
      %p227 = pneg %p39
      %p228 = pneg %p36
      %p229 = pneg %p60
      %p230 = pneg %p57
      %p231 = pneg %p81
      %p232 = pneg %p78
      %p233 = pneg %p102
      %p234 = pneg %p99
      %p235 = pneg %p123
      %p236 = pneg %p120
      %p237 = pneg %p149
      %p238 = pneg %p146
      %s239 = smul.u32 4, %s18
      %p240 = scmp.lt.s32.totalorder %s239, 7
      %s241 = scalar_select %p240, %s239, 7
      %s242 = smul.addr %s241, 8
      %s243 = scalar_lea.vmem %s5, %s242
      %p244 = pneg %p175
      %p245 = pneg %p172
      %s246 = smul.u32 4, %s18
      %p247 = scmp.lt.s32.totalorder %s246, 7
      %s248 = scalar_select %p247, %s246, 7
      %s249 = smul.addr %s248, 8
      %s250 = scalar_lea.vmem %s6, %s249
      %s251 = smul.u32 4, %s18
      %p252 = scmp.lt.s32.totalorder %s251, 7
      %s253 = scalar_select %p252, %s251, 7
      %s254 = smul.addr %s253, 8
      %s255 = scalar_lea.vmem %s0, %s254
      %s256 = smul.u32 4, %s18
      %s257 = smul.u32 4, %s18
      %p258 = scmp.lt.s32.totalorder %s257, 7
      %s259 = scalar_select %p258, %s257, 7
      %s260 = smul.addr %s259, 8
      %s261 = scalar_lea.vmem %s5, %s260
      %s262 = smul.u32 4, %s18
      %s263 = smul.u32 4, %s18
      %p264 = scmp.lt.s32.totalorder %s263, 7
      %s265 = scalar_select %p264, %s263, 7
      %s266 = smul.addr %s265, 8
      %s267 = scalar_lea.vmem %s6, %s266
      %s268 = smul.u32 4, %s18
      %v270 = vld [vmem:[%s255] sm:$0xff]
      %v271 = vld [vmem:[%s255 + $0x8] sm:$0xff]
      %v272 = vld [vmem:[%s255 + $0x10] sm:$0xff]
      %v273 = vld [vmem:[%s255 + $0x18] sm:$0xff]
      %v274 = vpack.c.bf16 %v271, %v270
      %v275 = vpack.c.bf16 %v273, %v272
      %v276 = vld [vmem:[%s2] sm:$0x1]
      %v277 = vld [vmem:[%s1] sm:$0xf]
      %v278 = vld [vmem:[%s1 + $0x4] sm:$0xf]
      %v279 = vld [vmem:[%s1 + $0x8] sm:$0xf]
      %v280 = vld [vmem:[%s1 + $0xc] sm:$0xf]
      %v285 = vunpack.c.l.b16 %v277
      %v286 = vunpack.c.l.b16 %v278
      %v287 = vunpack.c.l.b16 %v279
      %v288 = vunpack.c.l.b16 %v280
      %v289 = vpack.c.b16 %v286, %v285
      %v290 = vpack.c.b16 %v288, %v287
      %vm293 = vcmask 261120
      %v295 = vsel %vm293, %v274, 0
      %v298 = vsel %vm293, %v275, 0
      %300 = vmatprep.subr.bf16.mxu0 0
      %301 = vmatpush1.bf16.msra.mxu0 0
      %302 = vmatprep.subr.bf16.mxu0 0
      %303 = vmatpush1.bf16.msra.mxu0 0
      %304 = vmatprep.subr.bf16.mxu0 0
      %305 = vmatpush1.bf16.msra.mxu0 0
      %306 = vmatprep.subr.bf16.mxu0 0
      %307 = vmatpush1.bf16.msra.mxu0 0
      %308 = vmatprep.subr.bf16.mxu0 0
      %309 = vmatpush1.bf16.msra.mxu0 0
      %310 = vmatprep.subr.bf16.mxu0 0
      %311 = vmatpush1.bf16.msra.mxu0 0
      %312 = vmatprep.subr.bf16.mxu0 0
      %313 = vmatpush1.bf16.msra.mxu0 %v290
      %314 = vmatprep.subr.bf16.mxu0 0
      %315 = vmatpush1.bf16.msra.mxu0 %v289
      %316 = vmatprep.subr.bf16.mxu0 0
      %317 = vmatpush2.bf16.msra.mxu0 0
      %318 = vmatprep.subr.bf16.mxu0 0
      %319 = vmatpush2.bf16.msra.mxu0 0
      %320 = vmatprep.subr.bf16.mxu0 0
      %321 = vmatpush2.bf16.msra.mxu0 0
      %322 = vmatprep.subr.bf16.mxu0 0
      %323 = vmatpush2.bf16.msra.mxu0 0
      %324 = vmatprep.subr.bf16.mxu0 0
      %325 = vmatpush2.bf16.msra.mxu0 0
      %326 = vmatprep.subr.bf16.mxu0 0
      %327 = vmatpush2.bf16.msra.mxu0 0
      %328 = vmatprep.subr.bf16.mxu0 0
      %329 = vmatpush2.bf16.msra.mxu0 0
      %330 = vmatprep.subr.bf16.mxu0 0
      %331 = vmatpush2.bf16.msra.mxu0 0
      %332 = vmatprep.mubr.bf16.mxu0 0
      %333 = vmatmul.mubr.bf16.gmra.mxu0 %v295
      %v334 = vpop.f32.mrf.mxu0
      %v335 = vadd.f32 0.0, %v334
      %v336 = vpop.f32.mrf.mxu0
      %v337 = vpop.f32.mrf.mxu0
      %v338 = vadd.f32 0.0, %v337
      %v339 = vpop.f32.mrf.mxu0
      %340 = vmatprep.mubr.bf16.mxu0 0
      %341 = vmatmul.mubr.bf16.gmra.mxu0 %v298
      %v342 = vpop.f32.mrf.mxu0
      %v343 = vadd.f32 0.0, %v342
      %v344 = vpop.f32.mrf.mxu0
      %v345 = vpop.f32.mrf.mxu0
      %v346 = vadd.f32 0.0, %v345
      %v347 = vpop.f32.mrf.mxu0
      %348 = vdwg.mxu0
      %v350 = vlaneseq
      %v351 = vshrl.u32 %v350, 7
      %v352 = vsub.s32 0, %v351
      %v353 = vrot.slane %v276, %v352
      %v355 = vadd.f32 %v353, %v335
      %v356 = vadd.f32 %v353, %v338
      %v357 = vadd.f32 %v353, %v343
      %v358 = vadd.f32 %v353, %v346
      %vm359 = vcmask 392192
      %360 = vst.msk [vmem:[%s261] sm:$0xff] %vm359, %v355
      %361 = vst.msk [vmem:[%s261 + $0x8] sm:$0xff] %vm359, %v356
      %362 = vst.msk [vmem:[%s261 + $0x10] sm:$0xff] %vm359, %v357
      %363 = vst.msk [vmem:[%s261 + $0x18] sm:$0xff] %vm359, %v358
      %v364 = vld [vmem:[%s4] sm:$0x1]
      %v365 = vld [vmem:[%s3] sm:$0xf]
      %v366 = vld [vmem:[%s3 + $0x4] sm:$0xf]
      %v367 = vld [vmem:[%s3 + $0x8] sm:$0xf]
      %v368 = vld [vmem:[%s3 + $0xc] sm:$0xf]
      %v373 = vunpack.c.l.b16 %v365
      %v374 = vunpack.c.l.b16 %v366
      %v375 = vunpack.c.l.b16 %v367
      %v376 = vunpack.c.l.b16 %v368
      %v377 = vpack.c.b16 %v374, %v373
      %v378 = vpack.c.b16 %v376, %v375
      %381 = vmatprep.subr.bf16.mxu0 0
      %382 = vmatpush1.bf16.msra.mxu0 0
      %383 = vmatprep.subr.bf16.mxu0 0
      %384 = vmatpush1.bf16.msra.mxu0 0
      %385 = vmatprep.subr.bf16.mxu0 0
      %386 = vmatpush1.bf16.msra.mxu0 0
      %387 = vmatprep.subr.bf16.mxu0 0
      %388 = vmatpush1.bf16.msra.mxu0 0
      %389 = vmatprep.subr.bf16.mxu0 0
      %390 = vmatpush1.bf16.msra.mxu0 0
      %391 = vmatprep.subr.bf16.mxu0 0
      %392 = vmatpush1.bf16.msra.mxu0 0
      %393 = vmatprep.subr.bf16.mxu0 0
      %394 = vmatpush1.bf16.msra.mxu0 %v378
      %395 = vmatprep.subr.bf16.mxu0 0
      %396 = vmatpush1.bf16.msra.mxu0 %v377
      %397 = vmatprep.subr.bf16.mxu0 0
      %398 = vmatpush2.bf16.msra.mxu0 0
      %399 = vmatprep.subr.bf16.mxu0 0
      %400 = vmatpush2.bf16.msra.mxu0 0
      %401 = vmatprep.subr.bf16.mxu0 0
      %402 = vmatpush2.bf16.msra.mxu0 0
      %403 = vmatprep.subr.bf16.mxu0 0
      %404 = vmatpush2.bf16.msra.mxu0 0
      %405 = vmatprep.subr.bf16.mxu0 0
      %406 = vmatpush2.bf16.msra.mxu0 0
      %407 = vmatprep.subr.bf16.mxu0 0
      %408 = vmatpush2.bf16.msra.mxu0 0
      %409 = vmatprep.subr.bf16.mxu0 0
      %410 = vmatpush2.bf16.msra.mxu0 0
      %411 = vmatprep.subr.bf16.mxu0 0
      %412 = vmatpush2.bf16.msra.mxu0 0
      %413 = vmatprep.mubr.bf16.mxu0 0
      %414 = vmatmul.mubr.bf16.gmra.mxu0 %v295
      %v415 = vpop.f32.mrf.mxu0
      %v416 = vadd.f32 0.0, %v415
      %v417 = vpop.f32.mrf.mxu0
      %v418 = vpop.f32.mrf.mxu0
      %v419 = vadd.f32 0.0, %v418
      %v420 = vpop.f32.mrf.mxu0
      %421 = vmatprep.mubr.bf16.mxu0 0
      %422 = vmatmul.mubr.bf16.gmra.mxu0 %v298
      %v423 = vpop.f32.mrf.mxu0
      %v424 = vadd.f32 0.0, %v423
      %v425 = vpop.f32.mrf.mxu0
      %v426 = vpop.f32.mrf.mxu0
      %v427 = vadd.f32 0.0, %v426
      %v428 = vpop.f32.mrf.mxu0
      %429 = vdwg.mxu0
      %v431 = vlaneseq
      %v432 = vshrl.u32 %v431, 7
      %v433 = vsub.s32 0, %v432
      %v434 = vrot.slane %v364, %v433
      %v436 = vadd.f32 %v434, %v416
      %v437 = vadd.f32 %v434, %v419
      %v438 = vadd.f32 %v434, %v424
      %v439 = vadd.f32 %v434, %v427
      %440 = vst.msk [vmem:[%s267] sm:$0xff] %vm359, %v436
      %441 = vst.msk [vmem:[%s267 + $0x8] sm:$0xff] %vm359, %v437
      %442 = vst.msk [vmem:[%s267 + $0x10] sm:$0xff] %vm359, %v438
      %443 = vst.msk [vmem:[%s267 + $0x18] sm:$0xff] %vm359, %v439
      %s444 = smul.u32 4, %s18
      %p445 = scmp.lt.s32.totalorder %s444, 7
      %s446 = scalar_select %p445, %s444, 7
      %s447 = smul.addr %s446, 8
      %s448 = scalar_lea.vmem %s5, %s447
      %s449 = smul.u32 4, %s18
      %p450 = scmp.lt.s32.totalorder %s449, 7
      %s451 = scalar_select %p450, %s449, 7
      %s452 = smul.addr %s451, 8
      %s453 = scalar_lea.vmem %s6, %s452
      // Predicated region
      $region41: #{sentiment_forward.5} parent=39 // pred_check
        %p454 = pneg %p146
      $region42: #{sentiment_forward.5} parent=39 // pred_check_branch
        %456 = sbr.rel (%p454) target = $region44
      $region43: #{sentiment_forward.5} parent=39 // pred_region
        %s457 = smul.u32 4, %s18
      $region44: #{sentiment_forward.5} parent=39 // pred_fallthru
        _
      // Predicated region
      $region45: #{sentiment_forward.5} parent=39 // pred_check
        %p458 = pneg %p172
      $region46: #{sentiment_forward.5} parent=39 // pred_check_branch
        %460 = sbr.rel (%p458) target = $region48
      $region47: #{sentiment_forward.5} parent=39 // pred_region
        %s461 = smul.u32 4, %s18
      $region48: #{sentiment_forward.5} parent=39 // pred_fallthru
        _
    $region40: #{sentiment_forward.5} parent=5 // pred_fallthru
      _
    %p462 = scmp.le.s32.totalorder 2, %s13
    // Predicated region
    $region49: #{sentiment_forward.5} parent=5 // pred_check
      %p463 = pneg %p462
    $region50: #{sentiment_forward.5} parent=5 // pred_check_branch
      %465 = sbr.rel (%p463) target = $region52
    $region51: #{sentiment_forward.5} parent=5 // pred_region
      %s466 = ssub.s32 %s13, 2
      // Predicated region
      $region53: #{sentiment_forward.5} parent=51 // pred_check
        %p467 = pneg %p152
      $region54: #{sentiment_forward.5} parent=51 // pred_check_branch
        %469 = sbr.rel (%p467) target = $region56
      $region55: #{sentiment_forward.5} parent=51 // pred_region
        %s470 = smul.u32 4, %s19
        %p471 = scmp.lt.s32.totalorder %s470, 7
        %s472 = scalar_select %p471, %s470, 7
        %s473 = smul.addr %s472, 8
        %s474 = scalar_lea.vmem %s5, %s473
      $region56: #{sentiment_forward.5} parent=51 // pred_fallthru
        _
      // Predicated region
      $region57: #{sentiment_forward.5} parent=51 // pred_check
        %p475 = pneg %p178
      $region58: #{sentiment_forward.5} parent=51 // pred_check_branch
        %477 = sbr.rel (%p475) target = $region60
      $region59: #{sentiment_forward.5} parent=51 // pred_region
        %s478 = smul.u32 4, %s19
        %p479 = scmp.lt.s32.totalorder %s478, 7
        %s480 = scalar_select %p479, %s478, 7
        %s481 = smul.addr %s480, 8
        %s482 = scalar_lea.vmem %s6, %s481
      $region60: #{sentiment_forward.5} parent=51 // pred_fallthru
        _
    $region52: #{sentiment_forward.5} parent=5 // pred_fallthru
      _
  $region6: #{sentiment_forward.5} parent=0 // loop_footer
    %s17 = sadd.s32 1, %s13
  $region7: #{sentiment_forward.5} parent=0 // loop_footer_branch
    %12 = sbr.rel target = $region3
  $region8: #{sentiment_forward.5} parent=0 // loop_exit
    _

// kernel: sentiment_forward.7
$region0: #{sentiment_forward.7}
  #allocation0 [shape = 'u32[]', space=smem, size = 0x4, offset = 0x4, fixed_abs, tag = 'smem constant byte address 0x4 - core index']
  #allocation1 [shape = 'u32[144,128]{1,0:T(1,128)}', space=vmem, size = 0x12000, scoped, tag = 'internal scratch']
  %s0 = inlined_call_operand.vmem [shape: f32[64,16], index: 0, kind: input, shape index: {}]
  %s1 = inlined_call_operand.vmem [shape: f32[64,16], index: 1, kind: input, shape index: {}]
  %s2 = inlined_call_operand.vmem [shape: bf16[16,48], index: 2, kind: input, shape index: {}]
  %s3 = inlined_call_operand.vmem [shape: bf16[16,48], index: 3, kind: input, shape index: {}]
  %s4 = inlined_call_operand.vmem [shape: f32[1,48], index: 4, kind: input, shape index: {}]
  %s5 = inlined_call_operand.vmem [shape: bf16[16,48], index: 5, kind: input, shape index: {}]
  %s6 = inlined_call_operand.vmem [shape: bf16[16,48], index: 6, kind: input, shape index: {}]
  %s7 = inlined_call_operand.vmem [shape: f32[1,48], index: 7, kind: input, shape index: {}]
  %s8 = inlined_call_operand.vmem [shape: f32[64,48], index: 8, kind: output, shape index: {0}]
  %s9 = inlined_call_operand.vmem [shape: f32[64,48], index: 9, kind: output, shape index: {1}]
  %10 = xla_tuple %s8, %s9
  %s11 = sld [smem:[#allocation0]]
  $region73: #{sentiment_forward.7} parent=0
    _
  %s13 = ssub.s32 1, %s11
  %s14 = scalar_select 0, %s13, %s11
  loop: start=0, step=1, limit=4
  $region2: #{sentiment_forward.7} parent=0 // loop_pre_header
    _
  $region3: #{sentiment_forward.7} parent=0 // loop_header
    %s16 = sphi 0, %s20
    %p17 = scmp.ge.s32.totalorder %s16, 4
    %s26 = sphi 0, %s28
    %s29 = sphi 0, %s26
    %s30 = sphi 0, %s29
    %s46 = sphi 0, %s30
    %s52 = sphi 0, %s54
    %s55 = sphi 0, %s52
    %s56 = sphi 0, %s55
    %s72 = sphi 0, %s56
    %s76 = sphi 0, %s76
    %s78 = sphi 0, %s76
    %s79 = sphi 0, %s78
    %s93 = sphi 0, %s79
    %s97 = sphi 0, %s97
    %s99 = sphi 0, %s97
    %s100 = sphi 0, %s99
    %s114 = sphi 0, %s100
    %s118 = sphi 0, %s118
    %s120 = sphi 0, %s118
    %s121 = sphi 0, %s120
    %s135 = sphi 0, %s121
    %s139 = sphi 0, %s139
    %s141 = sphi 0, %s139
    %s142 = sphi 0, %s141
    %s156 = sphi 0, %s142
    %s160 = sphi 0, %s160
    %s162 = sphi 0, %s160
    %s163 = sphi 0, %s162
    %s177 = sphi 0, %s163
    %s181 = sphi 0, %s181
    %s183 = sphi 0, %s181
    %s184 = sphi 0, %s183
    %s198 = sphi 0, %s184
    %s204 = sphi 0, %s206
    %s207 = sphi 0, %s204
    %s208 = sphi 0, %s207
    %s224 = sphi 0, %s208
    %s230 = sphi 0, %s232
    %s233 = sphi 0, %s230
    %s234 = sphi 0, %s233
    %s250 = sphi 0, %s234
  $region4: #{sentiment_forward.7} parent=0 // loop_header_branch
    %19 = sbr.rel (%p17) target = $region8
  $region5: #{sentiment_forward.7} parent=0 // loop_body
    %s21 = ssub.s32 %s16, 1
    %s22 = ssub.s32 %s16, 2
    %s23 = sadd.s32 %s16, 1
    %s24 = ssub.s32 %s16, %s23
    %p25 = scmp.eq.s32.totalorder %s24, 0
    %s27 = sadd.s32 %s26, 1
    %s28 = scalar_select %p25, %s26, %s27
    %p31 = pneg %p25
    %p32 = scmp.eq.s32.totalorder %s16, 1
    %p33 = por %p31, %p32
    %p34 = scmp.ne.s32.totalorder %s26, %s29
    %p35 = scmp.eq.s32.totalorder %s16, 0
    %p36 = por %p34, %p35
    %p37 = scmp.ne.s32.totalorder %s26, %s29
    %p38 = scmp.eq.s32.totalorder %s21, 1
    %p39 = por %p37, %p38
    %p40 = scmp.ne.s32.totalorder %s29, %s30
    %p41 = scmp.eq.s32.totalorder %s21, 0
    %p42 = por %p40, %p41
    %p43 = scmp.ne.s32.totalorder %s29, %s30
    %p44 = scmp.eq.s32.totalorder %s22, 1
    %p45 = por %p43, %p44
    %p47 = scmp.ne.s32.totalorder %s30, %s46
    %p48 = scmp.eq.s32.totalorder %s22, 0
    %p49 = por %p47, %p48
    %s50 = ssub.s32 %s16, %s23
    %p51 = scmp.eq.s32.totalorder %s50, 0
    %s53 = sadd.s32 %s52, 1
    %s54 = scalar_select %p51, %s52, %s53
    %p57 = pneg %p51
    %p58 = scmp.eq.s32.totalorder %s16, 1
    %p59 = por %p57, %p58
    %p60 = scmp.ne.s32.totalorder %s52, %s55
    %p61 = scmp.eq.s32.totalorder %s16, 0
    %p62 = por %p60, %p61
    %p63 = scmp.ne.s32.totalorder %s52, %s55
    %p64 = scmp.eq.s32.totalorder %s21, 1
    %p65 = por %p63, %p64
    %p66 = scmp.ne.s32.totalorder %s55, %s56
    %p67 = scmp.eq.s32.totalorder %s21, 0
    %p68 = por %p66, %p67
    %p69 = scmp.ne.s32.totalorder %s55, %s56
    %p70 = scmp.eq.s32.totalorder %s22, 1
    %p71 = por %p69, %p70
    %p73 = scmp.ne.s32.totalorder %s56, %s72
    %p74 = scmp.eq.s32.totalorder %s22, 0
    %p75 = por %p73, %p74
    %s77 = sadd.s32 %s76, 1
    %p80 = scmp.eq.s32.totalorder %s16, 1
    %p81 = scmp.ne.s32.totalorder %s76, %s78
    %p82 = scmp.eq.s32.totalorder %s16, 0
    %p83 = por %p81, %p82
    %p84 = scmp.ne.s32.totalorder %s76, %s78
    %p85 = scmp.eq.s32.totalorder %s21, 1
    %p86 = por %p84, %p85
    %p87 = scmp.ne.s32.totalorder %s78, %s79
    %p88 = scmp.eq.s32.totalorder %s21, 0
    %p89 = por %p87, %p88
    %p90 = scmp.ne.s32.totalorder %s78, %s79
    %p91 = scmp.eq.s32.totalorder %s22, 1
    %p92 = por %p90, %p91
    %p94 = scmp.ne.s32.totalorder %s79, %s93
    %p95 = scmp.eq.s32.totalorder %s22, 0
    %p96 = por %p94, %p95
    %s98 = sadd.s32 %s97, 1
    %p101 = scmp.eq.s32.totalorder %s16, 1
    %p102 = scmp.ne.s32.totalorder %s97, %s99
    %p103 = scmp.eq.s32.totalorder %s16, 0
    %p104 = por %p102, %p103
    %p105 = scmp.ne.s32.totalorder %s97, %s99
    %p106 = scmp.eq.s32.totalorder %s21, 1
    %p107 = por %p105, %p106
    %p108 = scmp.ne.s32.totalorder %s99, %s100
    %p109 = scmp.eq.s32.totalorder %s21, 0
    %p110 = por %p108, %p109
    %p111 = scmp.ne.s32.totalorder %s99, %s100
    %p112 = scmp.eq.s32.totalorder %s22, 1
    %p113 = por %p111, %p112
    %p115 = scmp.ne.s32.totalorder %s100, %s114
    %p116 = scmp.eq.s32.totalorder %s22, 0
    %p117 = por %p115, %p116
    %s119 = sadd.s32 %s118, 1
    %p122 = scmp.eq.s32.totalorder %s16, 1
    %p123 = scmp.ne.s32.totalorder %s118, %s120
    %p124 = scmp.eq.s32.totalorder %s16, 0
    %p125 = por %p123, %p124
    %p126 = scmp.ne.s32.totalorder %s118, %s120
    %p127 = scmp.eq.s32.totalorder %s21, 1
    %p128 = por %p126, %p127
    %p129 = scmp.ne.s32.totalorder %s120, %s121
    %p130 = scmp.eq.s32.totalorder %s21, 0
    %p131 = por %p129, %p130
    %p132 = scmp.ne.s32.totalorder %s120, %s121
    %p133 = scmp.eq.s32.totalorder %s22, 1
    %p134 = por %p132, %p133
    %p136 = scmp.ne.s32.totalorder %s121, %s135
    %p137 = scmp.eq.s32.totalorder %s22, 0
    %p138 = por %p136, %p137
    %s140 = sadd.s32 %s139, 1
    %p143 = scmp.eq.s32.totalorder %s16, 1
    %p144 = scmp.ne.s32.totalorder %s139, %s141
    %p145 = scmp.eq.s32.totalorder %s16, 0
    %p146 = por %p144, %p145
    %p147 = scmp.ne.s32.totalorder %s139, %s141
    %p148 = scmp.eq.s32.totalorder %s21, 1
    %p149 = por %p147, %p148
    %p150 = scmp.ne.s32.totalorder %s141, %s142
    %p151 = scmp.eq.s32.totalorder %s21, 0
    %p152 = por %p150, %p151
    %p153 = scmp.ne.s32.totalorder %s141, %s142
    %p154 = scmp.eq.s32.totalorder %s22, 1
    %p155 = por %p153, %p154
    %p157 = scmp.ne.s32.totalorder %s142, %s156
    %p158 = scmp.eq.s32.totalorder %s22, 0
    %p159 = por %p157, %p158
    %s161 = sadd.s32 %s160, 1
    %p164 = scmp.eq.s32.totalorder %s16, 1
    %p165 = scmp.ne.s32.totalorder %s160, %s162
    %p166 = scmp.eq.s32.totalorder %s16, 0
    %p167 = por %p165, %p166
    %p168 = scmp.ne.s32.totalorder %s160, %s162
    %p169 = scmp.eq.s32.totalorder %s21, 1
    %p170 = por %p168, %p169
    %p171 = scmp.ne.s32.totalorder %s162, %s163
    %p172 = scmp.eq.s32.totalorder %s21, 0
    %p173 = por %p171, %p172
    %p174 = scmp.ne.s32.totalorder %s162, %s163
    %p175 = scmp.eq.s32.totalorder %s22, 1
    %p176 = por %p174, %p175
    %p178 = scmp.ne.s32.totalorder %s163, %s177
    %p179 = scmp.eq.s32.totalorder %s22, 0
    %p180 = por %p178, %p179
    %s182 = sadd.s32 %s181, 1
    %p185 = scmp.eq.s32.totalorder %s16, 1
    %p186 = scmp.ne.s32.totalorder %s181, %s183
    %p187 = scmp.eq.s32.totalorder %s16, 0
    %p188 = por %p186, %p187
    %p189 = scmp.ne.s32.totalorder %s181, %s183
    %p190 = scmp.eq.s32.totalorder %s21, 1
    %p191 = por %p189, %p190
    %p192 = scmp.ne.s32.totalorder %s183, %s184
    %p193 = scmp.eq.s32.totalorder %s21, 0
    %p194 = por %p192, %p193
    %p195 = scmp.ne.s32.totalorder %s183, %s184
    %p196 = scmp.eq.s32.totalorder %s22, 1
    %p197 = por %p195, %p196
    %p199 = scmp.ne.s32.totalorder %s184, %s198
    %p200 = scmp.eq.s32.totalorder %s22, 0
    %p201 = por %p199, %p200
    %s202 = ssub.s32 %s16, %s23
    %p203 = scmp.eq.s32.totalorder %s202, 0
    %s205 = sadd.s32 %s204, 1
    %s206 = scalar_select %p203, %s204, %s205
    %p209 = pneg %p203
    %p210 = scmp.eq.s32.totalorder %s16, 1
    %p211 = por %p209, %p210
    %p212 = scmp.ne.s32.totalorder %s204, %s207
    %p213 = scmp.eq.s32.totalorder %s16, 0
    %p214 = por %p212, %p213
    %p215 = scmp.ne.s32.totalorder %s204, %s207
    %p216 = scmp.eq.s32.totalorder %s21, 1
    %p217 = por %p215, %p216
    %p218 = scmp.ne.s32.totalorder %s207, %s208
    %p219 = scmp.eq.s32.totalorder %s21, 0
    %p220 = por %p218, %p219
    %p221 = scmp.ne.s32.totalorder %s207, %s208
    %p222 = scmp.eq.s32.totalorder %s22, 1
    %p223 = por %p221, %p222
    %p225 = scmp.ne.s32.totalorder %s208, %s224
    %p226 = scmp.eq.s32.totalorder %s22, 0
    %p227 = por %p225, %p226
    %s228 = ssub.s32 %s16, %s23
    %p229 = scmp.eq.s32.totalorder %s228, 0
    %s231 = sadd.s32 %s230, 1
    %s232 = scalar_select %p229, %s230, %s231
    %p235 = pneg %p229
    %p236 = scmp.eq.s32.totalorder %s16, 1
    %p237 = por %p235, %p236
    %p238 = scmp.ne.s32.totalorder %s230, %s233
    %p239 = scmp.eq.s32.totalorder %s16, 0
    %p240 = por %p238, %p239
    %p241 = scmp.ne.s32.totalorder %s230, %s233
    %p242 = scmp.eq.s32.totalorder %s21, 1
    %p243 = por %p241, %p242
    %p244 = scmp.ne.s32.totalorder %s233, %s234
    %p245 = scmp.eq.s32.totalorder %s21, 0
    %p246 = por %p244, %p245
    %p247 = scmp.ne.s32.totalorder %s233, %s234
    %p248 = scmp.eq.s32.totalorder %s22, 1
    %p249 = por %p247, %p248
    %p251 = scmp.ne.s32.totalorder %s234, %s250
    %p252 = scmp.eq.s32.totalorder %s22, 0
    %p253 = por %p251, %p252
    %p254 = scmp.le.s32.totalorder 1, %s16
    %p255 = scmp.lt.s32.totalorder %s16, 3
    %p256 = pnand %p254, %p255
    %p257 = pneg %p256
    // Predicated region
    $region9: #{sentiment_forward.7} parent=5 // pred_check
      _
    $region10: #{sentiment_forward.7} parent=5 // pred_check_branch
      %259 = sbr.rel (%p256) target = $region12
    $region11: #{sentiment_forward.7} parent=5 // pred_region
      %s260 = ssub.s32 %s16, 1
      // Predicated region
      $region13: #{sentiment_forward.7} parent=11 // pred_check
        %p261 = pneg %p89
      $region14: #{sentiment_forward.7} parent=11 // pred_check_branch
        %263 = sbr.rel (%p261) target = $region16
      $region15: #{sentiment_forward.7} parent=11 // pred_region
        _
      $region16: #{sentiment_forward.7} parent=11 // pred_fallthru
        _
      // Predicated region
      $region17: #{sentiment_forward.7} parent=11 // pred_check
        %p264 = pneg %p110
      $region18: #{sentiment_forward.7} parent=11 // pred_check_branch
        %266 = sbr.rel (%p264) target = $region20
      $region19: #{sentiment_forward.7} parent=11 // pred_region
        _
      $region20: #{sentiment_forward.7} parent=11 // pred_fallthru
        _
      // Predicated region
      $region21: #{sentiment_forward.7} parent=11 // pred_check
        %p267 = pneg %p131
      $region22: #{sentiment_forward.7} parent=11 // pred_check_branch
        %269 = sbr.rel (%p267) target = $region24
      $region23: #{sentiment_forward.7} parent=11 // pred_region
        _
      $region24: #{sentiment_forward.7} parent=11 // pred_fallthru
        _
      // Predicated region
      $region25: #{sentiment_forward.7} parent=11 // pred_check
        %p270 = pneg %p152
      $region26: #{sentiment_forward.7} parent=11 // pred_check_branch
        %272 = sbr.rel (%p270) target = $region28
      $region27: #{sentiment_forward.7} parent=11 // pred_region
        _
      $region28: #{sentiment_forward.7} parent=11 // pred_fallthru
        _
      // Predicated region
      $region29: #{sentiment_forward.7} parent=11 // pred_check
        %p273 = pneg %p173
      $region30: #{sentiment_forward.7} parent=11 // pred_check_branch
        %275 = sbr.rel (%p273) target = $region32
      $region31: #{sentiment_forward.7} parent=11 // pred_region
        _
      $region32: #{sentiment_forward.7} parent=11 // pred_fallthru
        _
      // Predicated region
      $region33: #{sentiment_forward.7} parent=11 // pred_check
        %p276 = pneg %p194
      $region34: #{sentiment_forward.7} parent=11 // pred_check_branch
        %278 = sbr.rel (%p276) target = $region36
      $region35: #{sentiment_forward.7} parent=11 // pred_region
        _
      $region36: #{sentiment_forward.7} parent=11 // pred_fallthru
        _
    $region12: #{sentiment_forward.7} parent=5 // pred_fallthru
      _
    %p279 = scmp.lt.s32.totalorder %s16, 2
    // Predicated region
    $region37: #{sentiment_forward.7} parent=5 // pred_check
      %p280 = pneg %p279
    $region38: #{sentiment_forward.7} parent=5 // pred_check_branch
      %282 = sbr.rel (%p280) target = $region40
    $region39: #{sentiment_forward.7} parent=5 // pred_region
      // Predicated region
      $region41: #{sentiment_forward.7} parent=39 // pred_check
        %p283 = pneg %p36
      $region42: #{sentiment_forward.7} parent=39 // pred_check_branch
        %285 = sbr.rel (%p283) target = $region44
      $region43: #{sentiment_forward.7} parent=39 // pred_region
        %s286 = smul.u32 4, %s16
        %p287 = scmp.lt.s32.totalorder %s286, 7
        %s288 = scalar_select %p287, %s286, 7
        %s289 = smul.addr %s288, 8
        %s290 = scalar_lea.vmem %s0, %s289
        %s291 = smul.u32 4, %s16
      $region44: #{sentiment_forward.7} parent=39 // pred_fallthru
        _
      // Predicated region
      $region45: #{sentiment_forward.7} parent=39 // pred_check
        %p292 = pneg %p62
      $region46: #{sentiment_forward.7} parent=39 // pred_check_branch
        %294 = sbr.rel (%p292) target = $region48
      $region47: #{sentiment_forward.7} parent=39 // pred_region
        %s295 = smul.u32 4, %s16
        %p296 = scmp.lt.s32.totalorder %s295, 7
        %s297 = scalar_select %p296, %s295, 7
        %s298 = smul.addr %s297, 8
        %s299 = scalar_lea.vmem %s1, %s298
        %s300 = smul.u32 4, %s16
      $region48: #{sentiment_forward.7} parent=39 // pred_fallthru
        _
    $region40: #{sentiment_forward.7} parent=5 // pred_fallthru
      _
    %p301 = scmp.le.s32.totalorder 1, %s16
    %p302 = scmp.lt.s32.totalorder %s16, 3
    %p303 = pnand %p301, %p302
    %p304 = pneg %p303
    // Predicated region
    $region49: #{sentiment_forward.7} parent=5 // pred_check
      _
    $region50: #{sentiment_forward.7} parent=5 // pred_check_branch
      %306 = sbr.rel (%p303) target = $region52
    $region51: #{sentiment_forward.7} parent=5 // pred_region
      %s307 = ssub.s32 %s16, 1
      %s308 = smul.u32 4, %s21
      %p309 = scmp.lt.s32.totalorder %s308, 7
      %s310 = scalar_select %p309, %s308, 7
      %s311 = smul.addr %s310, 8
      %s312 = scalar_lea.vmem %s0, %s311
      %p313 = pneg %p42
      %p314 = pneg %p39
      %s315 = smul.u32 4, %s21
      %p316 = scmp.lt.s32.totalorder %s315, 7
      %s317 = scalar_select %p316, %s315, 7
      %s318 = smul.addr %s317, 8
      %s319 = scalar_lea.vmem %s1, %s318
      %p320 = pneg %p68
      %p321 = pneg %p65
      %p322 = pneg %p89
      %p323 = pneg %p86
      %p324 = pneg %p110
      %p325 = pneg %p107
      %p326 = pneg %p131
      %p327 = pneg %p128
      %p328 = pneg %p152
      %p329 = pneg %p149
      %p330 = pneg %p173
      %p331 = pneg %p170
      %p332 = pneg %p194
      %p333 = pneg %p191
      %p334 = pneg %p220
      %p335 = pneg %p217
      %s336 = smul.u32 4, %s21
      %p337 = scmp.lt.s32.totalorder %s336, 7
      %s338 = scalar_select %p337, %s336, 7
      %s339 = smul.addr %s338, 8
      %s340 = scalar_lea.vmem %s8, %s339
      %p341 = pneg %p246
      %p342 = pneg %p243
      %s343 = smul.u32 4, %s21
      %p344 = scmp.lt.s32.totalorder %s343, 7
      %s345 = scalar_select %p344, %s343, 7
      %s346 = smul.addr %s345, 8
      %s347 = scalar_lea.vmem %s9, %s346
      %s348 = smul.u32 4, %s21
      %p349 = scmp.lt.s32.totalorder %s348, 7
      %s350 = scalar_select %p349, %s348, 7
      %s351 = smul.addr %s350, 8
      %s352 = scalar_lea.vmem %s0, %s351
      %s353 = smul.u32 4, %s21
      %s354 = smul.u32 4, %s21
      %p355 = scmp.lt.s32.totalorder %s354, 7
      %s356 = scalar_select %p355, %s354, 7
      %s357 = smul.addr %s356, 8
      %s358 = scalar_lea.vmem %s1, %s357
      %s359 = smul.u32 4, %s21
      %s360 = smul.u32 4, %s21
      %p361 = scmp.lt.s32.totalorder %s360, 7
      %s362 = scalar_select %p361, %s360, 7
      %s363 = smul.addr %s362, 8
      %s364 = scalar_lea.vmem %s8, %s363
      %s365 = smul.u32 4, %s21
      %s366 = smul.u32 4, %s21
      %p367 = scmp.lt.s32.totalorder %s366, 7
      %s368 = scalar_select %p367, %s366, 7
      %s369 = smul.addr %s368, 8
      %s370 = scalar_lea.vmem %s9, %s369
      %s371 = smul.u32 4, %s21
      %v373 = vld [vmem:[%s352] sm:$0xff]
      %v374 = vld [vmem:[%s352 + $0x8] sm:$0xff]
      %v375 = vld [vmem:[%s352 + $0x10] sm:$0xff]
      %v376 = vld [vmem:[%s352 + $0x18] sm:$0xff]
      %v377 = vpack.c.bf16 %v374, %v373
      %v378 = vpack.c.bf16 %v376, %v375
      %v379 = vld [vmem:[%s358] sm:$0xff]
      %v380 = vld [vmem:[%s358 + $0x8] sm:$0xff]
      %v381 = vld [vmem:[%s358 + $0x10] sm:$0xff]
      %v382 = vld [vmem:[%s358 + $0x18] sm:$0xff]
      %v383 = vpack.c.bf16 %v380, %v379
      %v384 = vpack.c.bf16 %v382, %v381
      %v385 = vld [vmem:[%s4] sm:$0x1]
      %v386 = vld [vmem:[%s2] sm:$0xf]
      %v387 = vld [vmem:[%s2 + $0x4] sm:$0xf]
      %v390 = vunpack.c.l.b16 %v386
      %v391 = vunpack.c.l.b16 %v387
      %v392 = vpack.c.b16 %v391, %v390
      %vm394 = vcmask 130048
      %v396 = vsel %vm394, %v377, 0
      %v399 = vsel %vm394, %v378, 0
      %401 = vmatprep.subr.bf16.mxu0 0
      %402 = vmatpush1.bf16.msra.mxu0 0
      %403 = vmatprep.subr.bf16.mxu0 0
      %404 = vmatpush1.bf16.msra.mxu0 0
      %405 = vmatprep.subr.bf16.mxu0 0
      %406 = vmatpush1.bf16.msra.mxu0 0
      %407 = vmatprep.subr.bf16.mxu0 0
      %408 = vmatpush1.bf16.msra.mxu0 0
      %409 = vmatprep.subr.bf16.mxu0 0
      %410 = vmatpush1.bf16.msra.mxu0 0
      %411 = vmatprep.subr.bf16.mxu0 0
      %412 = vmatpush1.bf16.msra.mxu0 0
      %413 = vmatprep.subr.bf16.mxu0 0
      %414 = vmatpush1.bf16.msra.mxu0 0
      %415 = vmatprep.subr.bf16.mxu0 0
      %416 = vmatpush1.bf16.msra.mxu0 %v392
      %417 = vmatprep.subr.bf16.mxu0 0
      %418 = vmatpush2.bf16.msra.mxu0 0
      %419 = vmatprep.subr.bf16.mxu0 0
      %420 = vmatpush2.bf16.msra.mxu0 0
      %421 = vmatprep.subr.bf16.mxu0 0
      %422 = vmatpush2.bf16.msra.mxu0 0
      %423 = vmatprep.subr.bf16.mxu0 0
      %424 = vmatpush2.bf16.msra.mxu0 0
      %425 = vmatprep.subr.bf16.mxu0 0
      %426 = vmatpush2.bf16.msra.mxu0 0
      %427 = vmatprep.subr.bf16.mxu0 0
      %428 = vmatpush2.bf16.msra.mxu0 0
      %429 = vmatprep.subr.bf16.mxu0 0
      %430 = vmatpush2.bf16.msra.mxu0 0
      %431 = vmatprep.subr.bf16.mxu0 0
      %432 = vmatpush2.bf16.msra.mxu0 0
      %433 = vmatprep.mubr.bf16.mxu0 0
      %434 = vmatmul.mubr.bf16.gmra.mxu0 %v396
      %v435 = vpop.f32.mrf.mxu0
      %v436 = vadd.f32 0.0, %v435
      %v437 = vpop.f32.mrf.mxu0
      %v438 = vpop.f32.mrf.mxu0
      %v439 = vadd.f32 0.0, %v438
      %v440 = vpop.f32.mrf.mxu0
      %441 = vmatprep.mubr.bf16.mxu0 0
      %442 = vmatmul.mubr.bf16.gmra.mxu0 %v399
      %v443 = vpop.f32.mrf.mxu0
      %v444 = vadd.f32 0.0, %v443
      %v445 = vpop.f32.mrf.mxu0
      %v446 = vpop.f32.mrf.mxu0
      %v447 = vadd.f32 0.0, %v446
      %v448 = vpop.f32.mrf.mxu0
      %449 = vdwg.mxu0
      %v451 = vlaneseq
      %v452 = vshrl.u32 %v451, 7
      %v453 = vsub.s32 0, %v452
      %v454 = vrot.slane %v385, %v453
      %v456 = vadd.f32 %v454, %v436
      %v457 = vadd.f32 %v454, %v439
      %v458 = vadd.f32 %v454, %v444
      %v459 = vadd.f32 %v454, %v447
      %v460 = vld [vmem:[%s3] sm:$0xf]
      %v461 = vld [vmem:[%s3 + $0x4] sm:$0xf]
      %v464 = vunpack.c.l.b16 %v460
      %v465 = vunpack.c.l.b16 %v461
      %v466 = vpack.c.b16 %v465, %v464
      %v469 = vsel %vm394, %v383, 0
      %v472 = vsel %vm394, %v384, 0
      %474 = vmatprep.subr.bf16.mxu0 0
      %475 = vmatpush1.bf16.msra.mxu0 0
      %476 = vmatprep.subr.bf16.mxu0 0
      %477 = vmatpush1.bf16.msra.mxu0 0
      %478 = vmatprep.subr.bf16.mxu0 0
      %479 = vmatpush1.bf16.msra.mxu0 0
      %480 = vmatprep.subr.bf16.mxu0 0
      %481 = vmatpush1.bf16.msra.mxu0 0
      %482 = vmatprep.subr.bf16.mxu0 0
      %483 = vmatpush1.bf16.msra.mxu0 0
      %484 = vmatprep.subr.bf16.mxu0 0
      %485 = vmatpush1.bf16.msra.mxu0 0
      %486 = vmatprep.subr.bf16.mxu0 0
      %487 = vmatpush1.bf16.msra.mxu0 0
      %488 = vmatprep.subr.bf16.mxu0 0
      %489 = vmatpush1.bf16.msra.mxu0 %v466
      %490 = vmatprep.subr.bf16.mxu0 0
      %491 = vmatpush2.bf16.msra.mxu0 0
      %492 = vmatprep.subr.bf16.mxu0 0
      %493 = vmatpush2.bf16.msra.mxu0 0
      %494 = vmatprep.subr.bf16.mxu0 0
      %495 = vmatpush2.bf16.msra.mxu0 0
      %496 = vmatprep.subr.bf16.mxu0 0
      %497 = vmatpush2.bf16.msra.mxu0 0
      %498 = vmatprep.subr.bf16.mxu0 0
      %499 = vmatpush2.bf16.msra.mxu0 0
      %500 = vmatprep.subr.bf16.mxu0 0
      %501 = vmatpush2.bf16.msra.mxu0 0
      %502 = vmatprep.subr.bf16.mxu0 0
      %503 = vmatpush2.bf16.msra.mxu0 0
      %504 = vmatprep.subr.bf16.mxu0 0
      %505 = vmatpush2.bf16.msra.mxu0 0
      %506 = vmatprep.mubr.bf16.mxu0 0
      %507 = vmatmul.mubr.bf16.gmra.mxu0 %v469
      %v508 = vpop.f32.mrf.mxu0
      %v509 = vadd.f32 0.0, %v508
      %v510 = vpop.f32.mrf.mxu0
      %v511 = vpop.f32.mrf.mxu0
      %v512 = vadd.f32 0.0, %v511
      %v513 = vpop.f32.mrf.mxu0
      %514 = vmatprep.mubr.bf16.mxu0 0
      %515 = vmatmul.mubr.bf16.gmra.mxu0 %v472
      %v516 = vpop.f32.mrf.mxu0
      %v517 = vadd.f32 0.0, %v516
      %v518 = vpop.f32.mrf.mxu0
      %v519 = vpop.f32.mrf.mxu0
      %v520 = vadd.f32 0.0, %v519
      %v521 = vpop.f32.mrf.mxu0
      %522 = vdwg.mxu0
      %v523 = vadd.f32 %v456, %v509
      %v524 = vadd.f32 %v457, %v512
      %v525 = vadd.f32 %v458, %v517
      %v526 = vadd.f32 %v459, %v520
      %vm527 = vcmask 392192
      %528 = vst.msk [vmem:[%s364] sm:$0xff] %vm527, %v523
      %529 = vst.msk [vmem:[%s364 + $0x8] sm:$0xff] %vm527, %v524
      %530 = vst.msk [vmem:[%s364 + $0x10] sm:$0xff] %vm527, %v525
      %531 = vst.msk [vmem:[%s364 + $0x18] sm:$0xff] %vm527, %v526
      %v532 = vld [vmem:[%s7] sm:$0x1]
      %v533 = vld [vmem:[%s5] sm:$0xf]
      %v534 = vld [vmem:[%s5 + $0x4] sm:$0xf]
      %v537 = vunpack.c.l.b16 %v533
      %v538 = vunpack.c.l.b16 %v534
      %v539 = vpack.c.b16 %v538, %v537
      %541 = vmatprep.subr.bf16.mxu0 0
      %542 = vmatpush1.bf16.msra.mxu0 0
      %543 = vmatprep.subr.bf16.mxu0 0
      %544 = vmatpush1.bf16.msra.mxu0 0
      %545 = vmatprep.subr.bf16.mxu0 0
      %546 = vmatpush1.bf16.msra.mxu0 0
      %547 = vmatprep.subr.bf16.mxu0 0
      %548 = vmatpush1.bf16.msra.mxu0 0
      %549 = vmatprep.subr.bf16.mxu0 0
      %550 = vmatpush1.bf16.msra.mxu0 0
      %551 = vmatprep.subr.bf16.mxu0 0
      %552 = vmatpush1.bf16.msra.mxu0 0
      %553 = vmatprep.subr.bf16.mxu0 0
      %554 = vmatpush1.bf16.msra.mxu0 0
      %555 = vmatprep.subr.bf16.mxu0 0
      %556 = vmatpush1.bf16.msra.mxu0 %v539
      %557 = vmatprep.subr.bf16.mxu0 0
      %558 = vmatpush2.bf16.msra.mxu0 0
      %559 = vmatprep.subr.bf16.mxu0 0
      %560 = vmatpush2.bf16.msra.mxu0 0
      %561 = vmatprep.subr.bf16.mxu0 0
      %562 = vmatpush2.bf16.msra.mxu0 0
      %563 = vmatprep.subr.bf16.mxu0 0
      %564 = vmatpush2.bf16.msra.mxu0 0
      %565 = vmatprep.subr.bf16.mxu0 0
      %566 = vmatpush2.bf16.msra.mxu0 0
      %567 = vmatprep.subr.bf16.mxu0 0
      %568 = vmatpush2.bf16.msra.mxu0 0
      %569 = vmatprep.subr.bf16.mxu0 0
      %570 = vmatpush2.bf16.msra.mxu0 0
      %571 = vmatprep.subr.bf16.mxu0 0
      %572 = vmatpush2.bf16.msra.mxu0 0
      %573 = vmatprep.mubr.bf16.mxu0 0
      %574 = vmatmul.mubr.bf16.gmra.mxu0 %v396
      %v575 = vpop.f32.mrf.mxu0
      %v576 = vadd.f32 0.0, %v575
      %v577 = vpop.f32.mrf.mxu0
      %v578 = vpop.f32.mrf.mxu0
      %v579 = vadd.f32 0.0, %v578
      %v580 = vpop.f32.mrf.mxu0
      %581 = vmatprep.mubr.bf16.mxu0 0
      %582 = vmatmul.mubr.bf16.gmra.mxu0 %v399
      %v583 = vpop.f32.mrf.mxu0
      %v584 = vadd.f32 0.0, %v583
      %v585 = vpop.f32.mrf.mxu0
      %v586 = vpop.f32.mrf.mxu0
      %v587 = vadd.f32 0.0, %v586
      %v588 = vpop.f32.mrf.mxu0
      %589 = vdwg.mxu0
      %v591 = vlaneseq
      %v592 = vshrl.u32 %v591, 7
      %v593 = vsub.s32 0, %v592
      %v594 = vrot.slane %v532, %v593
      %v596 = vadd.f32 %v594, %v576
      %v597 = vadd.f32 %v594, %v579
      %v598 = vadd.f32 %v594, %v584
      %v599 = vadd.f32 %v594, %v587
      %v600 = vld [vmem:[%s6] sm:$0xf]
      %v601 = vld [vmem:[%s6 + $0x4] sm:$0xf]
      %v604 = vunpack.c.l.b16 %v600
      %v605 = vunpack.c.l.b16 %v601
      %v606 = vpack.c.b16 %v605, %v604
      %608 = vmatprep.subr.bf16.mxu0 0
      %609 = vmatpush1.bf16.msra.mxu0 0
      %610 = vmatprep.subr.bf16.mxu0 0
      %611 = vmatpush1.bf16.msra.mxu0 0
      %612 = vmatprep.subr.bf16.mxu0 0
      %613 = vmatpush1.bf16.msra.mxu0 0
      %614 = vmatprep.subr.bf16.mxu0 0
      %615 = vmatpush1.bf16.msra.mxu0 0
      %616 = vmatprep.subr.bf16.mxu0 0
      %617 = vmatpush1.bf16.msra.mxu0 0
      %618 = vmatprep.subr.bf16.mxu0 0
      %619 = vmatpush1.bf16.msra.mxu0 0
      %620 = vmatprep.subr.bf16.mxu0 0
      %621 = vmatpush1.bf16.msra.mxu0 0
      %622 = vmatprep.subr.bf16.mxu0 0
      %623 = vmatpush1.bf16.msra.mxu0 %v606
      %624 = vmatprep.subr.bf16.mxu0 0
      %625 = vmatpush2.bf16.msra.mxu0 0
      %626 = vmatprep.subr.bf16.mxu0 0
      %627 = vmatpush2.bf16.msra.mxu0 0
      %628 = vmatprep.subr.bf16.mxu0 0
      %629 = vmatpush2.bf16.msra.mxu0 0
      %630 = vmatprep.subr.bf16.mxu0 0
      %631 = vmatpush2.bf16.msra.mxu0 0
      %632 = vmatprep.subr.bf16.mxu0 0
      %633 = vmatpush2.bf16.msra.mxu0 0
      %634 = vmatprep.subr.bf16.mxu0 0
      %635 = vmatpush2.bf16.msra.mxu0 0
      %636 = vmatprep.subr.bf16.mxu0 0
      %637 = vmatpush2.bf16.msra.mxu0 0
      %638 = vmatprep.subr.bf16.mxu0 0
      %639 = vmatpush2.bf16.msra.mxu0 0
      %640 = vmatprep.mubr.bf16.mxu0 0
      %641 = vmatmul.mubr.bf16.gmra.mxu0 %v469
      %v642 = vpop.f32.mrf.mxu0
      %v643 = vadd.f32 0.0, %v642
      %v644 = vpop.f32.mrf.mxu0
      %v645 = vpop.f32.mrf.mxu0
      %v646 = vadd.f32 0.0, %v645
      %v647 = vpop.f32.mrf.mxu0
      %648 = vmatprep.mubr.bf16.mxu0 0
      %649 = vmatmul.mubr.bf16.gmra.mxu0 %v472
      %v650 = vpop.f32.mrf.mxu0
      %v651 = vadd.f32 0.0, %v650
      %v652 = vpop.f32.mrf.mxu0
      %v653 = vpop.f32.mrf.mxu0
      %v654 = vadd.f32 0.0, %v653
      %v655 = vpop.f32.mrf.mxu0
      %656 = vdwg.mxu0
      %v657 = vadd.f32 %v596, %v643
      %v658 = vadd.f32 %v597, %v646
      %v659 = vadd.f32 %v598, %v651
      %v660 = vadd.f32 %v599, %v654
      %661 = vst.msk [vmem:[%s370] sm:$0xff] %vm527, %v657
      %662 = vst.msk [vmem:[%s370 + $0x8] sm:$0xff] %vm527, %v658
      %663 = vst.msk [vmem:[%s370 + $0x10] sm:$0xff] %vm527, %v659
      %664 = vst.msk [vmem:[%s370 + $0x18] sm:$0xff] %vm527, %v660
      %s665 = smul.u32 4, %s21
      %p666 = scmp.lt.s32.totalorder %s665, 7
      %s667 = scalar_select %p666, %s665, 7
      %s668 = smul.addr %s667, 8
      %s669 = scalar_lea.vmem %s8, %s668
      %s670 = smul.u32 4, %s21
      %p671 = scmp.lt.s32.totalorder %s670, 7
      %s672 = scalar_select %p671, %s670, 7
      %s673 = smul.addr %s672, 8
      %s674 = scalar_lea.vmem %s9, %s673
      // Predicated region
      $region53: #{sentiment_forward.7} parent=51 // pred_check
        %p675 = pneg %p217
      $region54: #{sentiment_forward.7} parent=51 // pred_check_branch
        %677 = sbr.rel (%p675) target = $region56
      $region55: #{sentiment_forward.7} parent=51 // pred_region
        %s678 = smul.u32 4, %s21
      $region56: #{sentiment_forward.7} parent=51 // pred_fallthru
        _
      // Predicated region
      $region57: #{sentiment_forward.7} parent=51 // pred_check
        %p679 = pneg %p243
      $region58: #{sentiment_forward.7} parent=51 // pred_check_branch
        %681 = sbr.rel (%p679) target = $region60
      $region59: #{sentiment_forward.7} parent=51 // pred_region
        %s682 = smul.u32 4, %s21
      $region60: #{sentiment_forward.7} parent=51 // pred_fallthru
        _
    $region52: #{sentiment_forward.7} parent=5 // pred_fallthru
      _
    %p683 = scmp.le.s32.totalorder 2, %s16
    // Predicated region
    $region61: #{sentiment_forward.7} parent=5 // pred_check
      %p684 = pneg %p683
    $region62: #{sentiment_forward.7} parent=5 // pred_check_branch
      %686 = sbr.rel (%p684) target = $region64
    $region63: #{sentiment_forward.7} parent=5 // pred_region
      %s687 = ssub.s32 %s16, 2
      // Predicated region
      $region65: #{sentiment_forward.7} parent=63 // pred_check
        %p688 = pneg %p223
      $region66: #{sentiment_forward.7} parent=63 // pred_check_branch
        %690 = sbr.rel (%p688) target = $region68
      $region67: #{sentiment_forward.7} parent=63 // pred_region
        %s691 = smul.u32 4, %s22
        %p692 = scmp.lt.s32.totalorder %s691, 7
        %s693 = scalar_select %p692, %s691, 7
        %s694 = smul.addr %s693, 8
        %s695 = scalar_lea.vmem %s8, %s694
      $region68: #{sentiment_forward.7} parent=63 // pred_fallthru
        _
      // Predicated region
      $region69: #{sentiment_forward.7} parent=63 // pred_check
        %p696 = pneg %p249
      $region70: #{sentiment_forward.7} parent=63 // pred_check_branch
        %698 = sbr.rel (%p696) target = $region72
      $region71: #{sentiment_forward.7} parent=63 // pred_region
        %s699 = smul.u32 4, %s22
        %p700 = scmp.lt.s32.totalorder %s699, 7
        %s701 = scalar_select %p700, %s699, 7
        %s702 = smul.addr %s701, 8
        %s703 = scalar_lea.vmem %s9, %s702
      $region72: #{sentiment_forward.7} parent=63 // pred_fallthru
        _
    $region64: #{sentiment_forward.7} parent=5 // pred_fallthru
      _
  $region6: #{sentiment_forward.7} parent=0 // loop_footer
    %s20 = sadd.s32 1, %s16
  $region7: #{sentiment_forward.7} parent=0 // loop_footer_branch
    %15 = sbr.rel target = $region3
  $region8: #{sentiment_forward.7} parent=0 // loop_exit
    _

// kernel: sentiment_forward.6
$region0: #{sentiment_forward.6}
  #allocation0 [shape = 'u32[]', space=smem, size = 0x4, offset = 0x4, fixed_abs, tag = 'smem constant byte address 0x4 - core index']
  #allocation1 [shape = 'u32[144,128]{1,0:T(1,128)}', space=vmem, size = 0x12000, scoped, tag = 'internal scratch']
  #allocation2 [shape = 'f32[8,32]{1,0:T(8,128)}', space=vmem, size = 0x1000, scoped, tag = 'scratch operand']
  %s0 = inlined_call_operand.vmem [shape: f32[8,8,48], index: 0, kind: input, shape index: {}]
  %s1 = inlined_call_operand.vmem [shape: f32[8,8,48], index: 1, kind: input, shape index: {}]
  %s2 = inlined_call_operand.vmem [shape: bf16[32,96], index: 2, kind: input, shape index: {}]
  %s3 = inlined_call_operand.vmem [shape: f32[1,32], index: 3, kind: input, shape index: {}]
  %s4 = inlined_call_operand.vmem [shape: f32[8,8,16], index: 4, kind: output, shape index: {0}]
  %s5 = inlined_call_operand.vmem [shape: f32[8,8,16], index: 5, kind: output, shape index: {1}]
  %6 = xla_tuple %s4, %s5
  %s7 = sld [smem:[#allocation0]]
  $region61: #{sentiment_forward.6} parent=0
    _
  %s9 = ssub.s32 1, %s7
  %s10 = scalar_select 0, %s9, %s7
  loop: start=0, step=1, limit=4
  $region2: #{sentiment_forward.6} parent=0 // loop_pre_header
    _
  $region3: #{sentiment_forward.6} parent=0 // loop_header
    %s12 = sphi 0, %s16
    %p13 = scmp.ge.s32.totalorder %s12, 4
    %s22 = sphi 0, %s24
    %s25 = sphi 0, %s22
    %s26 = sphi 0, %s25
    %s42 = sphi 0, %s26
    %s50 = sphi 0, %s52
    %s53 = sphi 0, %s50
    %s54 = sphi 0, %s53
    %s70 = sphi 0, %s54
    %s74 = sphi 0, %s74
    %s76 = sphi 0, %s74
    %s77 = sphi 0, %s76
    %s91 = sphi 0, %s77
    %s95 = sphi 0, %s95
    %s97 = sphi 0, %s95
    %s98 = sphi 0, %s97
    %s112 = sphi 0, %s98
    %s118 = sphi 0, %s120
    %s121 = sphi 0, %s118
    %s122 = sphi 0, %s121
    %s138 = sphi 0, %s122
    %s146 = sphi 0, %s148
    %s149 = sphi 0, %s146
    %s150 = sphi 0, %s149
    %s166 = sphi 0, %s150
  $region4: #{sentiment_forward.6} parent=0 // loop_header_branch
    %15 = sbr.rel (%p13) target = $region8
  $region5: #{sentiment_forward.6} parent=0 // loop_body
    %s17 = ssub.s32 %s12, 1
    %s18 = ssub.s32 %s12, 2
    %s19 = sadd.s32 %s12, 1
    %s20 = ssub.s32 %s12, %s19
    %p21 = scmp.eq.s32.totalorder %s20, 0
    %s23 = sadd.s32 %s22, 1
    %s24 = scalar_select %p21, %s22, %s23
    %p27 = pneg %p21
    %p28 = scmp.eq.s32.totalorder %s12, 1
    %p29 = por %p27, %p28
    %p30 = scmp.ne.s32.totalorder %s22, %s25
    %p31 = scmp.eq.s32.totalorder %s12, 0
    %p32 = por %p30, %p31
    %p33 = scmp.ne.s32.totalorder %s22, %s25
    %p34 = scmp.eq.s32.totalorder %s17, 1
    %p35 = por %p33, %p34
    %p36 = scmp.ne.s32.totalorder %s25, %s26
    %p37 = scmp.eq.s32.totalorder %s17, 0
    %p38 = por %p36, %p37
    %p39 = scmp.ne.s32.totalorder %s25, %s26
    %p40 = scmp.eq.s32.totalorder %s18, 1
    %p41 = por %p39, %p40
    %p43 = scmp.ne.s32.totalorder %s26, %s42
    %p44 = scmp.eq.s32.totalorder %s18, 0
    %p45 = por %p43, %p44
    %s46 = ssub.s32 1, %s12
    %s47 = ssub.s32 1, %s19
    %s48 = ssub.s32 %s46, %s47
    %p49 = scmp.eq.s32.totalorder %s48, 0
    %s51 = sadd.s32 %s50, 1
    %s52 = scalar_select %p49, %s50, %s51
    %p55 = pneg %p49
    %p56 = scmp.eq.s32.totalorder %s12, 1
    %p57 = por %p55, %p56
    %p58 = scmp.ne.s32.totalorder %s50, %s53
    %p59 = scmp.eq.s32.totalorder %s12, 0
    %p60 = por %p58, %p59
    %p61 = scmp.ne.s32.totalorder %s50, %s53
    %p62 = scmp.eq.s32.totalorder %s17, 1
    %p63 = por %p61, %p62
    %p64 = scmp.ne.s32.totalorder %s53, %s54
    %p65 = scmp.eq.s32.totalorder %s17, 0
    %p66 = por %p64, %p65
    %p67 = scmp.ne.s32.totalorder %s53, %s54
    %p68 = scmp.eq.s32.totalorder %s18, 1
    %p69 = por %p67, %p68
    %p71 = scmp.ne.s32.totalorder %s54, %s70
    %p72 = scmp.eq.s32.totalorder %s18, 0
    %p73 = por %p71, %p72
    %s75 = sadd.s32 %s74, 1
    %p78 = scmp.eq.s32.totalorder %s12, 1
    %p79 = scmp.ne.s32.totalorder %s74, %s76
    %p80 = scmp.eq.s32.totalorder %s12, 0
    %p81 = por %p79, %p80
    %p82 = scmp.ne.s32.totalorder %s74, %s76
    %p83 = scmp.eq.s32.totalorder %s17, 1
    %p84 = por %p82, %p83
    %p85 = scmp.ne.s32.totalorder %s76, %s77
    %p86 = scmp.eq.s32.totalorder %s17, 0
    %p87 = por %p85, %p86
    %p88 = scmp.ne.s32.totalorder %s76, %s77
    %p89 = scmp.eq.s32.totalorder %s18, 1
    %p90 = por %p88, %p89
    %p92 = scmp.ne.s32.totalorder %s77, %s91
    %p93 = scmp.eq.s32.totalorder %s18, 0
    %p94 = por %p92, %p93
    %s96 = sadd.s32 %s95, 1
    %p99 = scmp.eq.s32.totalorder %s12, 1
    %p100 = scmp.ne.s32.totalorder %s95, %s97
    %p101 = scmp.eq.s32.totalorder %s12, 0
    %p102 = por %p100, %p101
    %p103 = scmp.ne.s32.totalorder %s95, %s97
    %p104 = scmp.eq.s32.totalorder %s17, 1
    %p105 = por %p103, %p104
    %p106 = scmp.ne.s32.totalorder %s97, %s98
    %p107 = scmp.eq.s32.totalorder %s17, 0
    %p108 = por %p106, %p107
    %p109 = scmp.ne.s32.totalorder %s97, %s98
    %p110 = scmp.eq.s32.totalorder %s18, 1
    %p111 = por %p109, %p110
    %p113 = scmp.ne.s32.totalorder %s98, %s112
    %p114 = scmp.eq.s32.totalorder %s18, 0
    %p115 = por %p113, %p114
    %s116 = ssub.s32 %s12, %s19
    %p117 = scmp.eq.s32.totalorder %s116, 0
    %s119 = sadd.s32 %s118, 1
    %s120 = scalar_select %p117, %s118, %s119
    %p123 = pneg %p117
    %p124 = scmp.eq.s32.totalorder %s12, 1
    %p125 = por %p123, %p124
    %p126 = scmp.ne.s32.totalorder %s118, %s121
    %p127 = scmp.eq.s32.totalorder %s12, 0
    %p128 = por %p126, %p127
    %p129 = scmp.ne.s32.totalorder %s118, %s121
    %p130 = scmp.eq.s32.totalorder %s17, 1
    %p131 = por %p129, %p130
    %p132 = scmp.ne.s32.totalorder %s121, %s122
    %p133 = scmp.eq.s32.totalorder %s17, 0
    %p134 = por %p132, %p133
    %p135 = scmp.ne.s32.totalorder %s121, %s122
    %p136 = scmp.eq.s32.totalorder %s18, 1
    %p137 = por %p135, %p136
    %p139 = scmp.ne.s32.totalorder %s122, %s138
    %p140 = scmp.eq.s32.totalorder %s18, 0
    %p141 = por %p139, %p140
    %s142 = ssub.s32 1, %s12
    %s143 = ssub.s32 1, %s19
    %s144 = ssub.s32 %s142, %s143
    %p145 = scmp.eq.s32.totalorder %s144, 0
    %s147 = sadd.s32 %s146, 1
    %s148 = scalar_select %p145, %s146, %s147
    %p151 = pneg %p145
    %p152 = scmp.eq.s32.totalorder %s12, 1
    %p153 = por %p151, %p152
    %p154 = scmp.ne.s32.totalorder %s146, %s149
    %p155 = scmp.eq.s32.totalorder %s12, 0
    %p156 = por %p154, %p155
    %p157 = scmp.ne.s32.totalorder %s146, %s149
    %p158 = scmp.eq.s32.totalorder %s17, 1
    %p159 = por %p157, %p158
    %p160 = scmp.ne.s32.totalorder %s149, %s150
    %p161 = scmp.eq.s32.totalorder %s17, 0
    %p162 = por %p160, %p161
    %p163 = scmp.ne.s32.totalorder %s149, %s150
    %p164 = scmp.eq.s32.totalorder %s18, 1
    %p165 = por %p163, %p164
    %p167 = scmp.ne.s32.totalorder %s150, %s166
    %p168 = scmp.eq.s32.totalorder %s18, 0
    %p169 = por %p167, %p168
    %p170 = scmp.le.s32.totalorder 1, %s12
    %p171 = scmp.lt.s32.totalorder %s12, 3
    %p172 = pnand %p170, %p171
    %p173 = pneg %p172
    // Predicated region
    $region9: #{sentiment_forward.6} parent=5 // pred_check
      _
    $region10: #{sentiment_forward.6} parent=5 // pred_check_branch
      %175 = sbr.rel (%p172) target = $region12
    $region11: #{sentiment_forward.6} parent=5 // pred_region
      %s176 = ssub.s32 %s12, 1
      // Predicated region
      $region13: #{sentiment_forward.6} parent=11 // pred_check
        %p177 = pneg %p87
      $region14: #{sentiment_forward.6} parent=11 // pred_check_branch
        %179 = sbr.rel (%p177) target = $region16
      $region15: #{sentiment_forward.6} parent=11 // pred_region
        _
      $region16: #{sentiment_forward.6} parent=11 // pred_fallthru
        _
      // Predicated region
      $region17: #{sentiment_forward.6} parent=11 // pred_check
        %p180 = pneg %p108
      $region18: #{sentiment_forward.6} parent=11 // pred_check_branch
        %182 = sbr.rel (%p180) target = $region20
      $region19: #{sentiment_forward.6} parent=11 // pred_region
        _
      $region20: #{sentiment_forward.6} parent=11 // pred_fallthru
        _
    $region12: #{sentiment_forward.6} parent=5 // pred_fallthru
      _
    %p183 = scmp.lt.s32.totalorder %s12, 2
    // Predicated region
    $region21: #{sentiment_forward.6} parent=5 // pred_check
      %p184 = pneg %p183
    $region22: #{sentiment_forward.6} parent=5 // pred_check_branch
      %186 = sbr.rel (%p184) target = $region24
    $region23: #{sentiment_forward.6} parent=5 // pred_region
      // Predicated region
      $region25: #{sentiment_forward.6} parent=23 // pred_check
        %p187 = pneg %p32
      $region26: #{sentiment_forward.6} parent=23 // pred_check_branch
        %189 = sbr.rel (%p187) target = $region28
      $region27: #{sentiment_forward.6} parent=23 // pred_region
        %s190 = smul.u32 4, %s12
        %p191 = scmp.lt.s32.totalorder %s190, 7
        %s192 = scalar_select %p191, %s190, 7
        %s193 = smul.addr %s192, 8
        %s194 = scalar_lea.vmem %s0, %s193
        %s195 = smul.u32 4, %s12
      $region28: #{sentiment_forward.6} parent=23 // pred_fallthru
        _
      // Predicated region
      $region29: #{sentiment_forward.6} parent=23 // pred_check
        %p196 = pneg %p60
      $region30: #{sentiment_forward.6} parent=23 // pred_check_branch
        %198 = sbr.rel (%p196) target = $region32
      $region31: #{sentiment_forward.6} parent=23 // pred_region
        %s199 = ssub.s32 1, %s12
        %s200 = smul.u32 4, %s199
        %p201 = scmp.lt.s32.totalorder %s200, 7
        %s202 = scalar_select %p201, %s200, 7
        %s203 = smul.addr %s202, 8
        %s204 = scalar_lea.vmem %s1, %s203
        %s205 = ssub.s32 1, %s12
        %s206 = smul.u32 4, %s205
      $region32: #{sentiment_forward.6} parent=23 // pred_fallthru
        _
    $region24: #{sentiment_forward.6} parent=5 // pred_fallthru
      _
    %p207 = scmp.le.s32.totalorder 1, %s12
    %p208 = scmp.lt.s32.totalorder %s12, 3
    %p209 = pnand %p207, %p208
    %p210 = pneg %p209
    // Predicated region
    $region33: #{sentiment_forward.6} parent=5 // pred_check
      _
    $region34: #{sentiment_forward.6} parent=5 // pred_check_branch
      %212 = sbr.rel (%p209) target = $region36
    $region35: #{sentiment_forward.6} parent=5 // pred_region
      %s213 = ssub.s32 %s12, 1
      %s214 = smul.u32 4, %s17
      %p215 = scmp.lt.s32.totalorder %s214, 7
      %s216 = scalar_select %p215, %s214, 7
      %s217 = smul.addr %s216, 8
      %s218 = scalar_lea.vmem %s0, %s217
      %p219 = pneg %p38
      %p220 = pneg %p35
      %s221 = ssub.s32 1, %s17
      %s222 = smul.u32 4, %s221
      %p223 = scmp.lt.s32.totalorder %s222, 7
      %s224 = scalar_select %p223, %s222, 7
      %s225 = smul.addr %s224, 8
      %s226 = scalar_lea.vmem %s1, %s225
      %p227 = pneg %p66
      %p228 = pneg %p63
      %p229 = pneg %p87
      %p230 = pneg %p84
      %p231 = pneg %p108
      %p232 = pneg %p105
      %p233 = pneg %p134
      %p234 = pneg %p131
      %s235 = smul.u32 4, %s17
      %p236 = scmp.lt.s32.totalorder %s235, 7
      %s237 = scalar_select %p236, %s235, 7
      %s238 = smul.addr %s237, 8
      %s239 = scalar_lea.vmem %s4, %s238
      %p240 = pneg %p162
      %p241 = pneg %p159
      %s242 = ssub.s32 1, %s17
      %s243 = smul.u32 4, %s242
      %p244 = scmp.lt.s32.totalorder %s243, 7
      %s245 = scalar_select %p244, %s243, 7
      %s246 = smul.addr %s245, 8
      %s247 = scalar_lea.vmem %s5, %s246
      %s248 = smul.u32 4, %s17
      %p249 = scmp.lt.s32.totalorder %s248, 7
      %s250 = scalar_select %p249, %s248, 7
      %s251 = smul.addr %s250, 8
      %s252 = scalar_lea.vmem %s0, %s251
      %s253 = smul.u32 4, %s17
      %s254 = ssub.s32 1, %s17
      %s255 = smul.u32 4, %s254
      %p256 = scmp.lt.s32.totalorder %s255, 7
      %s257 = scalar_select %p256, %s255, 7
      %s258 = smul.addr %s257, 8
      %s259 = scalar_lea.vmem %s1, %s258
      %s260 = ssub.s32 1, %s17
      %s261 = smul.u32 4, %s260
      %s262 = smul.u32 4, %s17
      %p263 = scmp.lt.s32.totalorder %s262, 7
      %s264 = scalar_select %p263, %s262, 7
      %s265 = smul.addr %s264, 8
      %s266 = scalar_lea.vmem %s4, %s265
      %s267 = smul.u32 4, %s17
      %s268 = ssub.s32 1, %s17
      %s269 = smul.u32 4, %s268
      %p270 = scmp.lt.s32.totalorder %s269, 7
      %s271 = scalar_select %p270, %s269, 7
      %s272 = smul.addr %s271, 8
      %s273 = scalar_lea.vmem %s5, %s272
      %s274 = ssub.s32 1, %s17
      %s275 = smul.u32 4, %s274
      %p277 = scmp.eq.s32.totalorder %s17, 0
      // Predicated region
      $region37: #{sentiment_forward.6} parent=35 // pred_check
        %p278 = pneg %p277
      $region38: #{sentiment_forward.6} parent=35 // pred_check_branch
        %280 = sbr.rel (%p278) target = $region40
      $region39: #{sentiment_forward.6} parent=35 // pred_region
        %vm281 = vcmask 261120
        %282 = vst.msk [vmem:[#allocation2] sm:$0xff] %vm281, 0.0
      $region40: #{sentiment_forward.6} parent=35 // pred_fallthru
        _
      %v283 = vld [vmem:[%s2] sm:$0xf]
      %v284 = vld [vmem:[%s2 + $0x4] sm:$0xf]
      %v285 = vld [vmem:[%s2 + $0x8] sm:$0xf]
      %v286 = vld [vmem:[%s2 + $0xc] sm:$0xf]
      %v287 = vld [vmem:[%s3] sm:$0x1]
      %v288 = vld [vmem:[#allocation2] sm:$0xff]
      %v289 = vpack.c.bf16 %v288, %v288
      %v294 = vunpack.c.l.b16 %v283
      %v295 = vunpack.c.l.b16 %v284
      %v296 = vunpack.c.l.b16 %v285
      %v297 = vunpack.c.l.b16 %v286
      %v298 = vpack.c.b16 %v295, %v294
      %v299 = vpack.c.b16 %v297, %v296
      %vm302 = vcmask 261120
      %v304 = vsel %vm302, %v289, 0
      %306 = vmatprep.subr.bf16.mxu0 0
      %307 = vmatpush1.bf16.msra.mxu0 0
      %308 = vmatprep.subr.bf16.mxu0 0
      %309 = vmatpush1.bf16.msra.mxu0 0
      %310 = vmatprep.subr.bf16.mxu0 0
      %311 = vmatpush1.bf16.msra.mxu0 0
      %312 = vmatprep.subr.bf16.mxu0 0
      %313 = vmatpush1.bf16.msra.mxu0 0
      %314 = vmatprep.subr.bf16.mxu0 0
      %315 = vmatpush1.bf16.msra.mxu0 0
      %316 = vmatprep.subr.bf16.mxu0 0
      %317 = vmatpush1.bf16.msra.mxu0 0
      %318 = vmatprep.subr.bf16.mxu0 0
      %319 = vmatpush1.bf16.msra.mxu0 %v299
      %320 = vmatprep.subr.bf16.mxu0 0
      %321 = vmatpush1.bf16.msra.mxu0 %v298
      %322 = vmatprep.subr.bf16.mxu0 0
      %323 = vmatpush2.bf16.msra.mxu0 0
      %324 = vmatprep.subr.bf16.mxu0 0
      %325 = vmatpush2.bf16.msra.mxu0 0
      %326 = vmatprep.subr.bf16.mxu0 0
      %327 = vmatpush2.bf16.msra.mxu0 0
      %328 = vmatprep.subr.bf16.mxu0 0
      %329 = vmatpush2.bf16.msra.mxu0 0
      %330 = vmatprep.subr.bf16.mxu0 0
      %331 = vmatpush2.bf16.msra.mxu0 0
      %332 = vmatprep.subr.bf16.mxu0 0
      %333 = vmatpush2.bf16.msra.mxu0 0
      %334 = vmatprep.subr.bf16.mxu0 0
      %335 = vmatpush2.bf16.msra.mxu0 0
      %336 = vmatprep.subr.bf16.mxu0 0
      %337 = vmatpush2.bf16.msra.mxu0 0
      %338 = vmatprep.mubr.bf16.mxu0 0
      %339 = vmatmul.mubr.bf16.gmra.mxu0 %v304
      %v340 = vpop.f32.mrf.mxu0
      %v341 = vadd.f32 0.0, %v340
      %v342 = vpop.f32.mrf.mxu0
      %v343 = vpop.f32.mrf.mxu0
      %v344 = vpop.f32.mrf.mxu0
      %345 = vdwg.mxu0
      %v346 = vld [vmem:[%s252] sm:$0xff]
      %v347 = vadd.f32 %v346, %v341
      %v348 = vxor.u32 %v347, 2147483648
      %v349 = vmul.f32 %v348, 1.442695
      %v350 = vpow.pop %v349
      %v351 = vadd.f32 %v350, 1.0
      %v352 = vrcp.pop %v351
      %v353 = vmul.f32 1.0, %v352
      %v355 = vlaneseq
      %v356 = vshrl.u32 %v355, 7
      %v357 = vsub.s32 0, %v356
      %v358 = vrot.slane %v287, %v357
      %359 = vrot.lane.b32.xlu0 %v358, 32
      %v360 = vpop.permute.xlu0 %359
      %v362 = vadd.f32 %v341, %v360
      %364 = vrot.lane.b32.xlu0 %v362, 96
      %v365 = vpop.permute.xlu0 %364
      %v367 = vmul.f32 %v353, %v365
      %369 = vrot.lane.b32.xlu0 %v367, 32
      %v370 = vpop.permute.xlu0 %369
      %v372 = vadd.f32 %v346, %v370
      %v373 = vtanh.pop %v372
      %v374 = vsub.f32 1.0, %v353
      %376 = vrot.lane.b32.xlu0 %v373, 112
      %v377 = vpop.permute.xlu0 %376
      %v379 = vmul.f32 %v374, %v377
      %381 = vrot.lane.b32.xlu0 %v288, 16
      %v382 = vpop.permute.xlu0 %381
      %v384 = vmul.f32 %v353, %v382
      %v385 = vadd.f32 %v379, %v384
      %s386 = scalar_lea.vmem %s259, 24
      %v387 = vld [vmem:[%s386] sm:$0xff]
      %389 = vrot.lane.b32.xlu0 %v341, 80
      %v390 = vpop.permute.xlu0 %389
      %v392 = vadd.f32 %v387, %v390
      %v393 = vxor.u32 %v392, 2147483648
      %v394 = vmul.f32 %v393, 1.442695
      %v395 = vpow.pop %v394
      %v396 = vadd.f32 %v395, 1.0
      %v397 = vrcp.pop %v396
      %v398 = vmul.f32 1.0, %v397
      %399 = vrot.lane.b32.xlu0 %v358, 64
      %v400 = vpop.permute.xlu0 %399
      %v402 = vadd.f32 %v341, %v400
      %404 = vrot.lane.b32.xlu0 %v402, 48
      %v405 = vpop.permute.xlu0 %404
      %v407 = vmul.f32 %v398, %v405
      %409 = vrot.lane.b32.xlu0 %v407, 32
      %v410 = vpop.permute.xlu0 %409
      %v412 = vadd.f32 %v387, %v410
      %v413 = vtanh.pop %v412
      %v414 = vsub.f32 1.0, %v398
      %416 = vrot.lane.b32.xlu0 %v413, 112
      %v417 = vpop.permute.xlu0 %416
      %v419 = vmul.f32 %v414, %v417
      %v420 = vmul.f32 %v398, %v288
      %v421 = vadd.f32 %v419, %v420
      %423 = vrot.lane.b32.xlu0 %v385, 112
      %v424 = vpop.permute.xlu0 %423
      %vm426 = vcmask 130048
      %427 = vst.msk [vmem:[%s266] sm:$0xff] %vm426, %v424
      %429 = vrot.lane.b32.xlu0 %v421, 112
      %v430 = vpop.permute.xlu0 %429
      %s432 = scalar_lea.vmem %s273, 24
      %433 = vst.msk [vmem:[%s432] sm:$0xff] %vm426, %v430
      %434 = vst.msk [vmem:[#allocation2] sm:$0xff] %vm426, %v424
      %vm435 = vcmask 261248
      %436 = vst.msk [vmem:[#allocation2] sm:$0xff] %vm435, %v421
      %v437 = vld [vmem:[#allocation2] sm:$0xff]
      %v438 = vpack.c.bf16 %v437, %v437
      %v440 = vsel %vm302, %v438, 0
      %442 = vmatprep.subr.bf16.mxu0 0
      %443 = vmatpush1.bf16.msra.mxu0 0
      %444 = vmatprep.subr.bf16.mxu0 0
      %445 = vmatpush1.bf16.msra.mxu0 0
      %446 = vmatprep.subr.bf16.mxu0 0
      %447 = vmatpush1.bf16.msra.mxu0 0
      %448 = vmatprep.subr.bf16.mxu0 0
      %449 = vmatpush1.bf16.msra.mxu0 0
      %450 = vmatprep.subr.bf16.mxu0 0
      %451 = vmatpush1.bf16.msra.mxu0 0
      %452 = vmatprep.subr.bf16.mxu0 0
      %453 = vmatpush1.bf16.msra.mxu0 0
      %454 = vmatprep.subr.bf16.mxu0 0
      %455 = vmatpush1.bf16.msra.mxu0 %v299
      %456 = vmatprep.subr.bf16.mxu0 0
      %457 = vmatpush1.bf16.msra.mxu0 %v298
      %458 = vmatprep.subr.bf16.mxu0 0
      %459 = vmatpush2.bf16.msra.mxu0 0
      %460 = vmatprep.subr.bf16.mxu0 0
      %461 = vmatpush2.bf16.msra.mxu0 0
      %462 = vmatprep.subr.bf16.mxu0 0
      %463 = vmatpush2.bf16.msra.mxu0 0
      %464 = vmatprep.subr.bf16.mxu0 0
      %465 = vmatpush2.bf16.msra.mxu0 0
      %466 = vmatprep.subr.bf16.mxu0 0
      %467 = vmatpush2.bf16.msra.mxu0 0
      %468 = vmatprep.subr.bf16.mxu0 0
      %469 = vmatpush2.bf16.msra.mxu0 0
      %470 = vmatprep.subr.bf16.mxu0 0
      %471 = vmatpush2.bf16.msra.mxu0 0
      %472 = vmatprep.subr.bf16.mxu0 0
      %473 = vmatpush2.bf16.msra.mxu0 0
      %474 = vmatprep.mubr.bf16.mxu0 0
      %475 = vmatmul.mubr.bf16.gmra.mxu0 %v440
      %v476 = vpop.f32.mrf.mxu0
      %v477 = vadd.f32 0.0, %v476
      %v478 = vpop.f32.mrf.mxu0
      %v479 = vpop.f32.mrf.mxu0
      %v480 = vpop.f32.mrf.mxu0
      %481 = vdwg.mxu0
      %s482 = scalar_lea.vmem %s252, 8
      %v483 = vld [vmem:[%s482] sm:$0xff]
      %v484 = vadd.f32 %v483, %v477
      %v485 = vxor.u32 %v484, 2147483648
      %v486 = vmul.f32 %v485, 1.442695
      %v487 = vpow.pop %v486
      %v488 = vadd.f32 %v487, 1.0
      %v489 = vrcp.pop %v488
      %v490 = vmul.f32 1.0, %v489
      %v491 = vadd.f32 %v477, %v360
      %493 = vrot.lane.b32.xlu0 %v491, 96
      %v494 = vpop.permute.xlu0 %493
      %v496 = vmul.f32 %v490, %v494
      %498 = vrot.lane.b32.xlu0 %v496, 32
      %v499 = vpop.permute.xlu0 %498
      %v501 = vadd.f32 %v483, %v499
      %v502 = vtanh.pop %v501
      %v503 = vsub.f32 1.0, %v490
      %505 = vrot.lane.b32.xlu0 %v502, 112
      %v506 = vpop.permute.xlu0 %505
      %v508 = vmul.f32 %v503, %v506
      %510 = vrot.lane.b32.xlu0 %v437, 16
      %v511 = vpop.permute.xlu0 %510
      %v513 = vmul.f32 %v490, %v511
      %v514 = vadd.f32 %v508, %v513
      %s515 = scalar_lea.vmem %s259, 16
      %v516 = vld [vmem:[%s515] sm:$0xff]
      %518 = vrot.lane.b32.xlu0 %v477, 80
      %v519 = vpop.permute.xlu0 %518
      %v521 = vadd.f32 %v516, %v519
      %v522 = vxor.u32 %v521, 2147483648
      %v523 = vmul.f32 %v522, 1.442695
      %v524 = vpow.pop %v523
      %v525 = vadd.f32 %v524, 1.0
      %v526 = vrcp.pop %v525
      %v527 = vmul.f32 1.0, %v526
      %v528 = vadd.f32 %v477, %v400
      %530 = vrot.lane.b32.xlu0 %v528, 48
      %v531 = vpop.permute.xlu0 %530
      %v533 = vmul.f32 %v527, %v531
      %535 = vrot.lane.b32.xlu0 %v533, 32
      %v536 = vpop.permute.xlu0 %535
      %v538 = vadd.f32 %v516, %v536
      %v539 = vtanh.pop %v538
      %v540 = vsub.f32 1.0, %v527
      %542 = vrot.lane.b32.xlu0 %v539, 112
      %v543 = vpop.permute.xlu0 %542
      %v545 = vmul.f32 %v540, %v543
      %v546 = vmul.f32 %v527, %v437
      %v547 = vadd.f32 %v545, %v546
      %549 = vrot.lane.b32.xlu0 %v514, 112
      %v550 = vpop.permute.xlu0 %549
      %s552 = scalar_lea.vmem %s266, 8
      %553 = vst.msk [vmem:[%s552] sm:$0xff] %vm426, %v550
      %555 = vrot.lane.b32.xlu0 %v547, 112
      %v556 = vpop.permute.xlu0 %555
      %s558 = scalar_lea.vmem %s273, 16
      %559 = vst.msk [vmem:[%s558] sm:$0xff] %vm426, %v556
      %560 = vst.msk [vmem:[#allocation2] sm:$0xff] %vm426, %v550
      %561 = vst.msk [vmem:[#allocation2] sm:$0xff] %vm435, %v547
      %v562 = vld [vmem:[#allocation2] sm:$0xff]
      %v563 = vpack.c.bf16 %v562, %v562
      %v565 = vsel %vm302, %v563, 0
      %567 = vmatprep.subr.bf16.mxu0 0
      %568 = vmatpush1.bf16.msra.mxu0 0
      %569 = vmatprep.subr.bf16.mxu0 0
      %570 = vmatpush1.bf16.msra.mxu0 0
      %571 = vmatprep.subr.bf16.mxu0 0
      %572 = vmatpush1.bf16.msra.mxu0 0
      %573 = vmatprep.subr.bf16.mxu0 0
      %574 = vmatpush1.bf16.msra.mxu0 0
      %575 = vmatprep.subr.bf16.mxu0 0
      %576 = vmatpush1.bf16.msra.mxu0 0
      %577 = vmatprep.subr.bf16.mxu0 0
      %578 = vmatpush1.bf16.msra.mxu0 0
      %579 = vmatprep.subr.bf16.mxu0 0
      %580 = vmatpush1.bf16.msra.mxu0 %v299
      %581 = vmatprep.subr.bf16.mxu0 0
      %582 = vmatpush1.bf16.msra.mxu0 %v298
      %583 = vmatprep.subr.bf16.mxu0 0
      %584 = vmatpush2.bf16.msra.mxu0 0
      %585 = vmatprep.subr.bf16.mxu0 0
      %586 = vmatpush2.bf16.msra.mxu0 0
      %587 = vmatprep.subr.bf16.mxu0 0
      %588 = vmatpush2.bf16.msra.mxu0 0
      %589 = vmatprep.subr.bf16.mxu0 0
      %590 = vmatpush2.bf16.msra.mxu0 0
      %591 = vmatprep.subr.bf16.mxu0 0
      %592 = vmatpush2.bf16.msra.mxu0 0
      %593 = vmatprep.subr.bf16.mxu0 0
      %594 = vmatpush2.bf16.msra.mxu0 0
      %595 = vmatprep.subr.bf16.mxu0 0
      %596 = vmatpush2.bf16.msra.mxu0 0
      %597 = vmatprep.subr.bf16.mxu0 0
      %598 = vmatpush2.bf16.msra.mxu0 0
      %599 = vmatprep.mubr.bf16.mxu0 0
      %600 = vmatmul.mubr.bf16.gmra.mxu0 %v565
      %v601 = vpop.f32.mrf.mxu0
      %v602 = vadd.f32 0.0, %v601
      %v603 = vpop.f32.mrf.mxu0
      %v604 = vpop.f32.mrf.mxu0
      %v605 = vpop.f32.mrf.mxu0
      %606 = vdwg.mxu0
      %s607 = scalar_lea.vmem %s252, 16
      %v608 = vld [vmem:[%s607] sm:$0xff]
      %v609 = vadd.f32 %v608, %v602
      %v610 = vxor.u32 %v609, 2147483648
      %v611 = vmul.f32 %v610, 1.442695
      %v612 = vpow.pop %v611
      %v613 = vadd.f32 %v612, 1.0
      %v614 = vrcp.pop %v613
      %v615 = vmul.f32 1.0, %v614
      %v616 = vadd.f32 %v602, %v360
      %618 = vrot.lane.b32.xlu0 %v616, 96
      %v619 = vpop.permute.xlu0 %618
      %v621 = vmul.f32 %v615, %v619
      %623 = vrot.lane.b32.xlu0 %v621, 32
      %v624 = vpop.permute.xlu0 %623
      %v626 = vadd.f32 %v608, %v624
      %v627 = vtanh.pop %v626
      %v628 = vsub.f32 1.0, %v615
      %630 = vrot.lane.b32.xlu0 %v627, 112
      %v631 = vpop.permute.xlu0 %630
      %v633 = vmul.f32 %v628, %v631
      %635 = vrot.lane.b32.xlu0 %v562, 16
      %v636 = vpop.permute.xlu0 %635
      %v638 = vmul.f32 %v615, %v636
      %v639 = vadd.f32 %v633, %v638
      %s640 = scalar_lea.vmem %s259, 8
      %v641 = vld [vmem:[%s640] sm:$0xff]
      %643 = vrot.lane.b32.xlu0 %v602, 80
      %v644 = vpop.permute.xlu0 %643
      %v646 = vadd.f32 %v641, %v644
      %v647 = vxor.u32 %v646, 2147483648
      %v648 = vmul.f32 %v647, 1.442695
      %v649 = vpow.pop %v648
      %v650 = vadd.f32 %v649, 1.0
      %v651 = vrcp.pop %v650
      %v652 = vmul.f32 1.0, %v651
      %v653 = vadd.f32 %v602, %v400
      %655 = vrot.lane.b32.xlu0 %v653, 48
      %v656 = vpop.permute.xlu0 %655
      %v658 = vmul.f32 %v652, %v656
      %660 = vrot.lane.b32.xlu0 %v658, 32
      %v661 = vpop.permute.xlu0 %660
      %v663 = vadd.f32 %v641, %v661
      %v664 = vtanh.pop %v663
      %v665 = vsub.f32 1.0, %v652
      %667 = vrot.lane.b32.xlu0 %v664, 112
      %v668 = vpop.permute.xlu0 %667
      %v670 = vmul.f32 %v665, %v668
      %v671 = vmul.f32 %v652, %v562
      %v672 = vadd.f32 %v670, %v671
      %674 = vrot.lane.b32.xlu0 %v639, 112
      %v675 = vpop.permute.xlu0 %674
      %s677 = scalar_lea.vmem %s266, 16
      %678 = vst.msk [vmem:[%s677] sm:$0xff] %vm426, %v675
      %680 = vrot.lane.b32.xlu0 %v672, 112
      %v681 = vpop.permute.xlu0 %680
      %s683 = scalar_lea.vmem %s273, 8
      %684 = vst.msk [vmem:[%s683] sm:$0xff] %vm426, %v681
      %685 = vst.msk [vmem:[#allocation2] sm:$0xff] %vm426, %v675
      %686 = vst.msk [vmem:[#allocation2] sm:$0xff] %vm435, %v672
      %v687 = vld [vmem:[#allocation2] sm:$0xff]
      %v688 = vpack.c.bf16 %v687, %v687
      %v690 = vsel %vm302, %v688, 0
      %692 = vmatprep.subr.bf16.mxu0 0
      %693 = vmatpush1.bf16.msra.mxu0 0
      %694 = vmatprep.subr.bf16.mxu0 0
      %695 = vmatpush1.bf16.msra.mxu0 0
      %696 = vmatprep.subr.bf16.mxu0 0
      %697 = vmatpush1.bf16.msra.mxu0 0
      %698 = vmatprep.subr.bf16.mxu0 0
      %699 = vmatpush1.bf16.msra.mxu0 0
      %700 = vmatprep.subr.bf16.mxu0 0
      %701 = vmatpush1.bf16.msra.mxu0 0
      %702 = vmatprep.subr.bf16.mxu0 0
      %703 = vmatpush1.bf16.msra.mxu0 0
      %704 = vmatprep.subr.bf16.mxu0 0
      %705 = vmatpush1.bf16.msra.mxu0 %v299
      %706 = vmatprep.subr.bf16.mxu0 0
      %707 = vmatpush1.bf16.msra.mxu0 %v298
      %708 = vmatprep.subr.bf16.mxu0 0
      %709 = vmatpush2.bf16.msra.mxu0 0
      %710 = vmatprep.subr.bf16.mxu0 0
      %711 = vmatpush2.bf16.msra.mxu0 0
      %712 = vmatprep.subr.bf16.mxu0 0
      %713 = vmatpush2.bf16.msra.mxu0 0
      %714 = vmatprep.subr.bf16.mxu0 0
      %715 = vmatpush2.bf16.msra.mxu0 0
      %716 = vmatprep.subr.bf16.mxu0 0
      %717 = vmatpush2.bf16.msra.mxu0 0
      %718 = vmatprep.subr.bf16.mxu0 0
      %719 = vmatpush2.bf16.msra.mxu0 0
      %720 = vmatprep.subr.bf16.mxu0 0
      %721 = vmatpush2.bf16.msra.mxu0 0
      %722 = vmatprep.subr.bf16.mxu0 0
      %723 = vmatpush2.bf16.msra.mxu0 0
      %724 = vmatprep.mubr.bf16.mxu0 0
      %725 = vmatmul.mubr.bf16.gmra.mxu0 %v690
      %v726 = vpop.f32.mrf.mxu0
      %v727 = vadd.f32 0.0, %v726
      %v728 = vpop.f32.mrf.mxu0
      %v729 = vpop.f32.mrf.mxu0
      %v730 = vpop.f32.mrf.mxu0
      %731 = vdwg.mxu0
      %s732 = scalar_lea.vmem %s252, 24
      %v733 = vld [vmem:[%s732] sm:$0xff]
      %v734 = vadd.f32 %v733, %v727
      %v735 = vxor.u32 %v734, 2147483648
      %v736 = vmul.f32 %v735, 1.442695
      %v737 = vpow.pop %v736
      %v738 = vadd.f32 %v737, 1.0
      %v739 = vrcp.pop %v738
      %v740 = vmul.f32 1.0, %v739
      %v741 = vadd.f32 %v727, %v360
      %743 = vrot.lane.b32.xlu0 %v741, 96
      %v744 = vpop.permute.xlu0 %743
      %v746 = vmul.f32 %v740, %v744
      %748 = vrot.lane.b32.xlu0 %v746, 32
      %v749 = vpop.permute.xlu0 %748
      %v751 = vadd.f32 %v733, %v749
      %v752 = vtanh.pop %v751
      %v753 = vsub.f32 1.0, %v740
      %755 = vrot.lane.b32.xlu0 %v752, 112
      %v756 = vpop.permute.xlu0 %755
      %v758 = vmul.f32 %v753, %v756
      %760 = vrot.lane.b32.xlu0 %v687, 16
      %v761 = vpop.permute.xlu0 %760
      %v763 = vmul.f32 %v740, %v761
      %v764 = vadd.f32 %v758, %v763
      %v765 = vld [vmem:[%s259] sm:$0xff]
      %767 = vrot.lane.b32.xlu0 %v727, 80
      %v768 = vpop.permute.xlu0 %767
      %v770 = vadd.f32 %v765, %v768
      %v771 = vxor.u32 %v770, 2147483648
      %v772 = vmul.f32 %v771, 1.442695
      %v773 = vpow.pop %v772
      %v774 = vadd.f32 %v773, 1.0
      %v775 = vrcp.pop %v774
      %v776 = vmul.f32 1.0, %v775
      %v777 = vadd.f32 %v727, %v400
      %779 = vrot.lane.b32.xlu0 %v777, 48
      %v780 = vpop.permute.xlu0 %779
      %v782 = vmul.f32 %v776, %v780
      %784 = vrot.lane.b32.xlu0 %v782, 32
      %v785 = vpop.permute.xlu0 %784
      %v787 = vadd.f32 %v765, %v785
      %v788 = vtanh.pop %v787
      %v789 = vsub.f32 1.0, %v776
      %791 = vrot.lane.b32.xlu0 %v788, 112
      %v792 = vpop.permute.xlu0 %791
      %v794 = vmul.f32 %v789, %v792
      %v795 = vmul.f32 %v776, %v687
      %v796 = vadd.f32 %v794, %v795
      %798 = vrot.lane.b32.xlu0 %v764, 112
      %v799 = vpop.permute.xlu0 %798
      %s801 = scalar_lea.vmem %s266, 24
      %802 = vst.msk [vmem:[%s801] sm:$0xff] %vm426, %v799
      %804 = vrot.lane.b32.xlu0 %v796, 112
      %v805 = vpop.permute.xlu0 %804
      %807 = vst.msk [vmem:[%s273] sm:$0xff] %vm426, %v805
      %808 = vst.msk [vmem:[#allocation2] sm:$0xff] %vm426, %v799
      %809 = vst.msk [vmem:[#allocation2] sm:$0xff] %vm435, %v796
      %s810 = smul.u32 4, %s17
      %p811 = scmp.lt.s32.totalorder %s810, 7
      %s812 = scalar_select %p811, %s810, 7
      %s813 = smul.addr %s812, 8
      %s814 = scalar_lea.vmem %s4, %s813
      %s815 = ssub.s32 1, %s17
      %s816 = smul.u32 4, %s815
      %p817 = scmp.lt.s32.totalorder %s816, 7
      %s818 = scalar_select %p817, %s816, 7
      %s819 = smul.addr %s818, 8
      %s820 = scalar_lea.vmem %s5, %s819
      // Predicated region
      $region41: #{sentiment_forward.6} parent=35 // pred_check
        %p821 = pneg %p131
      $region42: #{sentiment_forward.6} parent=35 // pred_check_branch
        %823 = sbr.rel (%p821) target = $region44
      $region43: #{sentiment_forward.6} parent=35 // pred_region
        %s824 = smul.u32 4, %s17
      $region44: #{sentiment_forward.6} parent=35 // pred_fallthru
        _
      // Predicated region
      $region45: #{sentiment_forward.6} parent=35 // pred_check
        %p825 = pneg %p159
      $region46: #{sentiment_forward.6} parent=35 // pred_check_branch
        %827 = sbr.rel (%p825) target = $region48
      $region47: #{sentiment_forward.6} parent=35 // pred_region
        %s828 = ssub.s32 1, %s17
        %s829 = smul.u32 4, %s828
      $region48: #{sentiment_forward.6} parent=35 // pred_fallthru
        _
    $region36: #{sentiment_forward.6} parent=5 // pred_fallthru
      _
    %p830 = scmp.le.s32.totalorder 2, %s12
    // Predicated region
    $region49: #{sentiment_forward.6} parent=5 // pred_check
      %p831 = pneg %p830
    $region50: #{sentiment_forward.6} parent=5 // pred_check_branch
      %833 = sbr.rel (%p831) target = $region52
    $region51: #{sentiment_forward.6} parent=5 // pred_region
      %s834 = ssub.s32 %s12, 2
      // Predicated region
      $region53: #{sentiment_forward.6} parent=51 // pred_check
        %p835 = pneg %p137
      $region54: #{sentiment_forward.6} parent=51 // pred_check_branch
        %837 = sbr.rel (%p835) target = $region56
      $region55: #{sentiment_forward.6} parent=51 // pred_region
        %s838 = smul.u32 4, %s18
        %p839 = scmp.lt.s32.totalorder %s838, 7
        %s840 = scalar_select %p839, %s838, 7
        %s841 = smul.addr %s840, 8
        %s842 = scalar_lea.vmem %s4, %s841
      $region56: #{sentiment_forward.6} parent=51 // pred_fallthru
        _
      // Predicated region
      $region57: #{sentiment_forward.6} parent=51 // pred_check
        %p843 = pneg %p165
      $region58: #{sentiment_forward.6} parent=51 // pred_check_branch
        %845 = sbr.rel (%p843) target = $region60
      $region59: #{sentiment_forward.6} parent=51 // pred_region
        %s846 = ssub.s32 1, %s18
        %s847 = smul.u32 4, %s846
        %p848 = scmp.lt.s32.totalorder %s847, 7
        %s849 = scalar_select %p848, %s847, 7
        %s850 = smul.addr %s849, 8
        %s851 = scalar_lea.vmem %s5, %s850
      $region60: #{sentiment_forward.6} parent=51 // pred_fallthru
        _
    $region52: #{sentiment_forward.6} parent=5 // pred_fallthru
      _
  $region6: #{sentiment_forward.6} parent=0 // loop_footer
    %s16 = sadd.s32 1, %s12
  $region7: #{sentiment_forward.6} parent=0 // loop_footer_branch
    %11 = sbr.rel target = $region3
  $region8: #{sentiment_forward.6} parent=0 // loop_exit
    _

</llo_original>
